<compile_context>
chip_gen: v7x
topology: tpu7x:2x2x1
jax: 0.10.0
libtpu: 0.0.40
codegen_flags: <defaults>
</compile_context>

<pallas_src>
import functools

import jax
import jax.numpy as jnp
from jax.experimental import pallas as pl
from jax.experimental.pallas import tpu as pltpu


def _round_up(x, m):
    return (x + m - 1) // m * m


def _pick_tile_h(h_out, cap=32):
    """Largest divisor of h_out that is <= cap (bounds scratch/acc VMEM).

    For H_out=100 this picks 25 (per the perf review); for prime H_out it
    degrades gracefully to 1 instead of blowing up VMEM.
    """
    best = 1
    for th in range(1, min(h_out, cap) + 1):
        if h_out % th == 0:
            best = th
    return best


def grouped_conv_kernel(x_ref, w_ref, b_ref, o_ref, big_ref, acc_ref):
    # x_ref  : (1, Hp, Wsrc, Cin)        zero-padded NHWC image (resident per b)
    # w_ref  : (KH, KW*Cin, Cout)        width-im2col'd block-diagonal weights
    # b_ref  : (1, Cout)                 f32 bias row
    # o_ref  : (1, TH, Wout, Cout)       output row tile
    # big_ref: (TH+KH-1, Wpad, KW*Cin)   VMEM width-im2col scratch
    # acc_ref: (TH*Wpad, Cout)           f32 VMEM accumulator (no vreg spills)
    _, hp, wsrc, cin = x_ref.shape
    kh_dim, kwcin, cout = w_ref.shape
    kw_dim = kwcin // cin
    nrows, wpad, _ = big_ref.shape
    _, th, wout, _ = o_ref.shape
    m = th * wpad

    row0 = pl.program_id(1) * th

    # ---- width-im2col into scratch: full, constant-shape, aligned slabs -----
    # big[r, w, kw*Cin:(kw+1)*Cin] = x_pad[row0 + r, w + kw, :]
    # Wsrc >= Wpad + KW - 1, so pl.ds(kw, Wpad) is always in-bounds and every
    # copy is a full (nrows, Wpad, Cin) slab (no ragged sublane extents, no
    # zero-fill pass).  Columns >= Wout only feed output columns that are
    # dropped at store time.
    for kw in range(kw_dim):
        big_ref[:, :, kw * cin:(kw + 1) * cin] = (
            x_ref[0, pl.ds(row0, nrows), pl.ds(kw, wpad), :])

    # ---- KH fat MXU matmuls, K = KW*Cin (=192), accumulate in f32 VMEM ------
    for kh in range(kh_dim):
        lhs = big_ref[pl.ds(kh, th), :, :].reshape(m, kwcin)   # layout-preserving
        part = jnp.dot(lhs, w_ref[kh], preferred_element_type=jnp.float32)
        if kh == 0:
            acc_ref[...] = part
        else:
            acc_ref[...] += part

    # ---- epilogue: bias, drop padded columns, cast, lane-dense store --------
    out = (acc_ref[...] + b_ref[...].astype(jnp.float32)).reshape(th, wpad, cout)
    o_ref[0, :, :, :] = out[:, :wout, :].astype(o_ref.dtype)


def pack_grouped_params(w_oihw, bias, groups, compute_dtype=jnp.bfloat16):
    """One-time packing (hoisted out of the per-call path).

    Grouped OIHW weights (Cout, Cin//g, KH, KW) -> block-diagonal
    (KH, KW, Cin, Cout) -> width-im2col (KH, KW*Cin, Cout), cast to the compute
    dtype. Bias becomes an f32 (1, Cout) row (added on the f32 accumulator).
    """
    cout, cin_pg, kh, kw = w_oihw.shape
    cout_pg = cout // groups
    cin = cin_pg * groups
    w_g = w_oihw.reshape(groups, cout_pg, cin_pg, kh, kw)
    w_perm = jnp.transpose(w_g, (3, 4, 0, 2, 1))           # (KH,KW,G,cin_pg,cout_pg)
    eye = jnp.eye(groups, dtype=w_oihw.dtype)
    # block diagonal: w_bd[kh,kw, g*cin_pg+i, g*cout_pg+o] = w[g*cout_pg+o, i, kh, kw]
    w_bd = jnp.einsum('hwgio,gf->hwgifo', w_perm, eye).reshape(kh, kw, cin, cout)
    w_packed = w_bd.reshape(kh, kw * cin, cout).astype(compute_dtype)
    b_row = bias.reshape(1, cout).astype(jnp.float32)
    return w_packed, b_row


def grouped_conv2d_nhwc(x_nhwc, w_packed, b_row, *, padding=1, tile_h=None):
    """Grouped conv2d, stride 1 only, NHWC in/out, with pre-packed weights."""
    B, H, W, Cin = x_nhwc.shape
    KH, KWCin, Cout = w_packed.shape
    assert KWCin % Cin == 0
    KW = KWCin // Cin
    dtype = w_packed.dtype

    # stride == 1 is baked into this formulation (Hp = H_out + KH - 1 below).
    H_out = H + 2 * padding - KH + 1
    W_out = W + 2 * padding - KW + 1
    # padded compute width: multiple of 16 so (rows, Wpad, C) reshapes are
    # layout-preserving for both bf16 and f32
    Wpad = _round_up(W_out + KW - 1, 16)
    # extra 16 columns so every kw im2col copy pl.ds(kw, Wpad) is in-bounds
    Wsrc = Wpad + 16
    Hp = H_out + KH - 1                       # == H + 2*padding (stride=1)
    assert Hp == H + 2 * padding

    # single prep pass (cast + zero-pad fused by XLA)
    x_pad = jnp.pad(x_nhwc.astype(dtype),
                    ((0, 0),
                     (padding, Hp - H - padding),
                     (padding, Wsrc - W - padding),
                     (0, 0)))

    TH = tile_h if tile_h is not None else _pick_tile_h(H_out)
    assert H_out % TH == 0, (H_out, TH)
    nT = H_out // TH

    return pl.pallas_call(
        grouped_conv_kernel,
        out_shape=jax.ShapeDtypeStruct((B, H_out, W_out, Cout), dtype),
        grid_spec=pltpu.PrefetchScalarGridSpec(
            num_scalar_prefetch=0,
            grid=(B, nT),
            in_specs=[
                # whole padded image: VMEM-resident across the row-tile axis
                pl.BlockSpec((1, Hp, Wsrc, Cin), lambda b, t: (b, 0, 0, 0)),
                pl.BlockSpec((KH, KWCin, Cout), lambda b, t: (0, 0, 0)),
                pl.BlockSpec((1, Cout), lambda b, t: (0, 0)),
            ],
            out_specs=pl.BlockSpec((1, TH, W_out, Cout), lambda b, t: (b, t, 0, 0)),
            scratch_shapes=[
                pltpu.VMEM((TH + KH - 1, Wpad, KWCin), dtype),     # im2col slab
                pltpu.VMEM((TH * Wpad, Cout), jnp.float32),        # f32 accumulator
            ],
        ),
        compiler_params=pltpu.CompilerParams(
            dimension_semantics=("parallel", "parallel"),
            vmem_limit_bytes=48 * 1024 * 1024),
    )(x_pad, w_packed, b_row)


@functools.partial(jax.jit, static_argnames=("padding", "tile_h"))
def grouped_conv2d(x_nchw, w_packed, b_row, *, padding=1, tile_h=None):
    """Drop-in forward for CustomGroupedConv2D: NCHW in, NCHW out (stride=1)."""
    # TODO(synk): if the surrounding model can stay NHWC end-to-end, call
    # grouped_conv2d_nhwc directly and drop these two full-tensor transpose
    # passes (pure layout traffic around a few-microsecond, memory-bound kernel).
    x_nhwc = jnp.transpose(x_nchw, (0, 2, 3, 1))
    y = grouped_conv2d_nhwc(x_nhwc, w_packed, b_row, padding=padding, tile_h=tile_h)
    return jnp.transpose(y, (0, 3, 1, 2))


if __name__ == "__main__":
    # CustomGroupedConv2D(64, 128, 3, stride=1, padding=1, groups=16, bias=True)
    # channel config fixed by the module; small spatial size for the self-test
    # (the module runs 100x100 — the kernel row-tiles, so it scales unchanged).
    B, Cin, H, W = 2, 64, 16, 16
    Cout, groups, K = 128, 16, 3

    key = jax.random.PRNGKey(0)
    kx, kw_, kb = jax.random.split(key, 3)
    x = jax.random.normal(kx, (B, Cin, H, W), jnp.float32)
    w = jax.random.normal(kw_, (Cout, Cin // groups, K, K), jnp.float32) * 0.1
    b = jax.random.normal(kb, (Cout,), jnp.float32) * 0.1

    # ---- bf16 I/O path (recommended: HBM-bound kernel; f32 accumulation) ----
    w_bf, b_row = pack_grouped_params(w, b, groups, jnp.bfloat16)   # packed once
    y_bf = grouped_conv2d(x, w_bf, b_row, padding=1)
    y_bf = jax.block_until_ready(y_bf)
    assert y_bf.shape == (B, Cout, H, W)
    assert y_bf.dtype == jnp.bfloat16

    ref_bf = jax.lax.conv_general_dilated(
        x.astype(jnp.bfloat16), w.astype(jnp.bfloat16),
        window_strides=(1, 1), padding=((1, 1), (1, 1)),
        feature_group_count=groups,
        dimension_numbers=('NCHW', 'OIHW', 'NCHW'),
        preferred_element_type=jnp.float32) + b[None, :, None, None]
    err_bf = float(jnp.max(jnp.abs(y_bf.astype(jnp.float32) - ref_bf)))
    assert err_bf < 3e-2, f"bf16 max_err={err_bf}"

    # ---- f32 path: tight numerical check vs XLA grouped conv ---------------
    w_f32, b_row32 = pack_grouped_params(w, b, groups, jnp.float32)
    y_f32 = grouped_conv2d(x, w_f32, b_row32, padding=1)
    y_f32 = jax.block_until_ready(y_f32)
    ref_f32 = jax.lax.conv_general_dilated(
        x, w, window_strides=(1, 1), padding=((1, 1), (1, 1)),
        feature_group_count=groups,
        dimension_numbers=('NCHW', 'OIHW', 'NCHW')) + b[None, :, None, None]
    err_f32 = float(jnp.max(jnp.abs(y_f32 - ref_f32)))
    assert err_f32 < 1e-3, f"f32 max_err={err_f32}"

    print("KERNEL_OK")
</pallas_src>

<mosaic_0001>
module attributes {stable_mosaic.version = 11 : i64} {
  func.func @grouped_conv_kernel(%arg0: i32, %arg1: i32, %arg2: memref<1x18x48x64xbf16, #tpu.memory_space<vmem>>, %arg3: memref<3x192x128xbf16, #tpu.memory_space<vmem>>, %arg4: memref<1x128xf32, #tpu.memory_space<vmem>>, %arg5: memref<1x16x16x128xbf16, #tpu.memory_space<vmem>>, %arg6: memref<18x32x192xbf16, #tpu.memory_space<vmem>>, %arg7: memref<512x128xf32, #tpu.memory_space<vmem>>) attributes {dimension_semantics = [#tpu.dimension_semantics<parallel>, #tpu.dimension_semantics<parallel>], iteration_bounds = array<i64: 2, 1>, scalar_prefetch = 0 : i64, scratch_operands = 2 : i64, tpu.core_type = #tpu.core_type<tc>, window_params = [{transform_indices = @transform_0, window_bounds = array<i64: 1, 18, 48, 64>}, {pipeline_mode = #tpu.pipeline_mode<synchronous>, transform_indices = @transform_1, window_bounds = array<i64: 3, 192, 128>}, {pipeline_mode = #tpu.pipeline_mode<synchronous>, transform_indices = @transform_2, window_bounds = array<i64: 1, 128>}, {transform_indices = @transform_3, window_bounds = array<i64: 1, 16, 16, 128>}]} {
    %c16_i32 = arith.constant 16 : i32
    %0 = arith.muli %arg1, %c16_i32 : i32
    %c0 = arith.constant 0 : index
    %1 = arith.index_cast %0 : i32 to index
    %c0_0 = arith.constant 0 : index
    %c0_1 = arith.constant 0 : index
    %2 = vector.load %arg2[%c0, %1, %c0_0, %c0_1] : memref<1x18x48x64xbf16, #tpu.memory_space<vmem>>, vector<1x18x32x64xbf16>
    %3 = vector.shape_cast %2 : vector<1x18x32x64xbf16> to vector<18x32x64xbf16>
    %c0_2 = arith.constant 0 : index
    %c0_3 = arith.constant 0 : index
    %c0_4 = arith.constant 0 : index
    %4 = vector.load %arg6[%c0_2, %c0_3, %c0_4] : memref<18x32x192xbf16, #tpu.memory_space<vmem>>, vector<18x32x64xbf16>
    tpu.vector_store %arg6[%c0_2, %c0_3, %c0_4], %3 {strides = array<i32>} : memref<18x32x192xbf16, #tpu.memory_space<vmem>>, vector<18x32x64xbf16>,
    %c0_5 = arith.constant 0 : index
    %5 = arith.index_cast %0 : i32 to index
    %c1 = arith.constant 1 : index
    %c0_6 = arith.constant 0 : index
    %6 = vector.load %arg2[%c0_5, %5, %c1, %c0_6] : memref<1x18x48x64xbf16, #tpu.memory_space<vmem>>, vector<1x18x32x64xbf16>
    %7 = vector.shape_cast %6 : vector<1x18x32x64xbf16> to vector<18x32x64xbf16>
    %c0_7 = arith.constant 0 : index
    %c0_8 = arith.constant 0 : index
    %c64 = arith.constant 64 : index
    %8 = vector.load %arg6[%c0_7, %c0_8, %c64] : memref<18x32x192xbf16, #tpu.memory_space<vmem>>, vector<18x32x64xbf16>
    tpu.vector_store %arg6[%c0_7, %c0_8, %c64], %7 {strides = array<i32>} : memref<18x32x192xbf16, #tpu.memory_space<vmem>>, vector<18x32x64xbf16>,
    %c0_9 = arith.constant 0 : index
    %9 = arith.index_cast %0 : i32 to index
    %c2 = arith.constant 2 : index
    %c0_10 = arith.constant 0 : index
    %10 = vector.load %arg2[%c0_9, %9, %c2, %c0_10] : memref<1x18x48x64xbf16, #tpu.memory_space<vmem>>, vector<1x18x32x64xbf16>
    %11 = vector.shape_cast %10 : vector<1x18x32x64xbf16> to vector<18x32x64xbf16>
    %c0_11 = arith.constant 0 : index
    %c0_12 = arith.constant 0 : index
    %c128 = arith.constant 128 : index
    %12 = vector.load %arg6[%c0_11, %c0_12, %c128] : memref<18x32x192xbf16, #tpu.memory_space<vmem>>, vector<18x32x64xbf16>
    tpu.vector_store %arg6[%c0_11, %c0_12, %c128], %11 {strides = array<i32>} : memref<18x32x192xbf16, #tpu.memory_space<vmem>>, vector<18x32x64xbf16>,
    %c0_13 = arith.constant 0 : index
    %c0_14 = arith.constant 0 : index
    %c0_15 = arith.constant 0 : index
    %13 = vector.load %arg6[%c0_13, %c0_14, %c0_15] : memref<18x32x192xbf16, #tpu.memory_space<vmem>>, vector<16x32x192xbf16>
    %14 = vector.shape_cast %13 : vector<16x32x192xbf16> to vector<512x192xbf16>
    %c0_16 = arith.constant 0 : index
    %c0_17 = arith.constant 0 : index
    %c0_18 = arith.constant 0 : index
    %15 = vector.load %arg3[%c0_16, %c0_17, %c0_18] : memref<3x192x128xbf16, #tpu.memory_space<vmem>>, vector<1x192x128xbf16>
    %16 = vector.shape_cast %15 : vector<1x192x128xbf16> to vector<192x128xbf16>
    %cst = arith.constant dense<0.000000e+00> : vector<512x128xf32>
    %17 = tpu.matmul %14, %16, %cst {dimension_numbers = #tpu.dot_dimension_numbers<[1], [0], [0], [1], [0, 0, 1, 1], [], []>} : vector<512x192xbf16>, vector<192x128xbf16>, vector<512x128xf32> -> vector<512x128xf32>
    %c0_19 = arith.constant 0 : index
    %c0_20 = arith.constant 0 : index
    %18 = vector.load %arg7[%c0_19, %c0_20] : memref<512x128xf32, #tpu.memory_space<vmem>>, vector<512x128xf32>
    tpu.vector_store %arg7[%c0_19, %c0_20], %17 {strides = array<i32>} : memref<512x128xf32, #tpu.memory_space<vmem>>, vector<512x128xf32>,
    %c1_21 = arith.constant 1 : index
    %c0_22 = arith.constant 0 : index
    %c0_23 = arith.constant 0 : index
    %19 = vector.load %arg6[%c1_21, %c0_22, %c0_23] : memref<18x32x192xbf16, #tpu.memory_space<vmem>>, vector<16x32x192xbf16>
    %20 = vector.shape_cast %19 : vector<16x32x192xbf16> to vector<512x192xbf16>
    %c1_24 = arith.constant 1 : index
    %c0_25 = arith.constant 0 : index
    %c0_26 = arith.constant 0 : index
    %21 = vector.load %arg3[%c1_24, %c0_25, %c0_26] : memref<3x192x128xbf16, #tpu.memory_space<vmem>>, vector<1x192x128xbf16>
    %22 = vector.shape_cast %21 : vector<1x192x128xbf16> to vector<192x128xbf16>
    %cst_27 = arith.constant dense<0.000000e+00> : vector<512x128xf32>
    %23 = tpu.matmul %20, %22, %cst_27 {dimension_numbers = #tpu.dot_dimension_numbers<[1], [0], [0], [1], [0, 0, 1, 1], [], []>} : vector<512x192xbf16>, vector<192x128xbf16>, vector<512x128xf32> -> vector<512x128xf32>
    %c0_28 = arith.constant 0 : index
    %c0_29 = arith.constant 0 : index
    %24 = vector.load %arg7[%c0_28, %c0_29] : memref<512x128xf32, #tpu.memory_space<vmem>>, vector<512x128xf32>
    %25 = arith.addf %24, %23 : vector<512x128xf32>
    %c0_30 = arith.constant 0 : index
    %c0_31 = arith.constant 0 : index
    %26 = vector.load %arg7[%c0_30, %c0_31] : memref<512x128xf32, #tpu.memory_space<vmem>>, vector<512x128xf32>
    tpu.vector_store %arg7[%c0_30, %c0_31], %25 {strides = array<i32>} : memref<512x128xf32, #tpu.memory_space<vmem>>, vector<512x128xf32>,
    %c2_32 = arith.constant 2 : index
    %c0_33 = arith.constant 0 : index
    %c0_34 = arith.constant 0 : index
    %27 = vector.load %arg6[%c2_32, %c0_33, %c0_34] : memref<18x32x192xbf16, #tpu.memory_space<vmem>>, vector<16x32x192xbf16>
    %28 = vector.shape_cast %27 : vector<16x32x192xbf16> to vector<512x192xbf16>
    %c2_35 = arith.constant 2 : index
    %c0_36 = arith.constant 0 : index
    %c0_37 = arith.constant 0 : index
    %29 = vector.load %arg3[%c2_35, %c0_36, %c0_37] : memref<3x192x128xbf16, #tpu.memory_space<vmem>>, vector<1x192x128xbf16>
    %30 = vector.shape_cast %29 : vector<1x192x128xbf16> to vector<192x128xbf16>
    %cst_38 = arith.constant dense<0.000000e+00> : vector<512x128xf32>
    %31 = tpu.matmul %28, %30, %cst_38 {dimension_numbers = #tpu.dot_dimension_numbers<[1], [0], [0], [1], [0, 0, 1, 1], [], []>} : vector<512x192xbf16>, vector<192x128xbf16>, vector<512x128xf32> -> vector<512x128xf32>
    %c0_39 = arith.constant 0 : index
    %c0_40 = arith.constant 0 : index
    %32 = vector.load %arg7[%c0_39, %c0_40] : memref<512x128xf32, #tpu.memory_space<vmem>>, vector<512x128xf32>
    %33 = arith.addf %32, %31 : vector<512x128xf32>
    %c0_41 = arith.constant 0 : index
    %c0_42 = arith.constant 0 : index
    %34 = vector.load %arg7[%c0_41, %c0_42] : memref<512x128xf32, #tpu.memory_space<vmem>>, vector<512x128xf32>
    tpu.vector_store %arg7[%c0_41, %c0_42], %33 {strides = array<i32>} : memref<512x128xf32, #tpu.memory_space<vmem>>, vector<512x128xf32>,
    %c0_43 = arith.constant 0 : index
    %c0_44 = arith.constant 0 : index
    %35 = vector.load %arg7[%c0_43, %c0_44] : memref<512x128xf32, #tpu.memory_space<vmem>>, vector<512x128xf32>
    %c0_45 = arith.constant 0 : index
    %c0_46 = arith.constant 0 : index
    %36 = vector.load %arg4[%c0_45, %c0_46] : memref<1x128xf32, #tpu.memory_space<vmem>>, vector<1x128xf32>
    %37 = vector.broadcast %36 : vector<1x128xf32> to vector<512x128xf32>
    %38 = arith.addf %35, %37 : vector<512x128xf32>
    %39 = vector.shape_cast %38 : vector<512x128xf32> to vector<16x32x128xf32>
    %40 = vector.extract_strided_slice %39 {offsets = [0, 0, 0], sizes = [16, 16, 128], strides = [1, 1, 1]} : vector<16x32x128xf32> to vector<16x16x128xf32>
    %41 = arith.truncf %40 : vector<16x16x128xf32> to vector<16x16x128xbf16>
    %c0_47 = arith.constant 0 : index
    %c0_48 = arith.constant 0 : index
    %c0_49 = arith.constant 0 : index
    %c0_50 = arith.constant 0 : index
    %42 = vector.load %arg5[%c0_47, %c0_48, %c0_49, %c0_50] : memref<1x16x16x128xbf16, #tpu.memory_space<vmem>>, vector<1x16x16x128xbf16>
    %43 = vector.shape_cast %42 : vector<1x16x16x128xbf16> to vector<16x16x128xbf16>
    %44 = vector.shape_cast %41 : vector<16x16x128xbf16> to vector<1x16x16x128xbf16>
    tpu.vector_store %arg5[%c0_47, %c0_48, %c0_49, %c0_50], %44 {strides = array<i32>} : memref<1x16x16x128xbf16, #tpu.memory_space<vmem>>, vector<1x16x16x128xbf16>,
    return
  }
  func.func @transform_0(%arg0: i32, %arg1: i32) -> (i32, i32, i32, i32) {
    %c0_i32 = arith.constant 0 : i32
    %c0_i32_0 = arith.constant 0 : i32
    %c0_i32_1 = arith.constant 0 : i32
    %c0_i32_2 = arith.constant 0 : i32
    return %arg0, %c0_i32, %c0_i32_0, %c0_i32_1 : i32, i32, i32, i32
  }
  func.func @transform_1(%arg0: i32, %arg1: i32) -> (i32, i32, i32) {
    %c0_i32 = arith.constant 0 : i32
    %c0_i32_0 = arith.constant 0 : i32
    %c0_i32_1 = arith.constant 0 : i32
    %c0_i32_2 = arith.constant 0 : i32
    return %c0_i32, %c0_i32_0, %c0_i32_1 : i32, i32, i32
  }
  func.func @transform_2(%arg0: i32, %arg1: i32) -> (i32, i32) {
    %c0_i32 = arith.constant 0 : i32
    %c0_i32_0 = arith.constant 0 : i32
    %c0_i32_1 = arith.constant 0 : i32
    return %c0_i32, %c0_i32_0 : i32, i32
  }
  func.func @transform_3(%arg0: i32, %arg1: i32) -> (i32, i32, i32, i32) {
    %c0_i32 = arith.constant 0 : i32
    %c0_i32_0 = arith.constant 0 : i32
    %c0_i32_1 = arith.constant 0 : i32
    return %arg0, %arg1, %c0_i32, %c0_i32_0 : i32, i32, i32, i32
  }
}

</mosaic_0001>

<llo_original>
// kernel: grouped_conv2d.1
$region0: #{grouped_conv2d.1}
  #allocation0 [shape = 'u32[]', space=smem, size = 0x4, offset = 0x4, fixed_abs, tag = 'smem constant byte address 0x4 - core index']
  #allocation1 [shape = 'u32[144,128]{1,0:T(1,128)}', space=vmem, size = 0x12000, scoped, tag = 'internal scratch']
  #allocation2 [shape = 'bf16[18,32,192]{2,1,0:T(16,128)(2,1)}', space=vmem, size = 0x48000, scoped, tag = 'scratch operand']
  #allocation3 [shape = 'f32[512,128]{1,0:T(8,128)}', space=vmem, size = 0x40000, scoped, tag = 'scratch operand']
  %s0 = inlined_call_operand.vmem [shape: bf16[2,18,48,64], index: 0, kind: input, shape index: {}]
  %s1 = inlined_call_operand.vmem [shape: bf16[3,192,128], index: 1, kind: input, shape index: {}]
  %s2 = inlined_call_operand.vmem [shape: f32[1,128], index: 2, kind: input, shape index: {}]
  %s3 = inlined_call_operand.hbm [shape: bf16[2,16,16,128], index: 3, kind: output, shape index: {}]
  %s4 = sld [smem:[#allocation0]]
  $region45: #{grouped_conv2d.1} parent=0
    _
  %s6 = ssub.s32 1, %s4
  %s7 = scalar_select 0, %s6, %s4
  $region1: #{grouped_conv2d.1} parent=0
    #allocation4 [shape = 'u8[131072]{0}', space=vmem, size = 0x20000, scoped, tag = 'output window, operand 0']
    #allocation5 [shape = 's32[2]{0}', space=sflag, size = 0x8, scoped, tag = 'scoped memory for grouped_conv2d.1']
    %8 = vsyncpa [#allocation5], 0
    %s9 = scalar_lea.sflag [#allocation5], 1
    %10 = vsyncpa %s9, 0
    loop: start=0, step=1, limit=4
    $region2: #{grouped_conv2d.1} parent=1 // loop_pre_header
      _
    $region3: #{grouped_conv2d.1} parent=1 // loop_header
      %s12 = sphi 0, %s16
      %p13 = scmp.ge.s32.totalorder %s12, 4
      %s19 = sphi 0, %s31
      %s20 = sphi 0, %s27
      %s21 = sphi 0, %s19
      %s22 = sphi 0, %s20
      %s23 = sphi 0, %s21
      %s24 = sphi 0, %s22
      %s34 = sphi 0, %s36
      %s37 = sphi 0, %s34
      %s38 = sphi 0, %s37
      %s54 = sphi 0, %s38
      %s58 = sphi 0, %s58
      %s60 = sphi 0, %s58
      %s61 = sphi 0, %s60
      %s75 = sphi 0, %s61
      %s79 = sphi 0, %s79
      %s81 = sphi 0, %s79
      %s82 = sphi 0, %s81
      %s96 = sphi 0, %s82
      %s104 = sphi 0, %s106
      %s107 = sphi 0, %s104
      %s108 = sphi 0, %s107
      %s124 = sphi 0, %s108
    $region4: #{grouped_conv2d.1} parent=1 // loop_header_branch
      %15 = sbr.rel (%p13) target = $region8
    $region5: #{grouped_conv2d.1} parent=1 // loop_body
      %s17 = ssub.s32 %s12, 1
      %s18 = ssub.s32 %s12, 2
      %s25 = sadd.s32 1, %s20
      %p26 = scmp.ge.s32.totalorder %s25, 1
      %s27 = scalar_select %p26, 0, %s25
      %s28 = sadd.s32 1, %s19
      %s29 = scalar_select %p26, %s28, %s19
      %p30 = scmp.ge.s32.totalorder %s29, 2
      %s31 = scalar_select %p30, 0, %s29
      %s32 = ssub.s32 %s19, %s31
      %p33 = scmp.eq.s32.totalorder %s32, 0
      %s35 = sadd.s32 %s34, 1
      %s36 = scalar_select %p33, %s34, %s35
      %p39 = pneg %p33
      %p40 = scmp.eq.s32.totalorder %s12, 1
      %p41 = por %p39, %p40
      %p42 = scmp.ne.s32.totalorder %s34, %s37
      %p43 = scmp.eq.s32.totalorder %s12, 0
      %p44 = por %p42, %p43
      %p45 = scmp.ne.s32.totalorder %s34, %s37
      %p46 = scmp.eq.s32.totalorder %s17, 1
      %p47 = por %p45, %p46
      %p48 = scmp.ne.s32.totalorder %s37, %s38
      %p49 = scmp.eq.s32.totalorder %s17, 0
      %p50 = por %p48, %p49
      %p51 = scmp.ne.s32.totalorder %s37, %s38
      %p52 = scmp.eq.s32.totalorder %s18, 1
      %p53 = por %p51, %p52
      %p55 = scmp.ne.s32.totalorder %s38, %s54
      %p56 = scmp.eq.s32.totalorder %s18, 0
      %p57 = por %p55, %p56
      %s59 = sadd.s32 %s58, 1
      %p62 = scmp.eq.s32.totalorder %s12, 1
      %p63 = scmp.ne.s32.totalorder %s58, %s60
      %p64 = scmp.eq.s32.totalorder %s12, 0
      %p65 = por %p63, %p64
      %p66 = scmp.ne.s32.totalorder %s58, %s60
      %p67 = scmp.eq.s32.totalorder %s17, 1
      %p68 = por %p66, %p67
      %p69 = scmp.ne.s32.totalorder %s60, %s61
      %p70 = scmp.eq.s32.totalorder %s17, 0
      %p71 = por %p69, %p70
      %p72 = scmp.ne.s32.totalorder %s60, %s61
      %p73 = scmp.eq.s32.totalorder %s18, 1
      %p74 = por %p72, %p73
      %p76 = scmp.ne.s32.totalorder %s61, %s75
      %p77 = scmp.eq.s32.totalorder %s18, 0
      %p78 = por %p76, %p77
      %s80 = sadd.s32 %s79, 1
      %p83 = scmp.eq.s32.totalorder %s12, 1
      %p84 = scmp.ne.s32.totalorder %s79, %s81
      %p85 = scmp.eq.s32.totalorder %s12, 0
      %p86 = por %p84, %p85
      %p87 = scmp.ne.s32.totalorder %s79, %s81
      %p88 = scmp.eq.s32.totalorder %s17, 1
      %p89 = por %p87, %p88
      %p90 = scmp.ne.s32.totalorder %s81, %s82
      %p91 = scmp.eq.s32.totalorder %s17, 0
      %p92 = por %p90, %p91
      %p93 = scmp.ne.s32.totalorder %s81, %s82
      %p94 = scmp.eq.s32.totalorder %s18, 1
      %p95 = por %p93, %p94
      %p97 = scmp.ne.s32.totalorder %s82, %s96
      %p98 = scmp.eq.s32.totalorder %s18, 0
      %p99 = por %p97, %p98
      %s100 = ssub.s32 %s19, %s31
      %s101 = ssub.s32 %s20, %s27
      %s102 = sor.u32 %s100, %s101
      %p103 = scmp.eq.s32.totalorder %s102, 0
      %s105 = sadd.s32 %s104, 1
      %s106 = scalar_select %p103, %s104, %s105
      %p109 = pneg %p103
      %p110 = scmp.eq.s32.totalorder %s12, 1
      %p111 = por %p109, %p110
      %p112 = scmp.ne.s32.totalorder %s104, %s107
      %p113 = scmp.eq.s32.totalorder %s12, 0
      %p114 = por %p112, %p113
      %p115 = scmp.ne.s32.totalorder %s104, %s107
      %p116 = scmp.eq.s32.totalorder %s17, 1
      %p117 = por %p115, %p116
      %p118 = scmp.ne.s32.totalorder %s107, %s108
      %p119 = scmp.eq.s32.totalorder %s17, 0
      %p120 = por %p118, %p119
      %p121 = scmp.ne.s32.totalorder %s107, %s108
      %p122 = scmp.eq.s32.totalorder %s18, 1
      %p123 = por %p121, %p122
      %p125 = scmp.ne.s32.totalorder %s108, %s124
      %p126 = scmp.eq.s32.totalorder %s18, 0
      %p127 = por %p125, %p126
      %p128 = scmp.le.s32.totalorder 1, %s12
      %p129 = scmp.lt.s32.totalorder %s12, 3
      %p130 = pnand %p128, %p129
      %p131 = pneg %p130
      // Predicated region
      $region9: #{grouped_conv2d.1} parent=5 // pred_check
        _
      $region10: #{grouped_conv2d.1} parent=5 // pred_check_branch
        %133 = sbr.rel (%p130) target = $region12
      $region11: #{grouped_conv2d.1} parent=5 // pred_region
        %s134 = ssub.s32 %s12, 1
        // Predicated region
        $region13: #{grouped_conv2d.1} parent=11 // pred_check
          %p135 = pneg %p71
        $region14: #{grouped_conv2d.1} parent=11 // pred_check_branch
          %137 = sbr.rel (%p135) target = $region16
        $region15: #{grouped_conv2d.1} parent=11 // pred_region
          _
        $region16: #{grouped_conv2d.1} parent=11 // pred_fallthru
          _
        // Predicated region
        $region17: #{grouped_conv2d.1} parent=11 // pred_check
          %p138 = pneg %p92
        $region18: #{grouped_conv2d.1} parent=11 // pred_check_branch
          %140 = sbr.rel (%p138) target = $region20
        $region19: #{grouped_conv2d.1} parent=11 // pred_region
          _
        $region20: #{grouped_conv2d.1} parent=11 // pred_fallthru
          _
      $region12: #{grouped_conv2d.1} parent=5 // pred_fallthru
        _
      %p141 = scmp.lt.s32.totalorder %s12, 2
      // Predicated region
      $region21: #{grouped_conv2d.1} parent=5 // pred_check
        %p142 = pneg %p141
      $region22: #{grouped_conv2d.1} parent=5 // pred_check_branch
        %144 = sbr.rel (%p142) target = $region24
      $region23: #{grouped_conv2d.1} parent=5 // pred_region
        // Predicated region
        $region25: #{grouped_conv2d.1} parent=23 // pred_check
          %p145 = pneg %p44
        $region26: #{grouped_conv2d.1} parent=23 // pred_check_branch
          %147 = sbr.rel (%p145) target = $region28
        $region27: #{grouped_conv2d.1} parent=23 // pred_region
          %p148 = scmp.lt.s32.totalorder %s19, 1
          %s149 = scalar_select %p148, %s19, 1
          %s150 = smul.addr %s149, 108
          %s151 = smul.addr %s150, 4
          %s152 = scalar_lea.vmem %s0, %s151
        $region28: #{grouped_conv2d.1} parent=23 // pred_fallthru
          _
      $region24: #{grouped_conv2d.1} parent=5 // pred_fallthru
        _
      %p153 = scmp.le.s32.totalorder 1, %s12
      %p154 = scmp.lt.s32.totalorder %s12, 3
      %p155 = pnand %p153, %p154
      %p156 = pneg %p155
      // Predicated region
      $region29: #{grouped_conv2d.1} parent=5 // pred_check
        _
      $region30: #{grouped_conv2d.1} parent=5 // pred_check_branch
        %158 = sbr.rel (%p155) target = $region32
      $region31: #{grouped_conv2d.1} parent=5 // pred_region
        %s159 = ssub.s32 %s12, 1
        %p160 = scmp.lt.s32.totalorder %s21, 1
        %s161 = scalar_select %p160, %s21, 1
        %s162 = smul.addr %s161, 108
        %s163 = smul.addr %s162, 4
        %s164 = scalar_lea.vmem %s0, %s163
        %p165 = pneg %p50
        %p166 = pneg %p47
        %p167 = pneg %p71
        %p168 = pneg %p68
        %p169 = pneg %p92
        %p170 = pneg %p89
        %p171 = pneg %p120
        %p172 = pneg %p117
        %s173 = sand.u32 %s107, 1
        %s174 = scalar_lea.sflag [#allocation5], %s173
        %s175 = sand.u32 %s107, 1
        %s176 = smul.addr %s175, 128
        %s177 = scalar_lea.vmem [#allocation4], %s176
        %p178 = scmp.lt.s32.totalorder %s21, 1
        %s179 = scalar_select %p178, %s21, 1
        %s180 = smul.addr %s179, 108
        %s181 = smul.addr %s180, 4
        %s182 = scalar_lea.vmem %s0, %s181
        %s183 = smul.u32 16, %s22
        %s185 = smul.u32 %s22, 16
        %s186 = smul.u32 %s185, 6
        %s187 = smul.addr %s186, 4
        %s188 = scalar_lea.vmem %s182, %s187
        %v189 = vld [vmem:[%s188] sm:$0xf]
        %v190 = vld [vmem:[%s188 + $0x4] sm:$0xf]
        %v191 = vld [vmem:[%s188 + $0x8] sm:$0xf]
        %v192 = vld [vmem:[%s188 + $0xc] sm:$0xf]
        %v193 = vld [vmem:[%s188 + $0x18] sm:$0xf]
        %v194 = vld [vmem:[%s188 + $0x1c] sm:$0xf]
        %v195 = vld [vmem:[%s188 + $0x20] sm:$0xf]
        %v196 = vld [vmem:[%s188 + $0x24] sm:$0xf]
        %v197 = vld [vmem:[%s188 + $0x30] sm:$0xf]
        %v198 = vld [vmem:[%s188 + $0x34] sm:$0xf]
        %v199 = vld [vmem:[%s188 + $0x38] sm:$0xf]
        %v200 = vld [vmem:[%s188 + $0x3c] sm:$0xf]
        %v201 = vld [vmem:[%s188 + $0x48] sm:$0xf]
        %v202 = vld [vmem:[%s188 + $0x4c] sm:$0xf]
        %v203 = vld [vmem:[%s188 + $0x50] sm:$0xf]
        %v204 = vld [vmem:[%s188 + $0x54] sm:$0xf]
        %v205 = vld [vmem:[%s188 + $0x60] sm:$0xf]
        %v206 = vld [vmem:[%s188 + $0x64] sm:$0xf]
        %v207 = vld [vmem:[%s188 + $0x68] sm:$0xf]
        %v208 = vld [vmem:[%s188 + $0x6c] sm:$0xf]
        %v209 = vld [vmem:[%s188 + $0x78] sm:$0xf]
        %v210 = vld [vmem:[%s188 + $0x7c] sm:$0xf]
        %v211 = vld [vmem:[%s188 + $0x80] sm:$0xf]
        %v212 = vld [vmem:[%s188 + $0x84] sm:$0xf]
        %v213 = vld [vmem:[%s188 + $0x90] sm:$0xf]
        %v214 = vld [vmem:[%s188 + $0x94] sm:$0xf]
        %v215 = vld [vmem:[%s188 + $0x98] sm:$0xf]
        %v216 = vld [vmem:[%s188 + $0x9c] sm:$0xf]
        %v217 = vld [vmem:[%s188 + $0xa8] sm:$0xf]
        %v218 = vld [vmem:[%s188 + $0xac] sm:$0xf]
        %v219 = vld [vmem:[%s188 + $0xb0] sm:$0xf]
        %v220 = vld [vmem:[%s188 + $0xb4] sm:$0xf]
        %v221 = vld [vmem:[%s188 + $0xc0] sm:$0xf]
        %v222 = vld [vmem:[%s188 + $0xc4] sm:$0xf]
        %v223 = vld [vmem:[%s188 + $0xc8] sm:$0xf]
        %v224 = vld [vmem:[%s188 + $0xcc] sm:$0xf]
        %v225 = vld [vmem:[%s188 + $0xd8] sm:$0xf]
        %v226 = vld [vmem:[%s188 + $0xdc] sm:$0xf]
        %v227 = vld [vmem:[%s188 + $0xe0] sm:$0xf]
        %v228 = vld [vmem:[%s188 + $0xe4] sm:$0xf]
        %v229 = vld [vmem:[%s188 + $0xf0] sm:$0xf]
        %v230 = vld [vmem:[%s188 + $0xf4] sm:$0xf]
        %v231 = vld [vmem:[%s188 + $0xf8] sm:$0xf]
        %v232 = vld [vmem:[%s188 + $0xfc] sm:$0xf]
        %v233 = vld [vmem:[%s188 + $0x108] sm:$0xf]
        %v234 = vld [vmem:[%s188 + $0x10c] sm:$0xf]
        %v235 = vld [vmem:[%s188 + $0x110] sm:$0xf]
        %v236 = vld [vmem:[%s188 + $0x114] sm:$0xf]
        %v237 = vld [vmem:[%s188 + $0x120] sm:$0xf]
        %v238 = vld [vmem:[%s188 + $0x124] sm:$0xf]
        %v239 = vld [vmem:[%s188 + $0x128] sm:$0xf]
        %v240 = vld [vmem:[%s188 + $0x12c] sm:$0xf]
        %v241 = vld [vmem:[%s188 + $0x138] sm:$0xf]
        %v242 = vld [vmem:[%s188 + $0x13c] sm:$0xf]
        %v243 = vld [vmem:[%s188 + $0x140] sm:$0xf]
        %v244 = vld [vmem:[%s188 + $0x144] sm:$0xf]
        %v245 = vld [vmem:[%s188 + $0x150] sm:$0xf]
        %v246 = vld [vmem:[%s188 + $0x154] sm:$0xf]
        %v247 = vld [vmem:[%s188 + $0x158] sm:$0xf]
        %v248 = vld [vmem:[%s188 + $0x15c] sm:$0xf]
        %v249 = vld [vmem:[%s188 + $0x168] sm:$0xf]
        %v250 = vld [vmem:[%s188 + $0x16c] sm:$0xf]
        %v251 = vld [vmem:[%s188 + $0x170] sm:$0xf]
        %v252 = vld [vmem:[%s188 + $0x174] sm:$0xf]
        %v253 = vld [vmem:[%s188 + $0x180] sm:$0xf]
        %v254 = vld [vmem:[%s188 + $0x184] sm:$0xf]
        %v255 = vld [vmem:[%s188 + $0x188] sm:$0xf]
        %v256 = vld [vmem:[%s188 + $0x18c] sm:$0xf]
        %v257 = vld [vmem:[%s188 + $0x198] sm:$0xf]
        %v258 = vld [vmem:[%s188 + $0x19c] sm:$0xf]
        %v259 = vld [vmem:[%s188 + $0x1a0] sm:$0xf]
        %v260 = vld [vmem:[%s188 + $0x1a4] sm:$0xf]
        %v333 = vunpack.c.l.b16 %v189
        %v334 = vunpack.c.l.b16 %v190
        %v335 = vunpack.c.l.b16 %v191
        %v336 = vunpack.c.l.b16 %v192
        %v337 = vunpack.c.l.b16 %v193
        %v338 = vunpack.c.l.b16 %v194
        %v339 = vunpack.c.l.b16 %v195
        %v340 = vunpack.c.l.b16 %v196
        %v341 = vunpack.c.l.b16 %v197
        %v342 = vunpack.c.l.b16 %v198
        %v343 = vunpack.c.l.b16 %v199
        %v344 = vunpack.c.l.b16 %v200
        %v345 = vunpack.c.l.b16 %v201
        %v346 = vunpack.c.l.b16 %v202
        %v347 = vunpack.c.l.b16 %v203
        %v348 = vunpack.c.l.b16 %v204
        %v349 = vunpack.c.l.b16 %v205
        %v350 = vunpack.c.l.b16 %v206
        %v351 = vunpack.c.l.b16 %v207
        %v352 = vunpack.c.l.b16 %v208
        %v353 = vunpack.c.l.b16 %v209
        %v354 = vunpack.c.l.b16 %v210
        %v355 = vunpack.c.l.b16 %v211
        %v356 = vunpack.c.l.b16 %v212
        %v357 = vunpack.c.l.b16 %v213
        %v358 = vunpack.c.l.b16 %v214
        %v359 = vunpack.c.l.b16 %v215
        %v360 = vunpack.c.l.b16 %v216
        %v361 = vunpack.c.l.b16 %v217
        %v362 = vunpack.c.l.b16 %v218
        %v363 = vunpack.c.l.b16 %v219
        %v364 = vunpack.c.l.b16 %v220
        %v365 = vunpack.c.l.b16 %v221
        %v366 = vunpack.c.l.b16 %v222
        %v367 = vunpack.c.l.b16 %v223
        %v368 = vunpack.c.l.b16 %v224
        %v369 = vunpack.c.l.b16 %v225
        %v370 = vunpack.c.l.b16 %v226
        %v371 = vunpack.c.l.b16 %v227
        %v372 = vunpack.c.l.b16 %v228
        %v373 = vunpack.c.l.b16 %v229
        %v374 = vunpack.c.l.b16 %v230
        %v375 = vunpack.c.l.b16 %v231
        %v376 = vunpack.c.l.b16 %v232
        %v377 = vunpack.c.l.b16 %v233
        %v378 = vunpack.c.l.b16 %v234
        %v379 = vunpack.c.l.b16 %v235
        %v380 = vunpack.c.l.b16 %v236
        %v381 = vunpack.c.l.b16 %v237
        %v382 = vunpack.c.l.b16 %v238
        %v383 = vunpack.c.l.b16 %v239
        %v384 = vunpack.c.l.b16 %v240
        %v385 = vunpack.c.l.b16 %v241
        %v386 = vunpack.c.l.b16 %v242
        %v387 = vunpack.c.l.b16 %v243
        %v388 = vunpack.c.l.b16 %v244
        %v389 = vunpack.c.l.b16 %v245
        %v390 = vunpack.c.l.b16 %v246
        %v391 = vunpack.c.l.b16 %v247
        %v392 = vunpack.c.l.b16 %v248
        %v393 = vunpack.c.l.b16 %v249
        %v394 = vunpack.c.l.b16 %v250
        %v395 = vunpack.c.l.b16 %v251
        %v396 = vunpack.c.l.b16 %v252
        %v397 = vunpack.c.l.b16 %v253
        %v398 = vunpack.c.l.b16 %v254
        %v399 = vunpack.c.l.b16 %v255
        %v400 = vunpack.c.l.b16 %v256
        %v401 = vunpack.c.l.b16 %v257
        %v402 = vunpack.c.l.b16 %v258
        %v403 = vunpack.c.l.b16 %v259
        %v404 = vunpack.c.l.b16 %v260
        %v405 = vpack.c.b16 %v334, %v333
        %v406 = vpack.c.b16 %v336, %v335
        %v407 = vpack.c.b16 %v338, %v337
        %v408 = vpack.c.b16 %v340, %v339
        %v409 = vpack.c.b16 %v342, %v341
        %v410 = vpack.c.b16 %v344, %v343
        %v411 = vpack.c.b16 %v346, %v345
        %v412 = vpack.c.b16 %v348, %v347
        %v413 = vpack.c.b16 %v350, %v349
        %v414 = vpack.c.b16 %v352, %v351
        %v415 = vpack.c.b16 %v354, %v353
        %v416 = vpack.c.b16 %v356, %v355
        %v417 = vpack.c.b16 %v358, %v357
        %v418 = vpack.c.b16 %v360, %v359
        %v419 = vpack.c.b16 %v362, %v361
        %v420 = vpack.c.b16 %v364, %v363
        %v421 = vpack.c.b16 %v366, %v365
        %v422 = vpack.c.b16 %v368, %v367
        %v423 = vpack.c.b16 %v370, %v369
        %v424 = vpack.c.b16 %v372, %v371
        %v425 = vpack.c.b16 %v374, %v373
        %v426 = vpack.c.b16 %v376, %v375
        %v427 = vpack.c.b16 %v378, %v377
        %v428 = vpack.c.b16 %v380, %v379
        %v429 = vpack.c.b16 %v382, %v381
        %v430 = vpack.c.b16 %v384, %v383
        %v431 = vpack.c.b16 %v386, %v385
        %v432 = vpack.c.b16 %v388, %v387
        %v433 = vpack.c.b16 %v390, %v389
        %v434 = vpack.c.b16 %v392, %v391
        %v435 = vpack.c.b16 %v394, %v393
        %v436 = vpack.c.b16 %v396, %v395
        %v437 = vpack.c.b16 %v398, %v397
        %v438 = vpack.c.b16 %v400, %v399
        %v439 = vpack.c.b16 %v402, %v401
        %v440 = vpack.c.b16 %v404, %v403
        %vm477 = vcmask 523264
        %478 = vst.msk [vmem:[#allocation2] sm:$0xff] %vm477, %v405
        %479 = vst.msk [vmem:[#allocation2 + $0x10] sm:$0xff] %vm477, %v406
        %480 = vst.msk [vmem:[#allocation2 + $0x20] sm:$0xff] %vm477, %v407
        %481 = vst.msk [vmem:[#allocation2 + $0x30] sm:$0xff] %vm477, %v408
        %482 = vst.msk [vmem:[#allocation2 + $0x40] sm:$0xff] %vm477, %v409
        %483 = vst.msk [vmem:[#allocation2 + $0x50] sm:$0xff] %vm477, %v410
        %484 = vst.msk [vmem:[#allocation2 + $0x60] sm:$0xff] %vm477, %v411
        %485 = vst.msk [vmem:[#allocation2 + $0x70] sm:$0xff] %vm477, %v412
        %486 = vst.msk [vmem:[#allocation2 + $0x80] sm:$0xff] %vm477, %v413
        %487 = vst.msk [vmem:[#allocation2 + $0x90] sm:$0xff] %vm477, %v414
        %488 = vst.msk [vmem:[#allocation2 + $0xa0] sm:$0xff] %vm477, %v415
        %489 = vst.msk [vmem:[#allocation2 + $0xb0] sm:$0xff] %vm477, %v416
        %490 = vst.msk [vmem:[#allocation2 + $0xc0] sm:$0xff] %vm477, %v417
        %491 = vst.msk [vmem:[#allocation2 + $0xd0] sm:$0xff] %vm477, %v418
        %492 = vst.msk [vmem:[#allocation2 + $0xe0] sm:$0xff] %vm477, %v419
        %493 = vst.msk [vmem:[#allocation2 + $0xf0] sm:$0xff] %vm477, %v420
        %494 = vst.msk [vmem:[#allocation2 + $0x100] sm:$0xff] %vm477, %v421
        %495 = vst.msk [vmem:[#allocation2 + $0x110] sm:$0xff] %vm477, %v422
        %496 = vst.msk [vmem:[#allocation2 + $0x120] sm:$0xff] %vm477, %v423
        %497 = vst.msk [vmem:[#allocation2 + $0x130] sm:$0xff] %vm477, %v424
        %498 = vst.msk [vmem:[#allocation2 + $0x140] sm:$0xff] %vm477, %v425
        %499 = vst.msk [vmem:[#allocation2 + $0x150] sm:$0xff] %vm477, %v426
        %500 = vst.msk [vmem:[#allocation2 + $0x160] sm:$0xff] %vm477, %v427
        %501 = vst.msk [vmem:[#allocation2 + $0x170] sm:$0xff] %vm477, %v428
        %502 = vst.msk [vmem:[#allocation2 + $0x180] sm:$0xff] %vm477, %v429
        %503 = vst.msk [vmem:[#allocation2 + $0x190] sm:$0xff] %vm477, %v430
        %504 = vst.msk [vmem:[#allocation2 + $0x1a0] sm:$0xff] %vm477, %v431
        %505 = vst.msk [vmem:[#allocation2 + $0x1b0] sm:$0xff] %vm477, %v432
        %506 = vst.msk [vmem:[#allocation2 + $0x1c0] sm:$0xff] %vm477, %v433
        %507 = vst.msk [vmem:[#allocation2 + $0x1d0] sm:$0xff] %vm477, %v434
        %508 = vst.msk [vmem:[#allocation2 + $0x1e0] sm:$0xff] %vm477, %v435
        %509 = vst.msk [vmem:[#allocation2 + $0x1f0] sm:$0xff] %vm477, %v436
        %510 = vst.msk [vmem:[#allocation2 + $0x200] sm:$0xff] %vm477, %v437
        %511 = vst.msk [vmem:[#allocation2 + $0x210] sm:$0xff] %vm477, %v438
        %512 = vst.msk [vmem:[#allocation2 + $0x220] sm:$0xff] %vm477, %v439
        %513 = vst.msk [vmem:[#allocation2 + $0x230] sm:$0xff] %vm477, %v440
        %v514 = vld [vmem:[%s188] sm:$0xf]
        %v515 = vld [vmem:[%s188 + $0x4] sm:$0xf]
        %v516 = vld [vmem:[%s188 + $0x8] sm:$0xf]
        %v517 = vld [vmem:[%s188 + $0xc] sm:$0xf]
        %v518 = vld [vmem:[%s188 + $0x10] sm:$0x1]
        %v519 = vld [vmem:[%s188 + $0x18] sm:$0xf]
        %v520 = vld [vmem:[%s188 + $0x1c] sm:$0xf]
        %v521 = vld [vmem:[%s188 + $0x20] sm:$0xf]
        %v522 = vld [vmem:[%s188 + $0x24] sm:$0xf]
        %v523 = vld [vmem:[%s188 + $0x28] sm:$0x1]
        %v524 = vld [vmem:[%s188 + $0x30] sm:$0xf]
        %v525 = vld [vmem:[%s188 + $0x34] sm:$0xf]
        %v526 = vld [vmem:[%s188 + $0x38] sm:$0xf]
        %v527 = vld [vmem:[%s188 + $0x3c] sm:$0xf]
        %v528 = vld [vmem:[%s188 + $0x40] sm:$0x1]
        %v529 = vld [vmem:[%s188 + $0x48] sm:$0xf]
        %v530 = vld [vmem:[%s188 + $0x4c] sm:$0xf]
        %v531 = vld [vmem:[%s188 + $0x50] sm:$0xf]
        %v532 = vld [vmem:[%s188 + $0x54] sm:$0xf]
        %v533 = vld [vmem:[%s188 + $0x58] sm:$0x1]
        %v534 = vld [vmem:[%s188 + $0x60] sm:$0xf]
        %v535 = vld [vmem:[%s188 + $0x64] sm:$0xf]
        %v536 = vld [vmem:[%s188 + $0x68] sm:$0xf]
        %v537 = vld [vmem:[%s188 + $0x6c] sm:$0xf]
        %v538 = vld [vmem:[%s188 + $0x70] sm:$0x1]
        %v539 = vld [vmem:[%s188 + $0x78] sm:$0xf]
        %v540 = vld [vmem:[%s188 + $0x7c] sm:$0xf]
        %v541 = vld [vmem:[%s188 + $0x80] sm:$0xf]
        %v542 = vld [vmem:[%s188 + $0x84] sm:$0xf]
        %v543 = vld [vmem:[%s188 + $0x88] sm:$0x1]
        %v544 = vld [vmem:[%s188 + $0x90] sm:$0xf]
        %v545 = vld [vmem:[%s188 + $0x94] sm:$0xf]
        %v546 = vld [vmem:[%s188 + $0x98] sm:$0xf]
        %v547 = vld [vmem:[%s188 + $0x9c] sm:$0xf]
        %v548 = vld [vmem:[%s188 + $0xa0] sm:$0x1]
        %v549 = vld [vmem:[%s188 + $0xa8] sm:$0xf]
        %v550 = vld [vmem:[%s188 + $0xac] sm:$0xf]
        %v551 = vld [vmem:[%s188 + $0xb0] sm:$0xf]
        %v552 = vld [vmem:[%s188 + $0xb4] sm:$0xf]
        %v553 = vld [vmem:[%s188 + $0xb8] sm:$0x1]
        %v554 = vld [vmem:[%s188 + $0xc0] sm:$0xf]
        %v555 = vld [vmem:[%s188 + $0xc4] sm:$0xf]
        %v556 = vld [vmem:[%s188 + $0xc8] sm:$0xf]
        %v557 = vld [vmem:[%s188 + $0xcc] sm:$0xf]
        %v558 = vld [vmem:[%s188 + $0xd0] sm:$0x1]
        %v559 = vld [vmem:[%s188 + $0xd8] sm:$0xf]
        %v560 = vld [vmem:[%s188 + $0xdc] sm:$0xf]
        %v561 = vld [vmem:[%s188 + $0xe0] sm:$0xf]
        %v562 = vld [vmem:[%s188 + $0xe4] sm:$0xf]
        %v563 = vld [vmem:[%s188 + $0xe8] sm:$0x1]
        %v564 = vld [vmem:[%s188 + $0xf0] sm:$0xf]
        %v565 = vld [vmem:[%s188 + $0xf4] sm:$0xf]
        %v566 = vld [vmem:[%s188 + $0xf8] sm:$0xf]
        %v567 = vld [vmem:[%s188 + $0xfc] sm:$0xf]
        %v568 = vld [vmem:[%s188 + $0x100] sm:$0x1]
        %v569 = vld [vmem:[%s188 + $0x108] sm:$0xf]
        %v570 = vld [vmem:[%s188 + $0x10c] sm:$0xf]
        %v571 = vld [vmem:[%s188 + $0x110] sm:$0xf]
        %v572 = vld [vmem:[%s188 + $0x114] sm:$0xf]
        %v573 = vld [vmem:[%s188 + $0x118] sm:$0x1]
        %v574 = vld [vmem:[%s188 + $0x120] sm:$0xf]
        %v575 = vld [vmem:[%s188 + $0x124] sm:$0xf]
        %v576 = vld [vmem:[%s188 + $0x128] sm:$0xf]
        %v577 = vld [vmem:[%s188 + $0x12c] sm:$0xf]
        %v578 = vld [vmem:[%s188 + $0x130] sm:$0x1]
        %v579 = vld [vmem:[%s188 + $0x138] sm:$0xf]
        %v580 = vld [vmem:[%s188 + $0x13c] sm:$0xf]
        %v581 = vld [vmem:[%s188 + $0x140] sm:$0xf]
        %v582 = vld [vmem:[%s188 + $0x144] sm:$0xf]
        %v583 = vld [vmem:[%s188 + $0x148] sm:$0x1]
        %v584 = vld [vmem:[%s188 + $0x150] sm:$0xf]
        %v585 = vld [vmem:[%s188 + $0x154] sm:$0xf]
        %v586 = vld [vmem:[%s188 + $0x158] sm:$0xf]
        %v587 = vld [vmem:[%s188 + $0x15c] sm:$0xf]
        %v588 = vld [vmem:[%s188 + $0x160] sm:$0x1]
        %v589 = vld [vmem:[%s188 + $0x168] sm:$0xf]
        %v590 = vld [vmem:[%s188 + $0x16c] sm:$0xf]
        %v591 = vld [vmem:[%s188 + $0x170] sm:$0xf]
        %v592 = vld [vmem:[%s188 + $0x174] sm:$0xf]
        %v593 = vld [vmem:[%s188 + $0x178] sm:$0x1]
        %v594 = vld [vmem:[%s188 + $0x180] sm:$0xf]
        %v595 = vld [vmem:[%s188 + $0x184] sm:$0xf]
        %v596 = vld [vmem:[%s188 + $0x188] sm:$0xf]
        %v597 = vld [vmem:[%s188 + $0x18c] sm:$0xf]
        %v598 = vld [vmem:[%s188 + $0x190] sm:$0x1]
        %v599 = vld [vmem:[%s188 + $0x198] sm:$0xf]
        %v600 = vld [vmem:[%s188 + $0x19c] sm:$0xf]
        %v601 = vld [vmem:[%s188 + $0x1a0] sm:$0xf]
        %v602 = vld [vmem:[%s188 + $0x1a4] sm:$0xf]
        %v603 = vld [vmem:[%s188 + $0x1a8] sm:$0x1]
        %v694 = vunpack.c.l.b16 %v514
        %v695 = vunpack.c.l.b16 %v515
        %v696 = vunpack.c.l.b16 %v516
        %v697 = vunpack.c.l.b16 %v517
        %v698 = vunpack.c.l.b16 %v518
        %v699 = vunpack.c.l.b16 %v519
        %v700 = vunpack.c.l.b16 %v520
        %v701 = vunpack.c.l.b16 %v521
        %v702 = vunpack.c.l.b16 %v522
        %v703 = vunpack.c.l.b16 %v523
        %v704 = vunpack.c.l.b16 %v524
        %v705 = vunpack.c.l.b16 %v525
        %v706 = vunpack.c.l.b16 %v526
        %v707 = vunpack.c.l.b16 %v527
        %v708 = vunpack.c.l.b16 %v528
        %v709 = vunpack.c.l.b16 %v529
        %v710 = vunpack.c.l.b16 %v530
        %v711 = vunpack.c.l.b16 %v531
        %v712 = vunpack.c.l.b16 %v532
        %v713 = vunpack.c.l.b16 %v533
        %v714 = vunpack.c.l.b16 %v534
        %v715 = vunpack.c.l.b16 %v535
        %v716 = vunpack.c.l.b16 %v536
        %v717 = vunpack.c.l.b16 %v537
        %v718 = vunpack.c.l.b16 %v538
        %v719 = vunpack.c.l.b16 %v539
        %v720 = vunpack.c.l.b16 %v540
        %v721 = vunpack.c.l.b16 %v541
        %v722 = vunpack.c.l.b16 %v542
        %v723 = vunpack.c.l.b16 %v543
        %v724 = vunpack.c.l.b16 %v544
        %v725 = vunpack.c.l.b16 %v545
        %v726 = vunpack.c.l.b16 %v546
        %v727 = vunpack.c.l.b16 %v547
        %v728 = vunpack.c.l.b16 %v548
        %v729 = vunpack.c.l.b16 %v549
        %v730 = vunpack.c.l.b16 %v550
        %v731 = vunpack.c.l.b16 %v551
        %v732 = vunpack.c.l.b16 %v552
        %v733 = vunpack.c.l.b16 %v553
        %v734 = vunpack.c.l.b16 %v554
        %v735 = vunpack.c.l.b16 %v555
        %v736 = vunpack.c.l.b16 %v556
        %v737 = vunpack.c.l.b16 %v557
        %v738 = vunpack.c.l.b16 %v558
        %v739 = vunpack.c.l.b16 %v559
        %v740 = vunpack.c.l.b16 %v560
        %v741 = vunpack.c.l.b16 %v561
        %v742 = vunpack.c.l.b16 %v562
        %v743 = vunpack.c.l.b16 %v563
        %v744 = vunpack.c.l.b16 %v564
        %v745 = vunpack.c.l.b16 %v565
        %v746 = vunpack.c.l.b16 %v566
        %v747 = vunpack.c.l.b16 %v567
        %v748 = vunpack.c.l.b16 %v568
        %v749 = vunpack.c.l.b16 %v569
        %v750 = vunpack.c.l.b16 %v570
        %v751 = vunpack.c.l.b16 %v571
        %v752 = vunpack.c.l.b16 %v572
        %v753 = vunpack.c.l.b16 %v573
        %v754 = vunpack.c.l.b16 %v574
        %v755 = vunpack.c.l.b16 %v575
        %v756 = vunpack.c.l.b16 %v576
        %v757 = vunpack.c.l.b16 %v577
        %v758 = vunpack.c.l.b16 %v578
        %v759 = vunpack.c.l.b16 %v579
        %v760 = vunpack.c.l.b16 %v580
        %v761 = vunpack.c.l.b16 %v581
        %v762 = vunpack.c.l.b16 %v582
        %v763 = vunpack.c.l.b16 %v583
        %v764 = vunpack.c.l.b16 %v584
        %v765 = vunpack.c.l.b16 %v585
        %v766 = vunpack.c.l.b16 %v586
        %v767 = vunpack.c.l.b16 %v587
        %v768 = vunpack.c.l.b16 %v588
        %v769 = vunpack.c.l.b16 %v589
        %v770 = vunpack.c.l.b16 %v590
        %v771 = vunpack.c.l.b16 %v591
        %v772 = vunpack.c.l.b16 %v592
        %v773 = vunpack.c.l.b16 %v593
        %v774 = vunpack.c.l.b16 %v594
        %v775 = vunpack.c.l.b16 %v595
        %v776 = vunpack.c.l.b16 %v596
        %v777 = vunpack.c.l.b16 %v597
        %v778 = vunpack.c.l.b16 %v598
        %v779 = vunpack.c.l.b16 %v599
        %v780 = vunpack.c.l.b16 %v600
        %v781 = vunpack.c.l.b16 %v601
        %v782 = vunpack.c.l.b16 %v602
        %v783 = vunpack.c.l.b16 %v603
        %v784 = vpack.c.b16 %v695, %v694
        %v785 = vpack.c.b16 %v697, %v696
        %v786 = vpack.c.b16 %v698, %v698
        %v787 = vpack.c.b16 %v700, %v699
        %v788 = vpack.c.b16 %v702, %v701
        %v789 = vpack.c.b16 %v703, %v703
        %v790 = vpack.c.b16 %v705, %v704
        %v791 = vpack.c.b16 %v707, %v706
        %v792 = vpack.c.b16 %v708, %v708
        %v793 = vpack.c.b16 %v710, %v709
        %v794 = vpack.c.b16 %v712, %v711
        %v795 = vpack.c.b16 %v713, %v713
        %v796 = vpack.c.b16 %v715, %v714
        %v797 = vpack.c.b16 %v717, %v716
        %v798 = vpack.c.b16 %v718, %v718
        %v799 = vpack.c.b16 %v720, %v719
        %v800 = vpack.c.b16 %v722, %v721
        %v801 = vpack.c.b16 %v723, %v723
        %v802 = vpack.c.b16 %v725, %v724
        %v803 = vpack.c.b16 %v727, %v726
        %v804 = vpack.c.b16 %v728, %v728
        %v805 = vpack.c.b16 %v730, %v729
        %v806 = vpack.c.b16 %v732, %v731
        %v807 = vpack.c.b16 %v733, %v733
        %v808 = vpack.c.b16 %v735, %v734
        %v809 = vpack.c.b16 %v737, %v736
        %v810 = vpack.c.b16 %v738, %v738
        %v811 = vpack.c.b16 %v740, %v739
        %v812 = vpack.c.b16 %v742, %v741
        %v813 = vpack.c.b16 %v743, %v743
        %v814 = vpack.c.b16 %v745, %v744
        %v815 = vpack.c.b16 %v747, %v746
        %v816 = vpack.c.b16 %v748, %v748
        %v817 = vpack.c.b16 %v750, %v749
        %v818 = vpack.c.b16 %v752, %v751
        %v819 = vpack.c.b16 %v753, %v753
        %v820 = vpack.c.b16 %v755, %v754
        %v821 = vpack.c.b16 %v757, %v756
        %v822 = vpack.c.b16 %v758, %v758
        %v823 = vpack.c.b16 %v760, %v759
        %v824 = vpack.c.b16 %v762, %v761
        %v825 = vpack.c.b16 %v763, %v763
        %v826 = vpack.c.b16 %v765, %v764
        %v827 = vpack.c.b16 %v767, %v766
        %v828 = vpack.c.b16 %v768, %v768
        %v829 = vpack.c.b16 %v770, %v769
        %v830 = vpack.c.b16 %v772, %v771
        %v831 = vpack.c.b16 %v773, %v773
        %v832 = vpack.c.b16 %v775, %v774
        %v833 = vpack.c.b16 %v777, %v776
        %v834 = vpack.c.b16 %v778, %v778
        %v835 = vpack.c.b16 %v780, %v779
        %v836 = vpack.c.b16 %v782, %v781
        %v837 = vpack.c.b16 %v783, %v783
        %vm838 = vsmask.f32 7424
        %v840 = vshrl.u32 %v784, 16
        %v842 = vshll.u32 %v784, 16
        %v844 = vrot.slane %v842, 1
        %v845 = vor.u32 %v840, %v844
        %v847 = vshll.u32 %v785, 16
        %v849 = vrot.slane %v847, 1
        %v850 = vsel %vm838, %v845, %v849
        %v851 = vshrl.u32 %v785, 16
        %v853 = vor.u32 %v851, %v849
        %v855 = vshll.u32 %v786, 16
        %v857 = vrot.slane %v855, 1
        %v858 = vsel %vm838, %v853, %v857
        %v860 = vshrl.u32 %v787, 16
        %v862 = vshll.u32 %v787, 16
        %v864 = vrot.slane %v862, 1
        %v865 = vor.u32 %v860, %v864
        %v867 = vshll.u32 %v788, 16
        %v869 = vrot.slane %v867, 1
        %v870 = vsel %vm838, %v865, %v869
        %v871 = vshrl.u32 %v788, 16
        %v873 = vor.u32 %v871, %v869
        %v875 = vshll.u32 %v789, 16
        %v877 = vrot.slane %v875, 1
        %v878 = vsel %vm838, %v873, %v877
        %v880 = vshrl.u32 %v790, 16
        %v882 = vshll.u32 %v790, 16
        %v884 = vrot.slane %v882, 1
        %v885 = vor.u32 %v880, %v884
        %v887 = vshll.u32 %v791, 16
        %v889 = vrot.slane %v887, 1
        %v890 = vsel %vm838, %v885, %v889
        %v891 = vshrl.u32 %v791, 16
        %v893 = vor.u32 %v891, %v889
        %v895 = vshll.u32 %v792, 16
        %v897 = vrot.slane %v895, 1
        %v898 = vsel %vm838, %v893, %v897
        %v900 = vshrl.u32 %v793, 16
        %v902 = vshll.u32 %v793, 16
        %v904 = vrot.slane %v902, 1
        %v905 = vor.u32 %v900, %v904
        %v907 = vshll.u32 %v794, 16
        %v909 = vrot.slane %v907, 1
        %v910 = vsel %vm838, %v905, %v909
        %v911 = vshrl.u32 %v794, 16
        %v913 = vor.u32 %v911, %v909
        %v915 = vshll.u32 %v795, 16
        %v917 = vrot.slane %v915, 1
        %v918 = vsel %vm838, %v913, %v917
        %v920 = vshrl.u32 %v796, 16
        %v922 = vshll.u32 %v796, 16
        %v924 = vrot.slane %v922, 1
        %v925 = vor.u32 %v920, %v924
        %v927 = vshll.u32 %v797, 16
        %v929 = vrot.slane %v927, 1
        %v930 = vsel %vm838, %v925, %v929
        %v931 = vshrl.u32 %v797, 16
        %v933 = vor.u32 %v931, %v929
        %v935 = vshll.u32 %v798, 16
        %v937 = vrot.slane %v935, 1
        %v938 = vsel %vm838, %v933, %v937
        %v940 = vshrl.u32 %v799, 16
        %v942 = vshll.u32 %v799, 16
        %v944 = vrot.slane %v942, 1
        %v945 = vor.u32 %v940, %v944
        %v947 = vshll.u32 %v800, 16
        %v949 = vrot.slane %v947, 1
        %v950 = vsel %vm838, %v945, %v949
        %v951 = vshrl.u32 %v800, 16
        %v953 = vor.u32 %v951, %v949
        %v955 = vshll.u32 %v801, 16
        %v957 = vrot.slane %v955, 1
        %v958 = vsel %vm838, %v953, %v957
        %v960 = vshrl.u32 %v802, 16
        %v962 = vshll.u32 %v802, 16
        %v964 = vrot.slane %v962, 1
        %v965 = vor.u32 %v960, %v964
        %v967 = vshll.u32 %v803, 16
        %v969 = vrot.slane %v967, 1
        %v970 = vsel %vm838, %v965, %v969
        %v971 = vshrl.u32 %v803, 16
        %v973 = vor.u32 %v971, %v969
        %v975 = vshll.u32 %v804, 16
        %v977 = vrot.slane %v975, 1
        %v978 = vsel %vm838, %v973, %v977
        %v980 = vshrl.u32 %v805, 16
        %v982 = vshll.u32 %v805, 16
        %v984 = vrot.slane %v982, 1
        %v985 = vor.u32 %v980, %v984
        %v987 = vshll.u32 %v806, 16
        %v989 = vrot.slane %v987, 1
        %v990 = vsel %vm838, %v985, %v989
        %v991 = vshrl.u32 %v806, 16
        %v993 = vor.u32 %v991, %v989
        %v995 = vshll.u32 %v807, 16
        %v997 = vrot.slane %v995, 1
        %v998 = vsel %vm838, %v993, %v997
        %v1000 = vshrl.u32 %v808, 16
        %v1002 = vshll.u32 %v808, 16
        %v1004 = vrot.slane %v1002, 1
        %v1005 = vor.u32 %v1000, %v1004
        %v1007 = vshll.u32 %v809, 16
        %v1009 = vrot.slane %v1007, 1
        %v1010 = vsel %vm838, %v1005, %v1009
        %v1011 = vshrl.u32 %v809, 16
        %v1013 = vor.u32 %v1011, %v1009
        %v1015 = vshll.u32 %v810, 16
        %v1017 = vrot.slane %v1015, 1
        %v1018 = vsel %vm838, %v1013, %v1017
        %v1020 = vshrl.u32 %v811, 16
        %v1022 = vshll.u32 %v811, 16
        %v1024 = vrot.slane %v1022, 1
        %v1025 = vor.u32 %v1020, %v1024
        %v1027 = vshll.u32 %v812, 16
        %v1029 = vrot.slane %v1027, 1
        %v1030 = vsel %vm838, %v1025, %v1029
        %v1031 = vshrl.u32 %v812, 16
        %v1033 = vor.u32 %v1031, %v1029
        %v1035 = vshll.u32 %v813, 16
        %v1037 = vrot.slane %v1035, 1
        %v1038 = vsel %vm838, %v1033, %v1037
        %v1040 = vshrl.u32 %v814, 16
        %v1042 = vshll.u32 %v814, 16
        %v1044 = vrot.slane %v1042, 1
        %v1045 = vor.u32 %v1040, %v1044
        %v1047 = vshll.u32 %v815, 16
        %v1049 = vrot.slane %v1047, 1
        %v1050 = vsel %vm838, %v1045, %v1049
        %v1051 = vshrl.u32 %v815, 16
        %v1053 = vor.u32 %v1051, %v1049
        %v1055 = vshll.u32 %v816, 16
        %v1057 = vrot.slane %v1055, 1
        %v1058 = vsel %vm838, %v1053, %v1057
        %v1060 = vshrl.u32 %v817, 16
        %v1062 = vshll.u32 %v817, 16
        %v1064 = vrot.slane %v1062, 1
        %v1065 = vor.u32 %v1060, %v1064
        %v1067 = vshll.u32 %v818, 16
        %v1069 = vrot.slane %v1067, 1
        %v1070 = vsel %vm838, %v1065, %v1069
        %v1071 = vshrl.u32 %v818, 16
        %v1073 = vor.u32 %v1071, %v1069
        %v1075 = vshll.u32 %v819, 16
        %v1077 = vrot.slane %v1075, 1
        %v1078 = vsel %vm838, %v1073, %v1077
        %v1080 = vshrl.u32 %v820, 16
        %v1082 = vshll.u32 %v820, 16
        %v1084 = vrot.slane %v1082, 1
        %v1085 = vor.u32 %v1080, %v1084
        %v1087 = vshll.u32 %v821, 16
        %v1089 = vrot.slane %v1087, 1
        %v1090 = vsel %vm838, %v1085, %v1089
        %v1091 = vshrl.u32 %v821, 16
        %v1093 = vor.u32 %v1091, %v1089
        %v1095 = vshll.u32 %v822, 16
        %v1097 = vrot.slane %v1095, 1
        %v1098 = vsel %vm838, %v1093, %v1097
        %v1100 = vshrl.u32 %v823, 16
        %v1102 = vshll.u32 %v823, 16
        %v1104 = vrot.slane %v1102, 1
        %v1105 = vor.u32 %v1100, %v1104
        %v1107 = vshll.u32 %v824, 16
        %v1109 = vrot.slane %v1107, 1
        %v1110 = vsel %vm838, %v1105, %v1109
        %v1111 = vshrl.u32 %v824, 16
        %v1113 = vor.u32 %v1111, %v1109
        %v1115 = vshll.u32 %v825, 16
        %v1117 = vrot.slane %v1115, 1
        %v1118 = vsel %vm838, %v1113, %v1117
        %v1120 = vshrl.u32 %v826, 16
        %v1122 = vshll.u32 %v826, 16
        %v1124 = vrot.slane %v1122, 1
        %v1125 = vor.u32 %v1120, %v1124
        %v1127 = vshll.u32 %v827, 16
        %v1129 = vrot.slane %v1127, 1
        %v1130 = vsel %vm838, %v1125, %v1129
        %v1131 = vshrl.u32 %v827, 16
        %v1133 = vor.u32 %v1131, %v1129
        %v1135 = vshll.u32 %v828, 16
        %v1137 = vrot.slane %v1135, 1
        %v1138 = vsel %vm838, %v1133, %v1137
        %v1140 = vshrl.u32 %v829, 16
        %v1142 = vshll.u32 %v829, 16
        %v1144 = vrot.slane %v1142, 1
        %v1145 = vor.u32 %v1140, %v1144
        %v1147 = vshll.u32 %v830, 16
        %v1149 = vrot.slane %v1147, 1
        %v1150 = vsel %vm838, %v1145, %v1149
        %v1151 = vshrl.u32 %v830, 16
        %v1153 = vor.u32 %v1151, %v1149
        %v1155 = vshll.u32 %v831, 16
        %v1157 = vrot.slane %v1155, 1
        %v1158 = vsel %vm838, %v1153, %v1157
        %v1160 = vshrl.u32 %v832, 16
        %v1162 = vshll.u32 %v832, 16
        %v1164 = vrot.slane %v1162, 1
        %v1165 = vor.u32 %v1160, %v1164
        %v1167 = vshll.u32 %v833, 16
        %v1169 = vrot.slane %v1167, 1
        %v1170 = vsel %vm838, %v1165, %v1169
        %v1171 = vshrl.u32 %v833, 16
        %v1173 = vor.u32 %v1171, %v1169
        %v1175 = vshll.u32 %v834, 16
        %v1177 = vrot.slane %v1175, 1
        %v1178 = vsel %vm838, %v1173, %v1177
        %v1180 = vshrl.u32 %v835, 16
        %v1182 = vshll.u32 %v835, 16
        %v1184 = vrot.slane %v1182, 1
        %v1185 = vor.u32 %v1180, %v1184
        %v1187 = vshll.u32 %v836, 16
        %v1189 = vrot.slane %v1187, 1
        %v1190 = vsel %vm838, %v1185, %v1189
        %v1191 = vshrl.u32 %v836, 16
        %v1193 = vor.u32 %v1191, %v1189
        %v1195 = vshll.u32 %v837, 16
        %v1197 = vrot.slane %v1195, 1
        %v1198 = vsel %vm838, %v1193, %v1197
        %1199 = vrot.lane.b32.xlu0 %v850, 64
        %v1200 = vpop.permute.xlu0 %1199
        %1201 = vrot.lane.b32.xlu0 %v858, 64
        %v1202 = vpop.permute.xlu0 %1201
        %1203 = vrot.lane.b32.xlu0 %v870, 64
        %v1204 = vpop.permute.xlu0 %1203
        %1205 = vrot.lane.b32.xlu0 %v878, 64
        %v1206 = vpop.permute.xlu0 %1205
        %1207 = vrot.lane.b32.xlu0 %v890, 64
        %v1208 = vpop.permute.xlu0 %1207
        %1209 = vrot.lane.b32.xlu0 %v898, 64
        %v1210 = vpop.permute.xlu0 %1209
        %1211 = vrot.lane.b32.xlu0 %v910, 64
        %v1212 = vpop.permute.xlu0 %1211
        %1213 = vrot.lane.b32.xlu0 %v918, 64
        %v1214 = vpop.permute.xlu0 %1213
        %1215 = vrot.lane.b32.xlu0 %v930, 64
        %v1216 = vpop.permute.xlu0 %1215
        %1217 = vrot.lane.b32.xlu0 %v938, 64
        %v1218 = vpop.permute.xlu0 %1217
        %1219 = vrot.lane.b32.xlu0 %v950, 64
        %v1220 = vpop.permute.xlu0 %1219
        %1221 = vrot.lane.b32.xlu0 %v958, 64
        %v1222 = vpop.permute.xlu0 %1221
        %1223 = vrot.lane.b32.xlu0 %v970, 64
        %v1224 = vpop.permute.xlu0 %1223
        %1225 = vrot.lane.b32.xlu0 %v978, 64
        %v1226 = vpop.permute.xlu0 %1225
        %1227 = vrot.lane.b32.xlu0 %v990, 64
        %v1228 = vpop.permute.xlu0 %1227
        %1229 = vrot.lane.b32.xlu0 %v998, 64
        %v1230 = vpop.permute.xlu0 %1229
        %1231 = vrot.lane.b32.xlu0 %v1010, 64
        %v1232 = vpop.permute.xlu0 %1231
        %1233 = vrot.lane.b32.xlu0 %v1018, 64
        %v1234 = vpop.permute.xlu0 %1233
        %1235 = vrot.lane.b32.xlu0 %v1030, 64
        %v1236 = vpop.permute.xlu0 %1235
        %1237 = vrot.lane.b32.xlu0 %v1038, 64
        %v1238 = vpop.permute.xlu0 %1237
        %1239 = vrot.lane.b32.xlu0 %v1050, 64
        %v1240 = vpop.permute.xlu0 %1239
        %1241 = vrot.lane.b32.xlu0 %v1058, 64
        %v1242 = vpop.permute.xlu0 %1241
        %1243 = vrot.lane.b32.xlu0 %v1070, 64
        %v1244 = vpop.permute.xlu0 %1243
        %1245 = vrot.lane.b32.xlu0 %v1078, 64
        %v1246 = vpop.permute.xlu0 %1245
        %1247 = vrot.lane.b32.xlu0 %v1090, 64
        %v1248 = vpop.permute.xlu0 %1247
        %1249 = vrot.lane.b32.xlu0 %v1098, 64
        %v1250 = vpop.permute.xlu0 %1249
        %1251 = vrot.lane.b32.xlu0 %v1110, 64
        %v1252 = vpop.permute.xlu0 %1251
        %1253 = vrot.lane.b32.xlu0 %v1118, 64
        %v1254 = vpop.permute.xlu0 %1253
        %1255 = vrot.lane.b32.xlu0 %v1130, 64
        %v1256 = vpop.permute.xlu0 %1255
        %1257 = vrot.lane.b32.xlu0 %v1138, 64
        %v1258 = vpop.permute.xlu0 %1257
        %1259 = vrot.lane.b32.xlu0 %v1150, 64
        %v1260 = vpop.permute.xlu0 %1259
        %1261 = vrot.lane.b32.xlu0 %v1158, 64
        %v1262 = vpop.permute.xlu0 %1261
        %1263 = vrot.lane.b32.xlu0 %v1170, 64
        %v1264 = vpop.permute.xlu0 %1263
        %1265 = vrot.lane.b32.xlu0 %v1178, 64
        %v1266 = vpop.permute.xlu0 %1265
        %1267 = vrot.lane.b32.xlu0 %v1190, 64
        %v1268 = vpop.permute.xlu0 %1267
        %1269 = vrot.lane.b32.xlu0 %v1198, 64
        %v1270 = vpop.permute.xlu0 %1269
        %vm1307 = vcmask 1048064
        %1308 = vst.msk [vmem:[#allocation2] sm:$0xff] %vm1307, %v1200
        %1309 = vst.msk [vmem:[#allocation2 + $0x10] sm:$0xff] %vm1307, %v1202
        %1310 = vst.msk [vmem:[#allocation2 + $0x20] sm:$0xff] %vm1307, %v1204
        %1311 = vst.msk [vmem:[#allocation2 + $0x30] sm:$0xff] %vm1307, %v1206
        %1312 = vst.msk [vmem:[#allocation2 + $0x40] sm:$0xff] %vm1307, %v1208
        %1313 = vst.msk [vmem:[#allocation2 + $0x50] sm:$0xff] %vm1307, %v1210
        %1314 = vst.msk [vmem:[#allocation2 + $0x60] sm:$0xff] %vm1307, %v1212
        %1315 = vst.msk [vmem:[#allocation2 + $0x70] sm:$0xff] %vm1307, %v1214
        %1316 = vst.msk [vmem:[#allocation2 + $0x80] sm:$0xff] %vm1307, %v1216
        %1317 = vst.msk [vmem:[#allocation2 + $0x90] sm:$0xff] %vm1307, %v1218
        %1318 = vst.msk [vmem:[#allocation2 + $0xa0] sm:$0xff] %vm1307, %v1220
        %1319 = vst.msk [vmem:[#allocation2 + $0xb0] sm:$0xff] %vm1307, %v1222
        %1320 = vst.msk [vmem:[#allocation2 + $0xc0] sm:$0xff] %vm1307, %v1224
        %1321 = vst.msk [vmem:[#allocation2 + $0xd0] sm:$0xff] %vm1307, %v1226
        %1322 = vst.msk [vmem:[#allocation2 + $0xe0] sm:$0xff] %vm1307, %v1228
        %1323 = vst.msk [vmem:[#allocation2 + $0xf0] sm:$0xff] %vm1307, %v1230
        %1324 = vst.msk [vmem:[#allocation2 + $0x100] sm:$0xff] %vm1307, %v1232
        %1325 = vst.msk [vmem:[#allocation2 + $0x110] sm:$0xff] %vm1307, %v1234
        %1326 = vst.msk [vmem:[#allocation2 + $0x120] sm:$0xff] %vm1307, %v1236
        %1327 = vst.msk [vmem:[#allocation2 + $0x130] sm:$0xff] %vm1307, %v1238
        %1328 = vst.msk [vmem:[#allocation2 + $0x140] sm:$0xff] %vm1307, %v1240
        %1329 = vst.msk [vmem:[#allocation2 + $0x150] sm:$0xff] %vm1307, %v1242
        %1330 = vst.msk [vmem:[#allocation2 + $0x160] sm:$0xff] %vm1307, %v1244
        %1331 = vst.msk [vmem:[#allocation2 + $0x170] sm:$0xff] %vm1307, %v1246
        %1332 = vst.msk [vmem:[#allocation2 + $0x180] sm:$0xff] %vm1307, %v1248
        %1333 = vst.msk [vmem:[#allocation2 + $0x190] sm:$0xff] %vm1307, %v1250
        %1334 = vst.msk [vmem:[#allocation2 + $0x1a0] sm:$0xff] %vm1307, %v1252
        %1335 = vst.msk [vmem:[#allocation2 + $0x1b0] sm:$0xff] %vm1307, %v1254
        %1336 = vst.msk [vmem:[#allocation2 + $0x1c0] sm:$0xff] %vm1307, %v1256
        %1337 = vst.msk [vmem:[#allocation2 + $0x1d0] sm:$0xff] %vm1307, %v1258
        %1338 = vst.msk [vmem:[#allocation2 + $0x1e0] sm:$0xff] %vm1307, %v1260
        %1339 = vst.msk [vmem:[#allocation2 + $0x1f0] sm:$0xff] %vm1307, %v1262
        %1340 = vst.msk [vmem:[#allocation2 + $0x200] sm:$0xff] %vm1307, %v1264
        %1341 = vst.msk [vmem:[#allocation2 + $0x210] sm:$0xff] %vm1307, %v1266
        %1342 = vst.msk [vmem:[#allocation2 + $0x220] sm:$0xff] %vm1307, %v1268
        %1343 = vst.msk [vmem:[#allocation2 + $0x230] sm:$0xff] %vm1307, %v1270
        %v1344 = vld [vmem:[%s188] sm:$0xe]
        %v1345 = vld [vmem:[%s188 + $0x4] sm:$0xf]
        %v1346 = vld [vmem:[%s188 + $0x8] sm:$0xf]
        %v1347 = vld [vmem:[%s188 + $0xc] sm:$0xf]
        %v1348 = vld [vmem:[%s188 + $0x10] sm:$0x1]
        %v1349 = vld [vmem:[%s188 + $0x18] sm:$0xe]
        %v1350 = vld [vmem:[%s188 + $0x1c] sm:$0xf]
        %v1351 = vld [vmem:[%s188 + $0x20] sm:$0xf]
        %v1352 = vld [vmem:[%s188 + $0x24] sm:$0xf]
        %v1353 = vld [vmem:[%s188 + $0x28] sm:$0x1]
        %v1354 = vld [vmem:[%s188 + $0x30] sm:$0xe]
        %v1355 = vld [vmem:[%s188 + $0x34] sm:$0xf]
        %v1356 = vld [vmem:[%s188 + $0x38] sm:$0xf]
        %v1357 = vld [vmem:[%s188 + $0x3c] sm:$0xf]
        %v1358 = vld [vmem:[%s188 + $0x40] sm:$0x1]
        %v1359 = vld [vmem:[%s188 + $0x48] sm:$0xe]
        %v1360 = vld [vmem:[%s188 + $0x4c] sm:$0xf]
        %v1361 = vld [vmem:[%s188 + $0x50] sm:$0xf]
        %v1362 = vld [vmem:[%s188 + $0x54] sm:$0xf]
        %v1363 = vld [vmem:[%s188 + $0x58] sm:$0x1]
        %v1364 = vld [vmem:[%s188 + $0x60] sm:$0xe]
        %v1365 = vld [vmem:[%s188 + $0x64] sm:$0xf]
        %v1366 = vld [vmem:[%s188 + $0x68] sm:$0xf]
        %v1367 = vld [vmem:[%s188 + $0x6c] sm:$0xf]
        %v1368 = vld [vmem:[%s188 + $0x70] sm:$0x1]
        %v1369 = vld [vmem:[%s188 + $0x78] sm:$0xe]
        %v1370 = vld [vmem:[%s188 + $0x7c] sm:$0xf]
        %v1371 = vld [vmem:[%s188 + $0x80] sm:$0xf]
        %v1372 = vld [vmem:[%s188 + $0x84] sm:$0xf]
        %v1373 = vld [vmem:[%s188 + $0x88] sm:$0x1]
        %v1374 = vld [vmem:[%s188 + $0x90] sm:$0xe]
        %v1375 = vld [vmem:[%s188 + $0x94] sm:$0xf]
        %v1376 = vld [vmem:[%s188 + $0x98] sm:$0xf]
        %v1377 = vld [vmem:[%s188 + $0x9c] sm:$0xf]
        %v1378 = vld [vmem:[%s188 + $0xa0] sm:$0x1]
        %v1379 = vld [vmem:[%s188 + $0xa8] sm:$0xe]
        %v1380 = vld [vmem:[%s188 + $0xac] sm:$0xf]
        %v1381 = vld [vmem:[%s188 + $0xb0] sm:$0xf]
        %v1382 = vld [vmem:[%s188 + $0xb4] sm:$0xf]
        %v1383 = vld [vmem:[%s188 + $0xb8] sm:$0x1]
        %v1384 = vld [vmem:[%s188 + $0xc0] sm:$0xe]
        %v1385 = vld [vmem:[%s188 + $0xc4] sm:$0xf]
        %v1386 = vld [vmem:[%s188 + $0xc8] sm:$0xf]
        %v1387 = vld [vmem:[%s188 + $0xcc] sm:$0xf]
        %v1388 = vld [vmem:[%s188 + $0xd0] sm:$0x1]
        %v1389 = vld [vmem:[%s188 + $0xd8] sm:$0xe]
        %v1390 = vld [vmem:[%s188 + $0xdc] sm:$0xf]
        %v1391 = vld [vmem:[%s188 + $0xe0] sm:$0xf]
        %v1392 = vld [vmem:[%s188 + $0xe4] sm:$0xf]
        %v1393 = vld [vmem:[%s188 + $0xe8] sm:$0x1]
        %v1394 = vld [vmem:[%s188 + $0xf0] sm:$0xe]
        %v1395 = vld [vmem:[%s188 + $0xf4] sm:$0xf]
        %v1396 = vld [vmem:[%s188 + $0xf8] sm:$0xf]
        %v1397 = vld [vmem:[%s188 + $0xfc] sm:$0xf]
        %v1398 = vld [vmem:[%s188 + $0x100] sm:$0x1]
        %v1399 = vld [vmem:[%s188 + $0x108] sm:$0xe]
        %v1400 = vld [vmem:[%s188 + $0x10c] sm:$0xf]
        %v1401 = vld [vmem:[%s188 + $0x110] sm:$0xf]
        %v1402 = vld [vmem:[%s188 + $0x114] sm:$0xf]
        %v1403 = vld [vmem:[%s188 + $0x118] sm:$0x1]
        %v1404 = vld [vmem:[%s188 + $0x120] sm:$0xe]
        %v1405 = vld [vmem:[%s188 + $0x124] sm:$0xf]
        %v1406 = vld [vmem:[%s188 + $0x128] sm:$0xf]
        %v1407 = vld [vmem:[%s188 + $0x12c] sm:$0xf]
        %v1408 = vld [vmem:[%s188 + $0x130] sm:$0x1]
        %v1409 = vld [vmem:[%s188 + $0x138] sm:$0xe]
        %v1410 = vld [vmem:[%s188 + $0x13c] sm:$0xf]
        %v1411 = vld [vmem:[%s188 + $0x140] sm:$0xf]
        %v1412 = vld [vmem:[%s188 + $0x144] sm:$0xf]
        %v1413 = vld [vmem:[%s188 + $0x148] sm:$0x1]
        %v1414 = vld [vmem:[%s188 + $0x150] sm:$0xe]
        %v1415 = vld [vmem:[%s188 + $0x154] sm:$0xf]
        %v1416 = vld [vmem:[%s188 + $0x158] sm:$0xf]
        %v1417 = vld [vmem:[%s188 + $0x15c] sm:$0xf]
        %v1418 = vld [vmem:[%s188 + $0x160] sm:$0x1]
        %v1419 = vld [vmem:[%s188 + $0x168] sm:$0xe]
        %v1420 = vld [vmem:[%s188 + $0x16c] sm:$0xf]
        %v1421 = vld [vmem:[%s188 + $0x170] sm:$0xf]
        %v1422 = vld [vmem:[%s188 + $0x174] sm:$0xf]
        %v1423 = vld [vmem:[%s188 + $0x178] sm:$0x1]
        %v1424 = vld [vmem:[%s188 + $0x180] sm:$0xe]
        %v1425 = vld [vmem:[%s188 + $0x184] sm:$0xf]
        %v1426 = vld [vmem:[%s188 + $0x188] sm:$0xf]
        %v1427 = vld [vmem:[%s188 + $0x18c] sm:$0xf]
        %v1428 = vld [vmem:[%s188 + $0x190] sm:$0x1]
        %v1429 = vld [vmem:[%s188 + $0x198] sm:$0xe]
        %v1430 = vld [vmem:[%s188 + $0x19c] sm:$0xf]
        %v1431 = vld [vmem:[%s188 + $0x1a0] sm:$0xf]
        %v1432 = vld [vmem:[%s188 + $0x1a4] sm:$0xf]
        %v1433 = vld [vmem:[%s188 + $0x1a8] sm:$0x1]
        %v1524 = vunpack.c.l.b16 %v1344
        %v1525 = vunpack.c.l.b16 %v1345
        %v1526 = vunpack.c.l.b16 %v1346
        %v1527 = vunpack.c.l.b16 %v1347
        %v1528 = vunpack.c.l.b16 %v1348
        %v1529 = vunpack.c.l.b16 %v1349
        %v1530 = vunpack.c.l.b16 %v1350
        %v1531 = vunpack.c.l.b16 %v1351
        %v1532 = vunpack.c.l.b16 %v1352
        %v1533 = vunpack.c.l.b16 %v1353
        %v1534 = vunpack.c.l.b16 %v1354
        %v1535 = vunpack.c.l.b16 %v1355
        %v1536 = vunpack.c.l.b16 %v1356
        %v1537 = vunpack.c.l.b16 %v1357
        %v1538 = vunpack.c.l.b16 %v1358
        %v1539 = vunpack.c.l.b16 %v1359
        %v1540 = vunpack.c.l.b16 %v1360
        %v1541 = vunpack.c.l.b16 %v1361
        %v1542 = vunpack.c.l.b16 %v1362
        %v1543 = vunpack.c.l.b16 %v1363
        %v1544 = vunpack.c.l.b16 %v1364
        %v1545 = vunpack.c.l.b16 %v1365
        %v1546 = vunpack.c.l.b16 %v1366
        %v1547 = vunpack.c.l.b16 %v1367
        %v1548 = vunpack.c.l.b16 %v1368
        %v1549 = vunpack.c.l.b16 %v1369
        %v1550 = vunpack.c.l.b16 %v1370
        %v1551 = vunpack.c.l.b16 %v1371
        %v1552 = vunpack.c.l.b16 %v1372
        %v1553 = vunpack.c.l.b16 %v1373
        %v1554 = vunpack.c.l.b16 %v1374
        %v1555 = vunpack.c.l.b16 %v1375
        %v1556 = vunpack.c.l.b16 %v1376
        %v1557 = vunpack.c.l.b16 %v1377
        %v1558 = vunpack.c.l.b16 %v1378
        %v1559 = vunpack.c.l.b16 %v1379
        %v1560 = vunpack.c.l.b16 %v1380
        %v1561 = vunpack.c.l.b16 %v1381
        %v1562 = vunpack.c.l.b16 %v1382
        %v1563 = vunpack.c.l.b16 %v1383
        %v1564 = vunpack.c.l.b16 %v1384
        %v1565 = vunpack.c.l.b16 %v1385
        %v1566 = vunpack.c.l.b16 %v1386
        %v1567 = vunpack.c.l.b16 %v1387
        %v1568 = vunpack.c.l.b16 %v1388
        %v1569 = vunpack.c.l.b16 %v1389
        %v1570 = vunpack.c.l.b16 %v1390
        %v1571 = vunpack.c.l.b16 %v1391
        %v1572 = vunpack.c.l.b16 %v1392
        %v1573 = vunpack.c.l.b16 %v1393
        %v1574 = vunpack.c.l.b16 %v1394
        %v1575 = vunpack.c.l.b16 %v1395
        %v1576 = vunpack.c.l.b16 %v1396
        %v1577 = vunpack.c.l.b16 %v1397
        %v1578 = vunpack.c.l.b16 %v1398
        %v1579 = vunpack.c.l.b16 %v1399
        %v1580 = vunpack.c.l.b16 %v1400
        %v1581 = vunpack.c.l.b16 %v1401
        %v1582 = vunpack.c.l.b16 %v1402
        %v1583 = vunpack.c.l.b16 %v1403
        %v1584 = vunpack.c.l.b16 %v1404
        %v1585 = vunpack.c.l.b16 %v1405
        %v1586 = vunpack.c.l.b16 %v1406
        %v1587 = vunpack.c.l.b16 %v1407
        %v1588 = vunpack.c.l.b16 %v1408
        %v1589 = vunpack.c.l.b16 %v1409
        %v1590 = vunpack.c.l.b16 %v1410
        %v1591 = vunpack.c.l.b16 %v1411
        %v1592 = vunpack.c.l.b16 %v1412
        %v1593 = vunpack.c.l.b16 %v1413
        %v1594 = vunpack.c.l.b16 %v1414
        %v1595 = vunpack.c.l.b16 %v1415
        %v1596 = vunpack.c.l.b16 %v1416
        %v1597 = vunpack.c.l.b16 %v1417
        %v1598 = vunpack.c.l.b16 %v1418
        %v1599 = vunpack.c.l.b16 %v1419
        %v1600 = vunpack.c.l.b16 %v1420
        %v1601 = vunpack.c.l.b16 %v1421
        %v1602 = vunpack.c.l.b16 %v1422
        %v1603 = vunpack.c.l.b16 %v1423
        %v1604 = vunpack.c.l.b16 %v1424
        %v1605 = vunpack.c.l.b16 %v1425
        %v1606 = vunpack.c.l.b16 %v1426
        %v1607 = vunpack.c.l.b16 %v1427
        %v1608 = vunpack.c.l.b16 %v1428
        %v1609 = vunpack.c.l.b16 %v1429
        %v1610 = vunpack.c.l.b16 %v1430
        %v1611 = vunpack.c.l.b16 %v1431
        %v1612 = vunpack.c.l.b16 %v1432
        %v1613 = vunpack.c.l.b16 %v1433
        %v1614 = vpack.c.b16 %v1525, %v1524
        %v1615 = vpack.c.b16 %v1527, %v1526
        %v1616 = vpack.c.b16 %v1528, %v1528
        %v1617 = vpack.c.b16 %v1530, %v1529
        %v1618 = vpack.c.b16 %v1532, %v1531
        %v1619 = vpack.c.b16 %v1533, %v1533
        %v1620 = vpack.c.b16 %v1535, %v1534
        %v1621 = vpack.c.b16 %v1537, %v1536
        %v1622 = vpack.c.b16 %v1538, %v1538
        %v1623 = vpack.c.b16 %v1540, %v1539
        %v1624 = vpack.c.b16 %v1542, %v1541
        %v1625 = vpack.c.b16 %v1543, %v1543
        %v1626 = vpack.c.b16 %v1545, %v1544
        %v1627 = vpack.c.b16 %v1547, %v1546
        %v1628 = vpack.c.b16 %v1548, %v1548
        %v1629 = vpack.c.b16 %v1550, %v1549
        %v1630 = vpack.c.b16 %v1552, %v1551
        %v1631 = vpack.c.b16 %v1553, %v1553
        %v1632 = vpack.c.b16 %v1555, %v1554
        %v1633 = vpack.c.b16 %v1557, %v1556
        %v1634 = vpack.c.b16 %v1558, %v1558
        %v1635 = vpack.c.b16 %v1560, %v1559
        %v1636 = vpack.c.b16 %v1562, %v1561
        %v1637 = vpack.c.b16 %v1563, %v1563
        %v1638 = vpack.c.b16 %v1565, %v1564
        %v1639 = vpack.c.b16 %v1567, %v1566
        %v1640 = vpack.c.b16 %v1568, %v1568
        %v1641 = vpack.c.b16 %v1570, %v1569
        %v1642 = vpack.c.b16 %v1572, %v1571
        %v1643 = vpack.c.b16 %v1573, %v1573
        %v1644 = vpack.c.b16 %v1575, %v1574
        %v1645 = vpack.c.b16 %v1577, %v1576
        %v1646 = vpack.c.b16 %v1578, %v1578
        %v1647 = vpack.c.b16 %v1580, %v1579
        %v1648 = vpack.c.b16 %v1582, %v1581
        %v1649 = vpack.c.b16 %v1583, %v1583
        %v1650 = vpack.c.b16 %v1585, %v1584
        %v1651 = vpack.c.b16 %v1587, %v1586
        %v1652 = vpack.c.b16 %v1588, %v1588
        %v1653 = vpack.c.b16 %v1590, %v1589
        %v1654 = vpack.c.b16 %v1592, %v1591
        %v1655 = vpack.c.b16 %v1593, %v1593
        %v1656 = vpack.c.b16 %v1595, %v1594
        %v1657 = vpack.c.b16 %v1597, %v1596
        %v1658 = vpack.c.b16 %v1598, %v1598
        %v1659 = vpack.c.b16 %v1600, %v1599
        %v1660 = vpack.c.b16 %v1602, %v1601
        %v1661 = vpack.c.b16 %v1603, %v1603
        %v1662 = vpack.c.b16 %v1605, %v1604
        %v1663 = vpack.c.b16 %v1607, %v1606
        %v1664 = vpack.c.b16 %v1608, %v1608
        %v1665 = vpack.c.b16 %v1610, %v1609
        %v1666 = vpack.c.b16 %v1612, %v1611
        %v1667 = vpack.c.b16 %v1613, %v1613
        %vm1668 = vcmask 1046528
        %v1669 = vrot.slane %v1614, 1
        %v1670 = vrot.slane %v1615, 1
        %v1671 = vsel %vm1668, %v1669, %v1670
        %v1672 = vrot.slane %v1616, 1
        %v1673 = vsel %vm1668, %v1670, %v1672
        %v1674 = vrot.slane %v1617, 1
        %v1675 = vrot.slane %v1618, 1
        %v1676 = vsel %vm1668, %v1674, %v1675
        %v1677 = vrot.slane %v1619, 1
        %v1678 = vsel %vm1668, %v1675, %v1677
        %v1679 = vrot.slane %v1620, 1
        %v1680 = vrot.slane %v1621, 1
        %v1681 = vsel %vm1668, %v1679, %v1680
        %v1682 = vrot.slane %v1622, 1
        %v1683 = vsel %vm1668, %v1680, %v1682
        %v1684 = vrot.slane %v1623, 1
        %v1685 = vrot.slane %v1624, 1
        %v1686 = vsel %vm1668, %v1684, %v1685
        %v1687 = vrot.slane %v1625, 1
        %v1688 = vsel %vm1668, %v1685, %v1687
        %v1689 = vrot.slane %v1626, 1
        %v1690 = vrot.slane %v1627, 1
        %v1691 = vsel %vm1668, %v1689, %v1690
        %v1692 = vrot.slane %v1628, 1
        %v1693 = vsel %vm1668, %v1690, %v1692
        %v1694 = vrot.slane %v1629, 1
        %v1695 = vrot.slane %v1630, 1
        %v1696 = vsel %vm1668, %v1694, %v1695
        %v1697 = vrot.slane %v1631, 1
        %v1698 = vsel %vm1668, %v1695, %v1697
        %v1699 = vrot.slane %v1632, 1
        %v1700 = vrot.slane %v1633, 1
        %v1701 = vsel %vm1668, %v1699, %v1700
        %v1702 = vrot.slane %v1634, 1
        %v1703 = vsel %vm1668, %v1700, %v1702
        %v1704 = vrot.slane %v1635, 1
        %v1705 = vrot.slane %v1636, 1
        %v1706 = vsel %vm1668, %v1704, %v1705
        %v1707 = vrot.slane %v1637, 1
        %v1708 = vsel %vm1668, %v1705, %v1707
        %v1709 = vrot.slane %v1638, 1
        %v1710 = vrot.slane %v1639, 1
        %v1711 = vsel %vm1668, %v1709, %v1710
        %v1712 = vrot.slane %v1640, 1
        %v1713 = vsel %vm1668, %v1710, %v1712
        %v1714 = vrot.slane %v1641, 1
        %v1715 = vrot.slane %v1642, 1
        %v1716 = vsel %vm1668, %v1714, %v1715
        %v1717 = vrot.slane %v1643, 1
        %v1718 = vsel %vm1668, %v1715, %v1717
        %v1719 = vrot.slane %v1644, 1
        %v1720 = vrot.slane %v1645, 1
        %v1721 = vsel %vm1668, %v1719, %v1720
        %v1722 = vrot.slane %v1646, 1
        %v1723 = vsel %vm1668, %v1720, %v1722
        %v1724 = vrot.slane %v1647, 1
        %v1725 = vrot.slane %v1648, 1
        %v1726 = vsel %vm1668, %v1724, %v1725
        %v1727 = vrot.slane %v1649, 1
        %v1728 = vsel %vm1668, %v1725, %v1727
        %v1729 = vrot.slane %v1650, 1
        %v1730 = vrot.slane %v1651, 1
        %v1731 = vsel %vm1668, %v1729, %v1730
        %v1732 = vrot.slane %v1652, 1
        %v1733 = vsel %vm1668, %v1730, %v1732
        %v1734 = vrot.slane %v1653, 1
        %v1735 = vrot.slane %v1654, 1
        %v1736 = vsel %vm1668, %v1734, %v1735
        %v1737 = vrot.slane %v1655, 1
        %v1738 = vsel %vm1668, %v1735, %v1737
        %v1739 = vrot.slane %v1656, 1
        %v1740 = vrot.slane %v1657, 1
        %v1741 = vsel %vm1668, %v1739, %v1740
        %v1742 = vrot.slane %v1658, 1
        %v1743 = vsel %vm1668, %v1740, %v1742
        %v1744 = vrot.slane %v1659, 1
        %v1745 = vrot.slane %v1660, 1
        %v1746 = vsel %vm1668, %v1744, %v1745
        %v1747 = vrot.slane %v1661, 1
        %v1748 = vsel %vm1668, %v1745, %v1747
        %v1749 = vrot.slane %v1662, 1
        %v1750 = vrot.slane %v1663, 1
        %v1751 = vsel %vm1668, %v1749, %v1750
        %v1752 = vrot.slane %v1664, 1
        %v1753 = vsel %vm1668, %v1750, %v1752
        %v1754 = vrot.slane %v1665, 1
        %v1755 = vrot.slane %v1666, 1
        %v1756 = vsel %vm1668, %v1754, %v1755
        %v1757 = vrot.slane %v1667, 1
        %v1758 = vsel %vm1668, %v1755, %v1757
        %1795 = vst.msk [vmem:[#allocation2 + $0x8] sm:$0xff] %vm477, %v1671
        %1796 = vst.msk [vmem:[#allocation2 + $0x18] sm:$0xff] %vm477, %v1673
        %1797 = vst.msk [vmem:[#allocation2 + $0x28] sm:$0xff] %vm477, %v1676
        %1798 = vst.msk [vmem:[#allocation2 + $0x38] sm:$0xff] %vm477, %v1678
        %1799 = vst.msk [vmem:[#allocation2 + $0x48] sm:$0xff] %vm477, %v1681
        %1800 = vst.msk [vmem:[#allocation2 + $0x58] sm:$0xff] %vm477, %v1683
        %1801 = vst.msk [vmem:[#allocation2 + $0x68] sm:$0xff] %vm477, %v1686
        %1802 = vst.msk [vmem:[#allocation2 + $0x78] sm:$0xff] %vm477, %v1688
        %1803 = vst.msk [vmem:[#allocation2 + $0x88] sm:$0xff] %vm477, %v1691
        %1804 = vst.msk [vmem:[#allocation2 + $0x98] sm:$0xff] %vm477, %v1693
        %1805 = vst.msk [vmem:[#allocation2 + $0xa8] sm:$0xff] %vm477, %v1696
        %1806 = vst.msk [vmem:[#allocation2 + $0xb8] sm:$0xff] %vm477, %v1698
        %1807 = vst.msk [vmem:[#allocation2 + $0xc8] sm:$0xff] %vm477, %v1701
        %1808 = vst.msk [vmem:[#allocation2 + $0xd8] sm:$0xff] %vm477, %v1703
        %1809 = vst.msk [vmem:[#allocation2 + $0xe8] sm:$0xff] %vm477, %v1706
        %1810 = vst.msk [vmem:[#allocation2 + $0xf8] sm:$0xff] %vm477, %v1708
        %1811 = vst.msk [vmem:[#allocation2 + $0x108] sm:$0xff] %vm477, %v1711
        %1812 = vst.msk [vmem:[#allocation2 + $0x118] sm:$0xff] %vm477, %v1713
        %1813 = vst.msk [vmem:[#allocation2 + $0x128] sm:$0xff] %vm477, %v1716
        %1814 = vst.msk [vmem:[#allocation2 + $0x138] sm:$0xff] %vm477, %v1718
        %1815 = vst.msk [vmem:[#allocation2 + $0x148] sm:$0xff] %vm477, %v1721
        %1816 = vst.msk [vmem:[#allocation2 + $0x158] sm:$0xff] %vm477, %v1723
        %1817 = vst.msk [vmem:[#allocation2 + $0x168] sm:$0xff] %vm477, %v1726
        %1818 = vst.msk [vmem:[#allocation2 + $0x178] sm:$0xff] %vm477, %v1728
        %1819 = vst.msk [vmem:[#allocation2 + $0x188] sm:$0xff] %vm477, %v1731
        %1820 = vst.msk [vmem:[#allocation2 + $0x198] sm:$0xff] %vm477, %v1733
        %1821 = vst.msk [vmem:[#allocation2 + $0x1a8] sm:$0xff] %vm477, %v1736
        %1822 = vst.msk [vmem:[#allocation2 + $0x1b8] sm:$0xff] %vm477, %v1738
        %1823 = vst.msk [vmem:[#allocation2 + $0x1c8] sm:$0xff] %vm477, %v1741
        %1824 = vst.msk [vmem:[#allocation2 + $0x1d8] sm:$0xff] %vm477, %v1743
        %1825 = vst.msk [vmem:[#allocation2 + $0x1e8] sm:$0xff] %vm477, %v1746
        %1826 = vst.msk [vmem:[#allocation2 + $0x1f8] sm:$0xff] %vm477, %v1748
        %1827 = vst.msk [vmem:[#allocation2 + $0x208] sm:$0xff] %vm477, %v1751
        %1828 = vst.msk [vmem:[#allocation2 + $0x218] sm:$0xff] %vm477, %v1753
        %1829 = vst.msk [vmem:[#allocation2 + $0x228] sm:$0xff] %vm477, %v1756
        %1830 = vst.msk [vmem:[#allocation2 + $0x238] sm:$0xff] %vm477, %v1758
        %v1831 = vld [vmem:[#allocation2] sm:$0xff]
        %v1832 = vld [vmem:[#allocation2 + $0x8] sm:$0xff]
        %v1833 = vld [vmem:[#allocation2 + $0x10] sm:$0xff]
        %v1834 = vld [vmem:[#allocation2 + $0x18] sm:$0xff]
        %v1835 = vld [vmem:[#allocation2 + $0x20] sm:$0xff]
        %v1836 = vld [vmem:[#allocation2 + $0x28] sm:$0xff]
        %v1837 = vld [vmem:[#allocation2 + $0x30] sm:$0xff]
        %v1838 = vld [vmem:[#allocation2 + $0x38] sm:$0xff]
        %v1839 = vld [vmem:[#allocation2 + $0x40] sm:$0xff]
        %v1840 = vld [vmem:[#allocation2 + $0x48] sm:$0xff]
        %v1841 = vld [vmem:[#allocation2 + $0x50] sm:$0xff]
        %v1842 = vld [vmem:[#allocation2 + $0x58] sm:$0xff]
        %v1843 = vld [vmem:[#allocation2 + $0x60] sm:$0xff]
        %v1844 = vld [vmem:[#allocation2 + $0x68] sm:$0xff]
        %v1845 = vld [vmem:[#allocation2 + $0x70] sm:$0xff]
        %v1846 = vld [vmem:[#allocation2 + $0x78] sm:$0xff]
        %v1847 = vld [vmem:[#allocation2 + $0x80] sm:$0xff]
        %v1848 = vld [vmem:[#allocation2 + $0x88] sm:$0xff]
        %v1849 = vld [vmem:[#allocation2 + $0x90] sm:$0xff]
        %v1850 = vld [vmem:[#allocation2 + $0x98] sm:$0xff]
        %v1851 = vld [vmem:[#allocation2 + $0xa0] sm:$0xff]
        %v1852 = vld [vmem:[#allocation2 + $0xa8] sm:$0xff]
        %v1853 = vld [vmem:[#allocation2 + $0xb0] sm:$0xff]
        %v1854 = vld [vmem:[#allocation2 + $0xb8] sm:$0xff]
        %v1855 = vld [vmem:[#allocation2 + $0xc0] sm:$0xff]
        %v1856 = vld [vmem:[#allocation2 + $0xc8] sm:$0xff]
        %v1857 = vld [vmem:[#allocation2 + $0xd0] sm:$0xff]
        %v1858 = vld [vmem:[#allocation2 + $0xd8] sm:$0xff]
        %v1859 = vld [vmem:[#allocation2 + $0xe0] sm:$0xff]
        %v1860 = vld [vmem:[#allocation2 + $0xe8] sm:$0xff]
        %v1861 = vld [vmem:[#allocation2 + $0xf0] sm:$0xff]
        %v1862 = vld [vmem:[#allocation2 + $0xf8] sm:$0xff]
        %v1863 = vld [vmem:[#allocation2 + $0x100] sm:$0xff]
        %v1864 = vld [vmem:[#allocation2 + $0x108] sm:$0xff]
        %v1865 = vld [vmem:[#allocation2 + $0x110] sm:$0xff]
        %v1866 = vld [vmem:[#allocation2 + $0x118] sm:$0xff]
        %v1867 = vld [vmem:[#allocation2 + $0x120] sm:$0xff]
        %v1868 = vld [vmem:[#allocation2 + $0x128] sm:$0xff]
        %v1869 = vld [vmem:[#allocation2 + $0x130] sm:$0xff]
        %v1870 = vld [vmem:[#allocation2 + $0x138] sm:$0xff]
        %v1871 = vld [vmem:[#allocation2 + $0x140] sm:$0xff]
        %v1872 = vld [vmem:[#allocation2 + $0x148] sm:$0xff]
        %v1873 = vld [vmem:[#allocation2 + $0x150] sm:$0xff]
        %v1874 = vld [vmem:[#allocation2 + $0x158] sm:$0xff]
        %v1875 = vld [vmem:[#allocation2 + $0x160] sm:$0xff]
        %v1876 = vld [vmem:[#allocation2 + $0x168] sm:$0xff]
        %v1877 = vld [vmem:[#allocation2 + $0x170] sm:$0xff]
        %v1878 = vld [vmem:[#allocation2 + $0x178] sm:$0xff]
        %v1879 = vld [vmem:[#allocation2 + $0x180] sm:$0xff]
        %v1880 = vld [vmem:[#allocation2 + $0x188] sm:$0xff]
        %v1881 = vld [vmem:[#allocation2 + $0x190] sm:$0xff]
        %v1882 = vld [vmem:[#allocation2 + $0x198] sm:$0xff]
        %v1883 = vld [vmem:[#allocation2 + $0x1a0] sm:$0xff]
        %v1884 = vld [vmem:[#allocation2 + $0x1a8] sm:$0xff]
        %v1885 = vld [vmem:[#allocation2 + $0x1b0] sm:$0xff]
        %v1886 = vld [vmem:[#allocation2 + $0x1b8] sm:$0xff]
        %v1887 = vld [vmem:[#allocation2 + $0x1c0] sm:$0xff]
        %v1888 = vld [vmem:[#allocation2 + $0x1c8] sm:$0xff]
        %v1889 = vld [vmem:[#allocation2 + $0x1d0] sm:$0xff]
        %v1890 = vld [vmem:[#allocation2 + $0x1d8] sm:$0xff]
        %v1891 = vld [vmem:[#allocation2 + $0x1e0] sm:$0xff]
        %v1892 = vld [vmem:[#allocation2 + $0x1e8] sm:$0xff]
        %v1893 = vld [vmem:[#allocation2 + $0x1f0] sm:$0xff]
        %v1894 = vld [vmem:[#allocation2 + $0x1f8] sm:$0xff]
        %v1895 = vld [vmem:[%s1] sm:$0xf]
        %v1896 = vld [vmem:[%s1 + $0x4] sm:$0xf]
        %v1897 = vld [vmem:[%s1 + $0x8] sm:$0xf]
        %v1898 = vld [vmem:[%s1 + $0xc] sm:$0xf]
        %v1899 = vld [vmem:[%s1 + $0x10] sm:$0xf]
        %v1900 = vld [vmem:[%s1 + $0x14] sm:$0xf]
        %v1901 = vld [vmem:[%s1 + $0x18] sm:$0xf]
        %v1902 = vld [vmem:[%s1 + $0x1c] sm:$0xf]
        %v1903 = vld [vmem:[%s1 + $0x20] sm:$0xf]
        %v1904 = vld [vmem:[%s1 + $0x24] sm:$0xf]
        %v1905 = vld [vmem:[%s1 + $0x28] sm:$0xf]
        %v1906 = vld [vmem:[%s1 + $0x2c] sm:$0xf]
        %v1907 = vld [vmem:[%s1 + $0x30] sm:$0xf]
        %v1908 = vld [vmem:[%s1 + $0x34] sm:$0xf]
        %v1909 = vld [vmem:[%s1 + $0x38] sm:$0xf]
        %v1910 = vld [vmem:[%s1 + $0x3c] sm:$0xf]
        %v1911 = vld [vmem:[%s1 + $0x40] sm:$0xf]
        %v1912 = vld [vmem:[%s1 + $0x44] sm:$0xf]
        %v1913 = vld [vmem:[%s1 + $0x48] sm:$0xf]
        %v1914 = vld [vmem:[%s1 + $0x4c] sm:$0xf]
        %v1915 = vld [vmem:[%s1 + $0x50] sm:$0xf]
        %v1916 = vld [vmem:[%s1 + $0x54] sm:$0xf]
        %v1917 = vld [vmem:[%s1 + $0x58] sm:$0xf]
        %v1918 = vld [vmem:[%s1 + $0x5c] sm:$0xf]
        %v1943 = vunpack.c.l.b16 %v1895
        %v1944 = vunpack.c.l.b16 %v1896
        %v1945 = vunpack.c.l.b16 %v1897
        %v1946 = vunpack.c.l.b16 %v1898
        %v1947 = vunpack.c.l.b16 %v1899
        %v1948 = vunpack.c.l.b16 %v1900
        %v1949 = vunpack.c.l.b16 %v1901
        %v1950 = vunpack.c.l.b16 %v1902
        %v1951 = vunpack.c.l.b16 %v1903
        %v1952 = vunpack.c.l.b16 %v1904
        %v1953 = vunpack.c.l.b16 %v1905
        %v1954 = vunpack.c.l.b16 %v1906
        %v1955 = vunpack.c.l.b16 %v1907
        %v1956 = vunpack.c.l.b16 %v1908
        %v1957 = vunpack.c.l.b16 %v1909
        %v1958 = vunpack.c.l.b16 %v1910
        %v1959 = vunpack.c.l.b16 %v1911
        %v1960 = vunpack.c.l.b16 %v1912
        %v1961 = vunpack.c.l.b16 %v1913
        %v1962 = vunpack.c.l.b16 %v1914
        %v1963 = vunpack.c.l.b16 %v1915
        %v1964 = vunpack.c.l.b16 %v1916
        %v1965 = vunpack.c.l.b16 %v1917
        %v1966 = vunpack.c.l.b16 %v1918
        %v1967 = vpack.c.b16 %v1944, %v1943
        %v1968 = vpack.c.b16 %v1946, %v1945
        %v1969 = vpack.c.b16 %v1948, %v1947
        %v1970 = vpack.c.b16 %v1950, %v1949
        %v1971 = vpack.c.b16 %v1952, %v1951
        %v1972 = vpack.c.b16 %v1954, %v1953
        %v1973 = vpack.c.b16 %v1956, %v1955
        %v1974 = vpack.c.b16 %v1958, %v1957
        %v1975 = vpack.c.b16 %v1960, %v1959
        %v1976 = vpack.c.b16 %v1962, %v1961
        %v1977 = vpack.c.b16 %v1964, %v1963
        %v1978 = vpack.c.b16 %v1966, %v1965
        %v1992 = vsel %vm477, %v1832, 0
        %v1995 = vsel %vm477, %v1834, 0
        %v1998 = vsel %vm477, %v1836, 0
        %v2001 = vsel %vm477, %v1838, 0
        %v2004 = vsel %vm477, %v1840, 0
        %v2007 = vsel %vm477, %v1842, 0
        %v2010 = vsel %vm477, %v1844, 0
        %v2013 = vsel %vm477, %v1846, 0
        %v2016 = vsel %vm477, %v1848, 0
        %v2019 = vsel %vm477, %v1850, 0
        %v2022 = vsel %vm477, %v1852, 0
        %v2025 = vsel %vm477, %v1854, 0
        %v2028 = vsel %vm477, %v1856, 0
        %v2031 = vsel %vm477, %v1858, 0
        %v2034 = vsel %vm477, %v1860, 0
        %v2037 = vsel %vm477, %v1862, 0
        %v2040 = vsel %vm477, %v1864, 0
        %v2043 = vsel %vm477, %v1866, 0
        %v2046 = vsel %vm477, %v1868, 0
        %v2049 = vsel %vm477, %v1870, 0
        %v2052 = vsel %vm477, %v1872, 0
        %v2055 = vsel %vm477, %v1874, 0
        %v2058 = vsel %vm477, %v1876, 0
        %v2061 = vsel %vm477, %v1878, 0
        %v2064 = vsel %vm477, %v1880, 0
        %v2067 = vsel %vm477, %v1882, 0
        %v2070 = vsel %vm477, %v1884, 0
        %v2073 = vsel %vm477, %v1886, 0
        %v2076 = vsel %vm477, %v1888, 0
        %v2079 = vsel %vm477, %v1890, 0
        %v2082 = vsel %vm477, %v1892, 0
        %v2085 = vsel %vm477, %v1894, 0
        %2087 = vmatprep.subr.bf16.mxu0 0
        %2088 = vmatpush1.bf16.msra.mxu0 %v1967
        %2089 = vmatprep.subr.bf16.mxu0 0
        %2090 = vmatpush1.bf16.msra.mxu0 %v1968
        %2091 = vmatprep.subr.bf16.mxu0 0
        %2092 = vmatpush1.bf16.msra.mxu0 %v1969
        %2093 = vmatprep.subr.bf16.mxu0 0
        %2094 = vmatpush1.bf16.msra.mxu0 %v1970
        %2095 = vmatprep.subr.bf16.mxu0 0
        %2096 = vmatpush1.bf16.msra.mxu0 %v1971
        %2097 = vmatprep.subr.bf16.mxu0 0
        %2098 = vmatpush1.bf16.msra.mxu0 %v1972
        %2099 = vmatprep.subr.bf16.mxu0 0
        %2100 = vmatpush1.bf16.msra.mxu0 %v1973
        %2101 = vmatprep.subr.bf16.mxu0 0
        %2102 = vmatpush1.bf16.msra.mxu0 %v1974
        %2103 = vmatprep.subr.bf16.mxu0 0
        %2104 = vmatpush1.bf16.msra.mxu0 %v1975
        %2105 = vmatprep.subr.bf16.mxu0 0
        %2106 = vmatpush1.bf16.msra.mxu0 %v1976
        %2107 = vmatprep.subr.bf16.mxu0 0
        %2108 = vmatpush1.bf16.msra.mxu0 %v1977
        %2109 = vmatprep.subr.bf16.mxu0 0
        %2110 = vmatpush1.bf16.msra.mxu0 %v1978
        %2111 = vmatprep.subr.bf16.mxu0 0
        %2112 = vmatpush1.bf16.msra.mxu0 0
        %2113 = vmatprep.subr.bf16.mxu0 0
        %2114 = vmatpush1.bf16.msra.mxu0 0
        %2115 = vmatprep.subr.bf16.mxu0 0
        %2116 = vmatpush1.bf16.msra.mxu0 0
        %2117 = vmatprep.subr.bf16.mxu0 0
        %2118 = vmatpush1.bf16.msra.mxu0 0
        %2119 = vmatprep.mubr.bf16.mxu0 %v1992
        %2120 = vmatmul.mubr.bf16.gmra.mrb[0].mxu0 %v1831
        %v2121 = vpop.f32.mrb[0].mxu0
        %v2122 = vadd.f32 0.0, %v2121
        %v2123 = vpop.f32.mrb[0].mxu0
        %v2124 = vpop.f32.mrb[0].mxu0
        %v2125 = vadd.f32 0.0, %v2124
        %v2126 = vpop.f32.mrb[0].mxu0
        %2127 = vmatprep.mubr.bf16.mxu0 %v1995
        %2128 = vmatmul.mubr.bf16.gmra.mrb[0].mxu0 %v1833
        %v2129 = vpop.f32.mrb[0].mxu0
        %v2130 = vadd.f32 0.0, %v2129
        %v2131 = vpop.f32.mrb[0].mxu0
        %v2132 = vpop.f32.mrb[0].mxu0
        %v2133 = vadd.f32 0.0, %v2132
        %v2134 = vpop.f32.mrb[0].mxu0
        %2135 = vmatprep.mubr.bf16.mxu0 %v1998
        %2136 = vmatmul.mubr.bf16.gmra.mrb[0].mxu0 %v1835
        %v2137 = vpop.f32.mrb[0].mxu0
        %v2138 = vadd.f32 0.0, %v2137
        %v2139 = vpop.f32.mrb[0].mxu0
        %v2140 = vpop.f32.mrb[0].mxu0
        %v2141 = vadd.f32 0.0, %v2140
        %v2142 = vpop.f32.mrb[0].mxu0
        %2143 = vmatprep.mubr.bf16.mxu0 %v2001
        %2144 = vmatmul.mubr.bf16.gmra.mrb[0].mxu0 %v1837
        %v2145 = vpop.f32.mrb[0].mxu0
        %v2146 = vadd.f32 0.0, %v2145
        %v2147 = vpop.f32.mrb[0].mxu0
        %v2148 = vpop.f32.mrb[0].mxu0
        %v2149 = vadd.f32 0.0, %v2148
        %v2150 = vpop.f32.mrb[0].mxu0
        %2151 = vmatprep.mubr.bf16.mxu0 %v2004
        %2152 = vmatmul.mubr.bf16.gmra.mrb[0].mxu0 %v1839
        %v2153 = vpop.f32.mrb[0].mxu0
        %v2154 = vadd.f32 0.0, %v2153
        %v2155 = vpop.f32.mrb[0].mxu0
        %v2156 = vpop.f32.mrb[0].mxu0
        %v2157 = vadd.f32 0.0, %v2156
        %v2158 = vpop.f32.mrb[0].mxu0
        %2159 = vmatprep.mubr.bf16.mxu0 %v2007
        %2160 = vmatmul.mubr.bf16.gmra.mrb[0].mxu0 %v1841
        %v2161 = vpop.f32.mrb[0].mxu0
        %v2162 = vadd.f32 0.0, %v2161
        %v2163 = vpop.f32.mrb[0].mxu0
        %v2164 = vpop.f32.mrb[0].mxu0
        %v2165 = vadd.f32 0.0, %v2164
        %v2166 = vpop.f32.mrb[0].mxu0
        %2167 = vmatprep.mubr.bf16.mxu0 %v2010
        %2168 = vmatmul.mubr.bf16.gmra.mrb[0].mxu0 %v1843
        %v2169 = vpop.f32.mrb[0].mxu0
        %v2170 = vadd.f32 0.0, %v2169
        %v2171 = vpop.f32.mrb[0].mxu0
        %v2172 = vpop.f32.mrb[0].mxu0
        %v2173 = vadd.f32 0.0, %v2172
        %v2174 = vpop.f32.mrb[0].mxu0
        %2175 = vmatprep.mubr.bf16.mxu0 %v2013
        %2176 = vmatmul.mubr.bf16.gmra.mrb[0].mxu0 %v1845
        %v2177 = vpop.f32.mrb[0].mxu0
        %v2178 = vadd.f32 0.0, %v2177
        %v2179 = vpop.f32.mrb[0].mxu0
        %v2180 = vpop.f32.mrb[0].mxu0
        %v2181 = vadd.f32 0.0, %v2180
        %v2182 = vpop.f32.mrb[0].mxu0
        %2183 = vmatprep.mubr.bf16.mxu0 %v2016
        %2184 = vmatmul.mubr.bf16.gmra.mrb[0].mxu0 %v1847
        %v2185 = vpop.f32.mrb[0].mxu0
        %v2186 = vadd.f32 0.0, %v2185
        %v2187 = vpop.f32.mrb[0].mxu0
        %v2188 = vpop.f32.mrb[0].mxu0
        %v2189 = vadd.f32 0.0, %v2188
        %v2190 = vpop.f32.mrb[0].mxu0
        %2191 = vmatprep.mubr.bf16.mxu0 %v2019
        %2192 = vmatmul.mubr.bf16.gmra.mrb[0].mxu0 %v1849
        %v2193 = vpop.f32.mrb[0].mxu0
        %v2194 = vadd.f32 0.0, %v2193
        %v2195 = vpop.f32.mrb[0].mxu0
        %v2196 = vpop.f32.mrb[0].mxu0
        %v2197 = vadd.f32 0.0, %v2196
        %v2198 = vpop.f32.mrb[0].mxu0
        %2199 = vmatprep.mubr.bf16.mxu0 %v2022
        %2200 = vmatmul.mubr.bf16.gmra.mrb[0].mxu0 %v1851
        %v2201 = vpop.f32.mrb[0].mxu0
        %v2202 = vadd.f32 0.0, %v2201
        %v2203 = vpop.f32.mrb[0].mxu0
        %v2204 = vpop.f32.mrb[0].mxu0
        %v2205 = vadd.f32 0.0, %v2204
        %v2206 = vpop.f32.mrb[0].mxu0
        %2207 = vmatprep.mubr.bf16.mxu0 %v2025
        %2208 = vmatmul.mubr.bf16.gmra.mrb[0].mxu0 %v1853
        %v2209 = vpop.f32.mrb[0].mxu0
        %v2210 = vadd.f32 0.0, %v2209
        %v2211 = vpop.f32.mrb[0].mxu0
        %v2212 = vpop.f32.mrb[0].mxu0
        %v2213 = vadd.f32 0.0, %v2212
        %v2214 = vpop.f32.mrb[0].mxu0
        %2215 = vmatprep.mubr.bf16.mxu0 %v2028
        %2216 = vmatmul.mubr.bf16.gmra.mrb[0].mxu0 %v1855
        %v2217 = vpop.f32.mrb[0].mxu0
        %v2218 = vadd.f32 0.0, %v2217
        %v2219 = vpop.f32.mrb[0].mxu0
        %v2220 = vpop.f32.mrb[0].mxu0
        %v2221 = vadd.f32 0.0, %v2220
        %v2222 = vpop.f32.mrb[0].mxu0
        %2223 = vmatprep.mubr.bf16.mxu0 %v2031
        %2224 = vmatmul.mubr.bf16.gmra.mrb[0].mxu0 %v1857
        %v2225 = vpop.f32.mrb[0].mxu0
        %v2226 = vadd.f32 0.0, %v2225
        %v2227 = vpop.f32.mrb[0].mxu0
        %v2228 = vpop.f32.mrb[0].mxu0
        %v2229 = vadd.f32 0.0, %v2228
        %v2230 = vpop.f32.mrb[0].mxu0
        %2231 = vmatprep.mubr.bf16.mxu0 %v2034
        %2232 = vmatmul.mubr.bf16.gmra.mrb[0].mxu0 %v1859
        %v2233 = vpop.f32.mrb[0].mxu0
        %v2234 = vadd.f32 0.0, %v2233
        %v2235 = vpop.f32.mrb[0].mxu0
        %v2236 = vpop.f32.mrb[0].mxu0
        %v2237 = vadd.f32 0.0, %v2236
        %v2238 = vpop.f32.mrb[0].mxu0
        %2239 = vmatprep.mubr.bf16.mxu0 %v2037
        %2240 = vmatmul.mubr.bf16.gmra.mrb[0].mxu0 %v1861
        %v2241 = vpop.f32.mrb[0].mxu0
        %v2242 = vadd.f32 0.0, %v2241
        %v2243 = vpop.f32.mrb[0].mxu0
        %v2244 = vpop.f32.mrb[0].mxu0
        %v2245 = vadd.f32 0.0, %v2244
        %v2246 = vpop.f32.mrb[0].mxu0
        %2247 = vmatprep.mubr.bf16.mxu0 %v2040
        %2248 = vmatmul.mubr.bf16.gmra.mrb[0].mxu0 %v1863
        %v2249 = vpop.f32.mrb[0].mxu0
        %v2250 = vadd.f32 0.0, %v2249
        %v2251 = vpop.f32.mrb[0].mxu0
        %v2252 = vpop.f32.mrb[0].mxu0
        %v2253 = vadd.f32 0.0, %v2252
        %v2254 = vpop.f32.mrb[0].mxu0
        %2255 = vmatprep.mubr.bf16.mxu0 %v2043
        %2256 = vmatmul.mubr.bf16.gmra.mrb[0].mxu0 %v1865
        %v2257 = vpop.f32.mrb[0].mxu0
        %v2258 = vadd.f32 0.0, %v2257
        %v2259 = vpop.f32.mrb[0].mxu0
        %v2260 = vpop.f32.mrb[0].mxu0
        %v2261 = vadd.f32 0.0, %v2260
        %v2262 = vpop.f32.mrb[0].mxu0
        %2263 = vmatprep.mubr.bf16.mxu0 %v2046
        %2264 = vmatmul.mubr.bf16.gmra.mrb[0].mxu0 %v1867
        %v2265 = vpop.f32.mrb[0].mxu0
        %v2266 = vadd.f32 0.0, %v2265
        %v2267 = vpop.f32.mrb[0].mxu0
        %v2268 = vpop.f32.mrb[0].mxu0
        %v2269 = vadd.f32 0.0, %v2268
        %v2270 = vpop.f32.mrb[0].mxu0
        %2271 = vmatprep.mubr.bf16.mxu0 %v2049
        %2272 = vmatmul.mubr.bf16.gmra.mrb[0].mxu0 %v1869
        %v2273 = vpop.f32.mrb[0].mxu0
        %v2274 = vadd.f32 0.0, %v2273
        %v2275 = vpop.f32.mrb[0].mxu0
        %v2276 = vpop.f32.mrb[0].mxu0
        %v2277 = vadd.f32 0.0, %v2276
        %v2278 = vpop.f32.mrb[0].mxu0
        %2279 = vmatprep.mubr.bf16.mxu0 %v2052
        %2280 = vmatmul.mubr.bf16.gmra.mrb[0].mxu0 %v1871
        %v2281 = vpop.f32.mrb[0].mxu0
        %v2282 = vadd.f32 0.0, %v2281
        %v2283 = vpop.f32.mrb[0].mxu0
        %v2284 = vpop.f32.mrb[0].mxu0
        %v2285 = vadd.f32 0.0, %v2284
        %v2286 = vpop.f32.mrb[0].mxu0
        %2287 = vmatprep.mubr.bf16.mxu0 %v2055
        %2288 = vmatmul.mubr.bf16.gmra.mrb[0].mxu0 %v1873
        %v2289 = vpop.f32.mrb[0].mxu0
        %v2290 = vadd.f32 0.0, %v2289
        %v2291 = vpop.f32.mrb[0].mxu0
        %v2292 = vpop.f32.mrb[0].mxu0
        %v2293 = vadd.f32 0.0, %v2292
        %v2294 = vpop.f32.mrb[0].mxu0
        %2295 = vmatprep.mubr.bf16.mxu0 %v2058
        %2296 = vmatmul.mubr.bf16.gmra.mrb[0].mxu0 %v1875
        %v2297 = vpop.f32.mrb[0].mxu0
        %v2298 = vadd.f32 0.0, %v2297
        %v2299 = vpop.f32.mrb[0].mxu0
        %v2300 = vpop.f32.mrb[0].mxu0
        %v2301 = vadd.f32 0.0, %v2300
        %v2302 = vpop.f32.mrb[0].mxu0
        %2303 = vmatprep.mubr.bf16.mxu0 %v2061
        %2304 = vmatmul.mubr.bf16.gmra.mrb[0].mxu0 %v1877
        %v2305 = vpop.f32.mrb[0].mxu0
        %v2306 = vadd.f32 0.0, %v2305
        %v2307 = vpop.f32.mrb[0].mxu0
        %v2308 = vpop.f32.mrb[0].mxu0
        %v2309 = vadd.f32 0.0, %v2308
        %v2310 = vpop.f32.mrb[0].mxu0
        %2311 = vmatprep.mubr.bf16.mxu0 %v2064
        %2312 = vmatmul.mubr.bf16.gmra.mrb[0].mxu0 %v1879
        %v2313 = vpop.f32.mrb[0].mxu0
        %v2314 = vadd.f32 0.0, %v2313
        %v2315 = vpop.f32.mrb[0].mxu0
        %v2316 = vpop.f32.mrb[0].mxu0
        %v2317 = vadd.f32 0.0, %v2316
        %v2318 = vpop.f32.mrb[0].mxu0
        %2319 = vmatprep.mubr.bf16.mxu0 %v2067
        %2320 = vmatmul.mubr.bf16.gmra.mrb[0].mxu0 %v1881
        %v2321 = vpop.f32.mrb[0].mxu0
        %v2322 = vadd.f32 0.0, %v2321
        %v2323 = vpop.f32.mrb[0].mxu0
        %v2324 = vpop.f32.mrb[0].mxu0
        %v2325 = vadd.f32 0.0, %v2324
        %v2326 = vpop.f32.mrb[0].mxu0
        %2327 = vmatprep.mubr.bf16.mxu0 %v2070
        %2328 = vmatmul.mubr.bf16.gmra.mrb[0].mxu0 %v1883
        %v2329 = vpop.f32.mrb[0].mxu0
        %v2330 = vadd.f32 0.0, %v2329
        %v2331 = vpop.f32.mrb[0].mxu0
        %v2332 = vpop.f32.mrb[0].mxu0
        %v2333 = vadd.f32 0.0, %v2332
        %v2334 = vpop.f32.mrb[0].mxu0
        %2335 = vmatprep.mubr.bf16.mxu0 %v2073
        %2336 = vmatmul.mubr.bf16.gmra.mrb[0].mxu0 %v1885
        %v2337 = vpop.f32.mrb[0].mxu0
        %v2338 = vadd.f32 0.0, %v2337
        %v2339 = vpop.f32.mrb[0].mxu0
        %v2340 = vpop.f32.mrb[0].mxu0
        %v2341 = vadd.f32 0.0, %v2340
        %v2342 = vpop.f32.mrb[0].mxu0
        %2343 = vmatprep.mubr.bf16.mxu0 %v2076
        %2344 = vmatmul.mubr.bf16.gmra.mrb[0].mxu0 %v1887
        %v2345 = vpop.f32.mrb[0].mxu0
        %v2346 = vadd.f32 0.0, %v2345
        %v2347 = vpop.f32.mrb[0].mxu0
        %v2348 = vpop.f32.mrb[0].mxu0
        %v2349 = vadd.f32 0.0, %v2348
        %v2350 = vpop.f32.mrb[0].mxu0
        %2351 = vmatprep.mubr.bf16.mxu0 %v2079
        %2352 = vmatmul.mubr.bf16.gmra.mrb[0].mxu0 %v1889
        %v2353 = vpop.f32.mrb[0].mxu0
        %v2354 = vadd.f32 0.0, %v2353
        %v2355 = vpop.f32.mrb[0].mxu0
        %v2356 = vpop.f32.mrb[0].mxu0
        %v2357 = vadd.f32 0.0, %v2356
        %v2358 = vpop.f32.mrb[0].mxu0
        %2359 = vmatprep.mubr.bf16.mxu0 %v2082
        %2360 = vmatmul.mubr.bf16.gmra.mrb[0].mxu0 %v1891
        %v2361 = vpop.f32.mrb[0].mxu0
        %v2362 = vadd.f32 0.0, %v2361
        %v2363 = vpop.f32.mrb[0].mxu0
        %v2364 = vpop.f32.mrb[0].mxu0
        %v2365 = vadd.f32 0.0, %v2364
        %v2366 = vpop.f32.mrb[0].mxu0
        %2367 = vmatprep.mubr.bf16.mxu0 %v2085
        %2368 = vmatmul.mubr.bf16.gmra.mrb[0].mxu0 %v1893
        %v2369 = vpop.f32.mrb[0].mxu0
        %v2370 = vadd.f32 0.0, %v2369
        %v2371 = vpop.f32.mrb[0].mxu0
        %v2372 = vpop.f32.mrb[0].mxu0
        %v2373 = vadd.f32 0.0, %v2372
        %v2374 = vpop.f32.mrb[0].mxu0
        %2375 = vdwg.mxu0
        %2376 = vst [vmem:[#allocation3] sm:$0xff] %v2122
        %2377 = vst [vmem:[#allocation3 + $0x8] sm:$0xff] %v2125
        %2378 = vst [vmem:[#allocation3 + $0x10] sm:$0xff] %v2130
        %2379 = vst [vmem:[#allocation3 + $0x18] sm:$0xff] %v2133
        %2380 = vst [vmem:[#allocation3 + $0x20] sm:$0xff] %v2138
        %2381 = vst [vmem:[#allocation3 + $0x28] sm:$0xff] %v2141
        %2382 = vst [vmem:[#allocation3 + $0x30] sm:$0xff] %v2146
        %2383 = vst [vmem:[#allocation3 + $0x38] sm:$0xff] %v2149
        %2384 = vst [vmem:[#allocation3 + $0x40] sm:$0xff] %v2154
        %2385 = vst [vmem:[#allocation3 + $0x48] sm:$0xff] %v2157
        %2386 = vst [vmem:[#allocation3 + $0x50] sm:$0xff] %v2162
        %2387 = vst [vmem:[#allocation3 + $0x58] sm:$0xff] %v2165
        %2388 = vst [vmem:[#allocation3 + $0x60] sm:$0xff] %v2170
        %2389 = vst [vmem:[#allocation3 + $0x68] sm:$0xff] %v2173
        %2390 = vst [vmem:[#allocation3 + $0x70] sm:$0xff] %v2178
        %2391 = vst [vmem:[#allocation3 + $0x78] sm:$0xff] %v2181
        %2392 = vst [vmem:[#allocation3 + $0x80] sm:$0xff] %v2186
        %2393 = vst [vmem:[#allocation3 + $0x88] sm:$0xff] %v2189
        %2394 = vst [vmem:[#allocation3 + $0x90] sm:$0xff] %v2194
        %2395 = vst [vmem:[#allocation3 + $0x98] sm:$0xff] %v2197
        %2396 = vst [vmem:[#allocation3 + $0xa0] sm:$0xff] %v2202
        %2397 = vst [vmem:[#allocation3 + $0xa8] sm:$0xff] %v2205
        %2398 = vst [vmem:[#allocation3 + $0xb0] sm:$0xff] %v2210
        %2399 = vst [vmem:[#allocation3 + $0xb8] sm:$0xff] %v2213
        %2400 = vst [vmem:[#allocation3 + $0xc0] sm:$0xff] %v2218
        %2401 = vst [vmem:[#allocation3 + $0xc8] sm:$0xff] %v2221
        %2402 = vst [vmem:[#allocation3 + $0xd0] sm:$0xff] %v2226
        %2403 = vst [vmem:[#allocation3 + $0xd8] sm:$0xff] %v2229
        %2404 = vst [vmem:[#allocation3 + $0xe0] sm:$0xff] %v2234
        %2405 = vst [vmem:[#allocation3 + $0xe8] sm:$0xff] %v2237
        %2406 = vst [vmem:[#allocation3 + $0xf0] sm:$0xff] %v2242
        %2407 = vst [vmem:[#allocation3 + $0xf8] sm:$0xff] %v2245
        %2408 = vst [vmem:[#allocation3 + $0x100] sm:$0xff] %v2250
        %2409 = vst [vmem:[#allocation3 + $0x108] sm:$0xff] %v2253
        %2410 = vst [vmem:[#allocation3 + $0x110] sm:$0xff] %v2258
        %2411 = vst [vmem:[#allocation3 + $0x118] sm:$0xff] %v2261
        %2412 = vst [vmem:[#allocation3 + $0x120] sm:$0xff] %v2266
        %2413 = vst [vmem:[#allocation3 + $0x128] sm:$0xff] %v2269
        %2414 = vst [vmem:[#allocation3 + $0x130] sm:$0xff] %v2274
        %2415 = vst [vmem:[#allocation3 + $0x138] sm:$0xff] %v2277
        %2416 = vst [vmem:[#allocation3 + $0x140] sm:$0xff] %v2282
        %2417 = vst [vmem:[#allocation3 + $0x148] sm:$0xff] %v2285
        %2418 = vst [vmem:[#allocation3 + $0x150] sm:$0xff] %v2290
        %2419 = vst [vmem:[#allocation3 + $0x158] sm:$0xff] %v2293
        %2420 = vst [vmem:[#allocation3 + $0x160] sm:$0xff] %v2298
        %2421 = vst [vmem:[#allocation3 + $0x168] sm:$0xff] %v2301
        %2422 = vst [vmem:[#allocation3 + $0x170] sm:$0xff] %v2306
        %2423 = vst [vmem:[#allocation3 + $0x178] sm:$0xff] %v2309
        %2424 = vst [vmem:[#allocation3 + $0x180] sm:$0xff] %v2314
        %2425 = vst [vmem:[#allocation3 + $0x188] sm:$0xff] %v2317
        %2426 = vst [vmem:[#allocation3 + $0x190] sm:$0xff] %v2322
        %2427 = vst [vmem:[#allocation3 + $0x198] sm:$0xff] %v2325
        %2428 = vst [vmem:[#allocation3 + $0x1a0] sm:$0xff] %v2330
        %2429 = vst [vmem:[#allocation3 + $0x1a8] sm:$0xff] %v2333
        %2430 = vst [vmem:[#allocation3 + $0x1b0] sm:$0xff] %v2338
        %2431 = vst [vmem:[#allocation3 + $0x1b8] sm:$0xff] %v2341
        %2432 = vst [vmem:[#allocation3 + $0x1c0] sm:$0xff] %v2346
        %2433 = vst [vmem:[#allocation3 + $0x1c8] sm:$0xff] %v2349
        %2434 = vst [vmem:[#allocation3 + $0x1d0] sm:$0xff] %v2354
        %2435 = vst [vmem:[#allocation3 + $0x1d8] sm:$0xff] %v2357
        %2436 = vst [vmem:[#allocation3 + $0x1e0] sm:$0xff] %v2362
        %2437 = vst [vmem:[#allocation3 + $0x1e8] sm:$0xff] %v2365
        %2438 = vst [vmem:[#allocation3 + $0x1f0] sm:$0xff] %v2370
        %2439 = vst [vmem:[#allocation3 + $0x1f8] sm:$0xff] %v2373
        %s2440 = scalar_lea.vmem [#allocation2], 32
        %v2441 = vld [vmem:[%s2440] sm:$0xff]
        %v2442 = vld [vmem:[%s2440 + $0x8] sm:$0xff]
        %v2443 = vld [vmem:[%s2440 + $0x10] sm:$0xff]
        %v2444 = vld [vmem:[%s2440 + $0x18] sm:$0xff]
        %v2445 = vld [vmem:[%s2440 + $0x20] sm:$0xff]
        %v2446 = vld [vmem:[%s2440 + $0x28] sm:$0xff]
        %v2447 = vld [vmem:[%s2440 + $0x30] sm:$0xff]
        %v2448 = vld [vmem:[%s2440 + $0x38] sm:$0xff]
        %v2449 = vld [vmem:[%s2440 + $0x40] sm:$0xff]
        %v2450 = vld [vmem:[%s2440 + $0x48] sm:$0xff]
        %v2451 = vld [vmem:[%s2440 + $0x50] sm:$0xff]
        %v2452 = vld [vmem:[%s2440 + $0x58] sm:$0xff]
        %v2453 = vld [vmem:[%s2440 + $0x60] sm:$0xff]
        %v2454 = vld [vmem:[%s2440 + $0x68] sm:$0xff]
        %v2455 = vld [vmem:[%s2440 + $0x70] sm:$0xff]
        %v2456 = vld [vmem:[%s2440 + $0x78] sm:$0xff]
        %v2457 = vld [vmem:[%s2440 + $0x80] sm:$0xff]
        %v2458 = vld [vmem:[%s2440 + $0x88] sm:$0xff]
        %v2459 = vld [vmem:[%s2440 + $0x90] sm:$0xff]
        %v2460 = vld [vmem:[%s2440 + $0x98] sm:$0xff]
        %v2461 = vld [vmem:[%s2440 + $0xa0] sm:$0xff]
        %v2462 = vld [vmem:[%s2440 + $0xa8] sm:$0xff]
        %v2463 = vld [vmem:[%s2440 + $0xb0] sm:$0xff]
        %v2464 = vld [vmem:[%s2440 + $0xb8] sm:$0xff]
        %v2465 = vld [vmem:[%s2440 + $0xc0] sm:$0xff]
        %v2466 = vld [vmem:[%s2440 + $0xc8] sm:$0xff]
        %v2467 = vld [vmem:[%s2440 + $0xd0] sm:$0xff]
        %v2468 = vld [vmem:[%s2440 + $0xd8] sm:$0xff]
        %v2469 = vld [vmem:[%s2440 + $0xe0] sm:$0xff]
        %v2470 = vld [vmem:[%s2440 + $0xe8] sm:$0xff]
        %v2471 = vld [vmem:[%s2440 + $0xf0] sm:$0xff]
        %v2472 = vld [vmem:[%s2440 + $0xf8] sm:$0xff]
        %v2473 = vld [vmem:[%s2440 + $0x100] sm:$0xff]
        %v2474 = vld [vmem:[%s2440 + $0x108] sm:$0xff]
        %v2475 = vld [vmem:[%s2440 + $0x110] sm:$0xff]
        %v2476 = vld [vmem:[%s2440 + $0x118] sm:$0xff]
        %v2477 = vld [vmem:[%s2440 + $0x120] sm:$0xff]
        %v2478 = vld [vmem:[%s2440 + $0x128] sm:$0xff]
        %v2479 = vld [vmem:[%s2440 + $0x130] sm:$0xff]
        %v2480 = vld [vmem:[%s2440 + $0x138] sm:$0xff]
        %v2481 = vld [vmem:[%s2440 + $0x140] sm:$0xff]
        %v2482 = vld [vmem:[%s2440 + $0x148] sm:$0xff]
        %v2483 = vld [vmem:[%s2440 + $0x150] sm:$0xff]
        %v2484 = vld [vmem:[%s2440 + $0x158] sm:$0xff]
        %v2485 = vld [vmem:[%s2440 + $0x160] sm:$0xff]
        %v2486 = vld [vmem:[%s2440 + $0x168] sm:$0xff]
        %v2487 = vld [vmem:[%s2440 + $0x170] sm:$0xff]
        %v2488 = vld [vmem:[%s2440 + $0x178] sm:$0xff]
        %v2489 = vld [vmem:[%s2440 + $0x180] sm:$0xff]
        %v2490 = vld [vmem:[%s2440 + $0x188] sm:$0xff]
        %v2491 = vld [vmem:[%s2440 + $0x190] sm:$0xff]
        %v2492 = vld [vmem:[%s2440 + $0x198] sm:$0xff]
        %v2493 = vld [vmem:[%s2440 + $0x1a0] sm:$0xff]
        %v2494 = vld [vmem:[%s2440 + $0x1a8] sm:$0xff]
        %v2495 = vld [vmem:[%s2440 + $0x1b0] sm:$0xff]
        %v2496 = vld [vmem:[%s2440 + $0x1b8] sm:$0xff]
        %v2497 = vld [vmem:[%s2440 + $0x1c0] sm:$0xff]
        %v2498 = vld [vmem:[%s2440 + $0x1c8] sm:$0xff]
        %v2499 = vld [vmem:[%s2440 + $0x1d0] sm:$0xff]
        %v2500 = vld [vmem:[%s2440 + $0x1d8] sm:$0xff]
        %v2501 = vld [vmem:[%s2440 + $0x1e0] sm:$0xff]
        %v2502 = vld [vmem:[%s2440 + $0x1e8] sm:$0xff]
        %v2503 = vld [vmem:[%s2440 + $0x1f0] sm:$0xff]
        %v2504 = vld [vmem:[%s2440 + $0x1f8] sm:$0xff]
        %s2505 = scalar_lea.vmem %s1, 96
        %v2506 = vld [vmem:[%s2505] sm:$0xf]
        %v2507 = vld [vmem:[%s2505 + $0x4] sm:$0xf]
        %v2508 = vld [vmem:[%s2505 + $0x8] sm:$0xf]
        %v2509 = vld [vmem:[%s2505 + $0xc] sm:$0xf]
        %v2510 = vld [vmem:[%s2505 + $0x10] sm:$0xf]
        %v2511 = vld [vmem:[%s2505 + $0x14] sm:$0xf]
        %v2512 = vld [vmem:[%s2505 + $0x18] sm:$0xf]
        %v2513 = vld [vmem:[%s2505 + $0x1c] sm:$0xf]
        %v2514 = vld [vmem:[%s2505 + $0x20] sm:$0xf]
        %v2515 = vld [vmem:[%s2505 + $0x24] sm:$0xf]
        %v2516 = vld [vmem:[%s2505 + $0x28] sm:$0xf]
        %v2517 = vld [vmem:[%s2505 + $0x2c] sm:$0xf]
        %v2518 = vld [vmem:[%s2505 + $0x30] sm:$0xf]
        %v2519 = vld [vmem:[%s2505 + $0x34] sm:$0xf]
        %v2520 = vld [vmem:[%s2505 + $0x38] sm:$0xf]
        %v2521 = vld [vmem:[%s2505 + $0x3c] sm:$0xf]
        %v2522 = vld [vmem:[%s2505 + $0x40] sm:$0xf]
        %v2523 = vld [vmem:[%s2505 + $0x44] sm:$0xf]
        %v2524 = vld [vmem:[%s2505 + $0x48] sm:$0xf]
        %v2525 = vld [vmem:[%s2505 + $0x4c] sm:$0xf]
        %v2526 = vld [vmem:[%s2505 + $0x50] sm:$0xf]
        %v2527 = vld [vmem:[%s2505 + $0x54] sm:$0xf]
        %v2528 = vld [vmem:[%s2505 + $0x58] sm:$0xf]
        %v2529 = vld [vmem:[%s2505 + $0x5c] sm:$0xf]
        %v2554 = vunpack.c.l.b16 %v2506
        %v2555 = vunpack.c.l.b16 %v2507
        %v2556 = vunpack.c.l.b16 %v2508
        %v2557 = vunpack.c.l.b16 %v2509
        %v2558 = vunpack.c.l.b16 %v2510
        %v2559 = vunpack.c.l.b16 %v2511
        %v2560 = vunpack.c.l.b16 %v2512
        %v2561 = vunpack.c.l.b16 %v2513
        %v2562 = vunpack.c.l.b16 %v2514
        %v2563 = vunpack.c.l.b16 %v2515
        %v2564 = vunpack.c.l.b16 %v2516
        %v2565 = vunpack.c.l.b16 %v2517
        %v2566 = vunpack.c.l.b16 %v2518
        %v2567 = vunpack.c.l.b16 %v2519
        %v2568 = vunpack.c.l.b16 %v2520
        %v2569 = vunpack.c.l.b16 %v2521
        %v2570 = vunpack.c.l.b16 %v2522
        %v2571 = vunpack.c.l.b16 %v2523
        %v2572 = vunpack.c.l.b16 %v2524
        %v2573 = vunpack.c.l.b16 %v2525
        %v2574 = vunpack.c.l.b16 %v2526
        %v2575 = vunpack.c.l.b16 %v2527
        %v2576 = vunpack.c.l.b16 %v2528
        %v2577 = vunpack.c.l.b16 %v2529
        %v2578 = vpack.c.b16 %v2555, %v2554
        %v2579 = vpack.c.b16 %v2557, %v2556
        %v2580 = vpack.c.b16 %v2559, %v2558
        %v2581 = vpack.c.b16 %v2561, %v2560
        %v2582 = vpack.c.b16 %v2563, %v2562
        %v2583 = vpack.c.b16 %v2565, %v2564
        %v2584 = vpack.c.b16 %v2567, %v2566
        %v2585 = vpack.c.b16 %v2569, %v2568
        %v2586 = vpack.c.b16 %v2571, %v2570
        %v2587 = vpack.c.b16 %v2573, %v2572
        %v2588 = vpack.c.b16 %v2575, %v2574
        %v2589 = vpack.c.b16 %v2577, %v2576
        %v2603 = vsel %vm477, %v2442, 0
        %v2606 = vsel %vm477, %v2444, 0
        %v2609 = vsel %vm477, %v2446, 0
        %v2612 = vsel %vm477, %v2448, 0
        %v2615 = vsel %vm477, %v2450, 0
        %v2618 = vsel %vm477, %v2452, 0
        %v2621 = vsel %vm477, %v2454, 0
        %v2624 = vsel %vm477, %v2456, 0
        %v2627 = vsel %vm477, %v2458, 0
        %v2630 = vsel %vm477, %v2460, 0
        %v2633 = vsel %vm477, %v2462, 0
        %v2636 = vsel %vm477, %v2464, 0
        %v2639 = vsel %vm477, %v2466, 0
        %v2642 = vsel %vm477, %v2468, 0
        %v2645 = vsel %vm477, %v2470, 0
        %v2648 = vsel %vm477, %v2472, 0
        %v2651 = vsel %vm477, %v2474, 0
        %v2654 = vsel %vm477, %v2476, 0
        %v2657 = vsel %vm477, %v2478, 0
        %v2660 = vsel %vm477, %v2480, 0
        %v2663 = vsel %vm477, %v2482, 0
        %v2666 = vsel %vm477, %v2484, 0
        %v2669 = vsel %vm477, %v2486, 0
        %v2672 = vsel %vm477, %v2488, 0
        %v2675 = vsel %vm477, %v2490, 0
        %v2678 = vsel %vm477, %v2492, 0
        %v2681 = vsel %vm477, %v2494, 0
        %v2684 = vsel %vm477, %v2496, 0
        %v2687 = vsel %vm477, %v2498, 0
        %v2690 = vsel %vm477, %v2500, 0
        %v2693 = vsel %vm477, %v2502, 0
        %v2696 = vsel %vm477, %v2504, 0
        %2698 = vmatprep.subr.bf16.mxu0 0
        %2699 = vmatpush1.bf16.msra.mxu0 %v2578
        %2700 = vmatprep.subr.bf16.mxu0 0
        %2701 = vmatpush1.bf16.msra.mxu0 %v2579
        %2702 = vmatprep.subr.bf16.mxu0 0
        %2703 = vmatpush1.bf16.msra.mxu0 %v2580
        %2704 = vmatprep.subr.bf16.mxu0 0
        %2705 = vmatpush1.bf16.msra.mxu0 %v2581
        %2706 = vmatprep.subr.bf16.mxu0 0
        %2707 = vmatpush1.bf16.msra.mxu0 %v2582
        %2708 = vmatprep.subr.bf16.mxu0 0
        %2709 = vmatpush1.bf16.msra.mxu0 %v2583
        %2710 = vmatprep.subr.bf16.mxu0 0
        %2711 = vmatpush1.bf16.msra.mxu0 %v2584
        %2712 = vmatprep.subr.bf16.mxu0 0
        %2713 = vmatpush1.bf16.msra.mxu0 %v2585
        %2714 = vmatprep.subr.bf16.mxu0 0
        %2715 = vmatpush1.bf16.msra.mxu0 %v2586
        %2716 = vmatprep.subr.bf16.mxu0 0
        %2717 = vmatpush1.bf16.msra.mxu0 %v2587
        %2718 = vmatprep.subr.bf16.mxu0 0
        %2719 = vmatpush1.bf16.msra.mxu0 %v2588
        %2720 = vmatprep.subr.bf16.mxu0 0
        %2721 = vmatpush1.bf16.msra.mxu0 %v2589
        %2722 = vmatprep.subr.bf16.mxu0 0
        %2723 = vmatpush1.bf16.msra.mxu0 0
        %2724 = vmatprep.subr.bf16.mxu0 0
        %2725 = vmatpush1.bf16.msra.mxu0 0
        %2726 = vmatprep.subr.bf16.mxu0 0
        %2727 = vmatpush1.bf16.msra.mxu0 0
        %2728 = vmatprep.subr.bf16.mxu0 0
        %2729 = vmatpush1.bf16.msra.mxu0 0
        %2730 = vmatprep.mubr.bf16.mxu0 %v2603
        %2731 = vmatmul.mubr.bf16.gmra.mrb[0].mxu0 %v2441
        %v2732 = vpop.f32.mrb[0].mxu0
        %v2733 = vadd.f32 0.0, %v2732
        %v2734 = vpop.f32.mrb[0].mxu0
        %v2735 = vpop.f32.mrb[0].mxu0
        %v2736 = vadd.f32 0.0, %v2735
        %v2737 = vpop.f32.mrb[0].mxu0
        %2738 = vmatprep.mubr.bf16.mxu0 %v2606
        %2739 = vmatmul.mubr.bf16.gmra.mrb[0].mxu0 %v2443
        %v2740 = vpop.f32.mrb[0].mxu0
        %v2741 = vadd.f32 0.0, %v2740
        %v2742 = vpop.f32.mrb[0].mxu0
        %v2743 = vpop.f32.mrb[0].mxu0
        %v2744 = vadd.f32 0.0, %v2743
        %v2745 = vpop.f32.mrb[0].mxu0
        %2746 = vmatprep.mubr.bf16.mxu0 %v2609
        %2747 = vmatmul.mubr.bf16.gmra.mrb[0].mxu0 %v2445
        %v2748 = vpop.f32.mrb[0].mxu0
        %v2749 = vadd.f32 0.0, %v2748
        %v2750 = vpop.f32.mrb[0].mxu0
        %v2751 = vpop.f32.mrb[0].mxu0
        %v2752 = vadd.f32 0.0, %v2751
        %v2753 = vpop.f32.mrb[0].mxu0
        %2754 = vmatprep.mubr.bf16.mxu0 %v2612
        %2755 = vmatmul.mubr.bf16.gmra.mrb[0].mxu0 %v2447
        %v2756 = vpop.f32.mrb[0].mxu0
        %v2757 = vadd.f32 0.0, %v2756
        %v2758 = vpop.f32.mrb[0].mxu0
        %v2759 = vpop.f32.mrb[0].mxu0
        %v2760 = vadd.f32 0.0, %v2759
        %v2761 = vpop.f32.mrb[0].mxu0
        %2762 = vmatprep.mubr.bf16.mxu0 %v2615
        %2763 = vmatmul.mubr.bf16.gmra.mrb[0].mxu0 %v2449
        %v2764 = vpop.f32.mrb[0].mxu0
        %v2765 = vadd.f32 0.0, %v2764
        %v2766 = vpop.f32.mrb[0].mxu0
        %v2767 = vpop.f32.mrb[0].mxu0
        %v2768 = vadd.f32 0.0, %v2767
        %v2769 = vpop.f32.mrb[0].mxu0
        %2770 = vmatprep.mubr.bf16.mxu0 %v2618
        %2771 = vmatmul.mubr.bf16.gmra.mrb[0].mxu0 %v2451
        %v2772 = vpop.f32.mrb[0].mxu0
        %v2773 = vadd.f32 0.0, %v2772
        %v2774 = vpop.f32.mrb[0].mxu0
        %v2775 = vpop.f32.mrb[0].mxu0
        %v2776 = vadd.f32 0.0, %v2775
        %v2777 = vpop.f32.mrb[0].mxu0
        %2778 = vmatprep.mubr.bf16.mxu0 %v2621
        %2779 = vmatmul.mubr.bf16.gmra.mrb[0].mxu0 %v2453
        %v2780 = vpop.f32.mrb[0].mxu0
        %v2781 = vadd.f32 0.0, %v2780
        %v2782 = vpop.f32.mrb[0].mxu0
        %v2783 = vpop.f32.mrb[0].mxu0
        %v2784 = vadd.f32 0.0, %v2783
        %v2785 = vpop.f32.mrb[0].mxu0
        %2786 = vmatprep.mubr.bf16.mxu0 %v2624
        %2787 = vmatmul.mubr.bf16.gmra.mrb[0].mxu0 %v2455
        %v2788 = vpop.f32.mrb[0].mxu0
        %v2789 = vadd.f32 0.0, %v2788
        %v2790 = vpop.f32.mrb[0].mxu0
        %v2791 = vpop.f32.mrb[0].mxu0
        %v2792 = vadd.f32 0.0, %v2791
        %v2793 = vpop.f32.mrb[0].mxu0
        %2794 = vmatprep.mubr.bf16.mxu0 %v2627
        %2795 = vmatmul.mubr.bf16.gmra.mrb[0].mxu0 %v2457
        %v2796 = vpop.f32.mrb[0].mxu0
        %v2797 = vadd.f32 0.0, %v2796
        %v2798 = vpop.f32.mrb[0].mxu0
        %v2799 = vpop.f32.mrb[0].mxu0
        %v2800 = vadd.f32 0.0, %v2799
        %v2801 = vpop.f32.mrb[0].mxu0
        %2802 = vmatprep.mubr.bf16.mxu0 %v2630
        %2803 = vmatmul.mubr.bf16.gmra.mrb[0].mxu0 %v2459
        %v2804 = vpop.f32.mrb[0].mxu0
        %v2805 = vadd.f32 0.0, %v2804
        %v2806 = vpop.f32.mrb[0].mxu0
        %v2807 = vpop.f32.mrb[0].mxu0
        %v2808 = vadd.f32 0.0, %v2807
        %v2809 = vpop.f32.mrb[0].mxu0
        %2810 = vmatprep.mubr.bf16.mxu0 %v2633
        %2811 = vmatmul.mubr.bf16.gmra.mrb[0].mxu0 %v2461
        %v2812 = vpop.f32.mrb[0].mxu0
        %v2813 = vadd.f32 0.0, %v2812
        %v2814 = vpop.f32.mrb[0].mxu0
        %v2815 = vpop.f32.mrb[0].mxu0
        %v2816 = vadd.f32 0.0, %v2815
        %v2817 = vpop.f32.mrb[0].mxu0
        %2818 = vmatprep.mubr.bf16.mxu0 %v2636
        %2819 = vmatmul.mubr.bf16.gmra.mrb[0].mxu0 %v2463
        %v2820 = vpop.f32.mrb[0].mxu0
        %v2821 = vadd.f32 0.0, %v2820
        %v2822 = vpop.f32.mrb[0].mxu0
        %v2823 = vpop.f32.mrb[0].mxu0
        %v2824 = vadd.f32 0.0, %v2823
        %v2825 = vpop.f32.mrb[0].mxu0
        %2826 = vmatprep.mubr.bf16.mxu0 %v2639
        %2827 = vmatmul.mubr.bf16.gmra.mrb[0].mxu0 %v2465
        %v2828 = vpop.f32.mrb[0].mxu0
        %v2829 = vadd.f32 0.0, %v2828
        %v2830 = vpop.f32.mrb[0].mxu0
        %v2831 = vpop.f32.mrb[0].mxu0
        %v2832 = vadd.f32 0.0, %v2831
        %v2833 = vpop.f32.mrb[0].mxu0
        %2834 = vmatprep.mubr.bf16.mxu0 %v2642
        %2835 = vmatmul.mubr.bf16.gmra.mrb[0].mxu0 %v2467
        %v2836 = vpop.f32.mrb[0].mxu0
        %v2837 = vadd.f32 0.0, %v2836
        %v2838 = vpop.f32.mrb[0].mxu0
        %v2839 = vpop.f32.mrb[0].mxu0
        %v2840 = vadd.f32 0.0, %v2839
        %v2841 = vpop.f32.mrb[0].mxu0
        %2842 = vmatprep.mubr.bf16.mxu0 %v2645
        %2843 = vmatmul.mubr.bf16.gmra.mrb[0].mxu0 %v2469
        %v2844 = vpop.f32.mrb[0].mxu0
        %v2845 = vadd.f32 0.0, %v2844
        %v2846 = vpop.f32.mrb[0].mxu0
        %v2847 = vpop.f32.mrb[0].mxu0
        %v2848 = vadd.f32 0.0, %v2847
        %v2849 = vpop.f32.mrb[0].mxu0
        %2850 = vmatprep.mubr.bf16.mxu0 %v2648
        %2851 = vmatmul.mubr.bf16.gmra.mrb[0].mxu0 %v2471
        %v2852 = vpop.f32.mrb[0].mxu0
        %v2853 = vadd.f32 0.0, %v2852
        %v2854 = vpop.f32.mrb[0].mxu0
        %v2855 = vpop.f32.mrb[0].mxu0
        %v2856 = vadd.f32 0.0, %v2855
        %v2857 = vpop.f32.mrb[0].mxu0
        %2858 = vmatprep.mubr.bf16.mxu0 %v2651
        %2859 = vmatmul.mubr.bf16.gmra.mrb[0].mxu0 %v2473
        %v2860 = vpop.f32.mrb[0].mxu0
        %v2861 = vadd.f32 0.0, %v2860
        %v2862 = vpop.f32.mrb[0].mxu0
        %v2863 = vpop.f32.mrb[0].mxu0
        %v2864 = vadd.f32 0.0, %v2863
        %v2865 = vpop.f32.mrb[0].mxu0
        %2866 = vmatprep.mubr.bf16.mxu0 %v2654
        %2867 = vmatmul.mubr.bf16.gmra.mrb[0].mxu0 %v2475
        %v2868 = vpop.f32.mrb[0].mxu0
        %v2869 = vadd.f32 0.0, %v2868
        %v2870 = vpop.f32.mrb[0].mxu0
        %v2871 = vpop.f32.mrb[0].mxu0
        %v2872 = vadd.f32 0.0, %v2871
        %v2873 = vpop.f32.mrb[0].mxu0
        %2874 = vmatprep.mubr.bf16.mxu0 %v2657
        %2875 = vmatmul.mubr.bf16.gmra.mrb[0].mxu0 %v2477
        %v2876 = vpop.f32.mrb[0].mxu0
        %v2877 = vadd.f32 0.0, %v2876
        %v2878 = vpop.f32.mrb[0].mxu0
        %v2879 = vpop.f32.mrb[0].mxu0
        %v2880 = vadd.f32 0.0, %v2879
        %v2881 = vpop.f32.mrb[0].mxu0
        %2882 = vmatprep.mubr.bf16.mxu0 %v2660
        %2883 = vmatmul.mubr.bf16.gmra.mrb[0].mxu0 %v2479
        %v2884 = vpop.f32.mrb[0].mxu0
        %v2885 = vadd.f32 0.0, %v2884
        %v2886 = vpop.f32.mrb[0].mxu0
        %v2887 = vpop.f32.mrb[0].mxu0
        %v2888 = vadd.f32 0.0, %v2887
        %v2889 = vpop.f32.mrb[0].mxu0
        %2890 = vmatprep.mubr.bf16.mxu0 %v2663
        %2891 = vmatmul.mubr.bf16.gmra.mrb[0].mxu0 %v2481
        %v2892 = vpop.f32.mrb[0].mxu0
        %v2893 = vadd.f32 0.0, %v2892
        %v2894 = vpop.f32.mrb[0].mxu0
        %v2895 = vpop.f32.mrb[0].mxu0
        %v2896 = vadd.f32 0.0, %v2895
        %v2897 = vpop.f32.mrb[0].mxu0
        %2898 = vmatprep.mubr.bf16.mxu0 %v2666
        %2899 = vmatmul.mubr.bf16.gmra.mrb[0].mxu0 %v2483
        %v2900 = vpop.f32.mrb[0].mxu0
        %v2901 = vadd.f32 0.0, %v2900
        %v2902 = vpop.f32.mrb[0].mxu0
        %v2903 = vpop.f32.mrb[0].mxu0
        %v2904 = vadd.f32 0.0, %v2903
        %v2905 = vpop.f32.mrb[0].mxu0
        %2906 = vmatprep.mubr.bf16.mxu0 %v2669
        %2907 = vmatmul.mubr.bf16.gmra.mrb[0].mxu0 %v2485
        %v2908 = vpop.f32.mrb[0].mxu0
        %v2909 = vadd.f32 0.0, %v2908
        %v2910 = vpop.f32.mrb[0].mxu0
        %v2911 = vpop.f32.mrb[0].mxu0
        %v2912 = vadd.f32 0.0, %v2911
        %v2913 = vpop.f32.mrb[0].mxu0
        %2914 = vmatprep.mubr.bf16.mxu0 %v2672
        %2915 = vmatmul.mubr.bf16.gmra.mrb[0].mxu0 %v2487
        %v2916 = vpop.f32.mrb[0].mxu0
        %v2917 = vadd.f32 0.0, %v2916
        %v2918 = vpop.f32.mrb[0].mxu0
        %v2919 = vpop.f32.mrb[0].mxu0
        %v2920 = vadd.f32 0.0, %v2919
        %v2921 = vpop.f32.mrb[0].mxu0
        %2922 = vmatprep.mubr.bf16.mxu0 %v2675
        %2923 = vmatmul.mubr.bf16.gmra.mrb[0].mxu0 %v2489
        %v2924 = vpop.f32.mrb[0].mxu0
        %v2925 = vadd.f32 0.0, %v2924
        %v2926 = vpop.f32.mrb[0].mxu0
        %v2927 = vpop.f32.mrb[0].mxu0
        %v2928 = vadd.f32 0.0, %v2927
        %v2929 = vpop.f32.mrb[0].mxu0
        %2930 = vmatprep.mubr.bf16.mxu0 %v2678
        %2931 = vmatmul.mubr.bf16.gmra.mrb[0].mxu0 %v2491
        %v2932 = vpop.f32.mrb[0].mxu0
        %v2933 = vadd.f32 0.0, %v2932
        %v2934 = vpop.f32.mrb[0].mxu0
        %v2935 = vpop.f32.mrb[0].mxu0
        %v2936 = vadd.f32 0.0, %v2935
        %v2937 = vpop.f32.mrb[0].mxu0
        %2938 = vmatprep.mubr.bf16.mxu0 %v2681
        %2939 = vmatmul.mubr.bf16.gmra.mrb[0].mxu0 %v2493
        %v2940 = vpop.f32.mrb[0].mxu0
        %v2941 = vadd.f32 0.0, %v2940
        %v2942 = vpop.f32.mrb[0].mxu0
        %v2943 = vpop.f32.mrb[0].mxu0
        %v2944 = vadd.f32 0.0, %v2943
        %v2945 = vpop.f32.mrb[0].mxu0
        %2946 = vmatprep.mubr.bf16.mxu0 %v2684
        %2947 = vmatmul.mubr.bf16.gmra.mrb[0].mxu0 %v2495
        %v2948 = vpop.f32.mrb[0].mxu0
        %v2949 = vadd.f32 0.0, %v2948
        %v2950 = vpop.f32.mrb[0].mxu0
        %v2951 = vpop.f32.mrb[0].mxu0
        %v2952 = vadd.f32 0.0, %v2951
        %v2953 = vpop.f32.mrb[0].mxu0
        %2954 = vmatprep.mubr.bf16.mxu0 %v2687
        %2955 = vmatmul.mubr.bf16.gmra.mrb[0].mxu0 %v2497
        %v2956 = vpop.f32.mrb[0].mxu0
        %v2957 = vadd.f32 0.0, %v2956
        %v2958 = vpop.f32.mrb[0].mxu0
        %v2959 = vpop.f32.mrb[0].mxu0
        %v2960 = vadd.f32 0.0, %v2959
        %v2961 = vpop.f32.mrb[0].mxu0
        %2962 = vmatprep.mubr.bf16.mxu0 %v2690
        %2963 = vmatmul.mubr.bf16.gmra.mrb[0].mxu0 %v2499
        %v2964 = vpop.f32.mrb[0].mxu0
        %v2965 = vadd.f32 0.0, %v2964
        %v2966 = vpop.f32.mrb[0].mxu0
        %v2967 = vpop.f32.mrb[0].mxu0
        %v2968 = vadd.f32 0.0, %v2967
        %v2969 = vpop.f32.mrb[0].mxu0
        %2970 = vmatprep.mubr.bf16.mxu0 %v2693
        %2971 = vmatmul.mubr.bf16.gmra.mrb[0].mxu0 %v2501
        %v2972 = vpop.f32.mrb[0].mxu0
        %v2973 = vadd.f32 0.0, %v2972
        %v2974 = vpop.f32.mrb[0].mxu0
        %v2975 = vpop.f32.mrb[0].mxu0
        %v2976 = vadd.f32 0.0, %v2975
        %v2977 = vpop.f32.mrb[0].mxu0
        %2978 = vmatprep.mubr.bf16.mxu0 %v2696
        %2979 = vmatmul.mubr.bf16.gmra.mrb[0].mxu0 %v2503
        %v2980 = vpop.f32.mrb[0].mxu0
        %v2981 = vadd.f32 0.0, %v2980
        %v2982 = vpop.f32.mrb[0].mxu0
        %v2983 = vpop.f32.mrb[0].mxu0
        %v2984 = vadd.f32 0.0, %v2983
        %v2985 = vpop.f32.mrb[0].mxu0
        %2986 = vdwg.mxu0
        %v2987 = vld [vmem:[#allocation3] sm:$0xff]
        %v2988 = vld [vmem:[#allocation3 + $0x8] sm:$0xff]
        %v2989 = vld [vmem:[#allocation3 + $0x10] sm:$0xff]
        %v2990 = vld [vmem:[#allocation3 + $0x18] sm:$0xff]
        %v2991 = vld [vmem:[#allocation3 + $0x20] sm:$0xff]
        %v2992 = vld [vmem:[#allocation3 + $0x28] sm:$0xff]
        %v2993 = vld [vmem:[#allocation3 + $0x30] sm:$0xff]
        %v2994 = vld [vmem:[#allocation3 + $0x38] sm:$0xff]
        %v2995 = vld [vmem:[#allocation3 + $0x40] sm:$0xff]
        %v2996 = vld [vmem:[#allocation3 + $0x48] sm:$0xff]
        %v2997 = vld [vmem:[#allocation3 + $0x50] sm:$0xff]
        %v2998 = vld [vmem:[#allocation3 + $0x58] sm:$0xff]
        %v2999 = vld [vmem:[#allocation3 + $0x60] sm:$0xff]
        %v3000 = vld [vmem:[#allocation3 + $0x68] sm:$0xff]
        %v3001 = vld [vmem:[#allocation3 + $0x70] sm:$0xff]
        %v3002 = vld [vmem:[#allocation3 + $0x78] sm:$0xff]
        %v3003 = vld [vmem:[#allocation3 + $0x80] sm:$0xff]
        %v3004 = vld [vmem:[#allocation3 + $0x88] sm:$0xff]
        %v3005 = vld [vmem:[#allocation3 + $0x90] sm:$0xff]
        %v3006 = vld [vmem:[#allocation3 + $0x98] sm:$0xff]
        %v3007 = vld [vmem:[#allocation3 + $0xa0] sm:$0xff]
        %v3008 = vld [vmem:[#allocation3 + $0xa8] sm:$0xff]
        %v3009 = vld [vmem:[#allocation3 + $0xb0] sm:$0xff]
        %v3010 = vld [vmem:[#allocation3 + $0xb8] sm:$0xff]
        %v3011 = vld [vmem:[#allocation3 + $0xc0] sm:$0xff]
        %v3012 = vld [vmem:[#allocation3 + $0xc8] sm:$0xff]
        %v3013 = vld [vmem:[#allocation3 + $0xd0] sm:$0xff]
        %v3014 = vld [vmem:[#allocation3 + $0xd8] sm:$0xff]
        %v3015 = vld [vmem:[#allocation3 + $0xe0] sm:$0xff]
        %v3016 = vld [vmem:[#allocation3 + $0xe8] sm:$0xff]
        %v3017 = vld [vmem:[#allocation3 + $0xf0] sm:$0xff]
        %v3018 = vld [vmem:[#allocation3 + $0xf8] sm:$0xff]
        %v3019 = vld [vmem:[#allocation3 + $0x100] sm:$0xff]
        %v3020 = vld [vmem:[#allocation3 + $0x108] sm:$0xff]
        %v3021 = vld [vmem:[#allocation3 + $0x110] sm:$0xff]
        %v3022 = vld [vmem:[#allocation3 + $0x118] sm:$0xff]
        %v3023 = vld [vmem:[#allocation3 + $0x120] sm:$0xff]
        %v3024 = vld [vmem:[#allocation3 + $0x128] sm:$0xff]
        %v3025 = vld [vmem:[#allocation3 + $0x130] sm:$0xff]
        %v3026 = vld [vmem:[#allocation3 + $0x138] sm:$0xff]
        %v3027 = vld [vmem:[#allocation3 + $0x140] sm:$0xff]
        %v3028 = vld [vmem:[#allocation3 + $0x148] sm:$0xff]
        %v3029 = vld [vmem:[#allocation3 + $0x150] sm:$0xff]
        %v3030 = vld [vmem:[#allocation3 + $0x158] sm:$0xff]
        %v3031 = vld [vmem:[#allocation3 + $0x160] sm:$0xff]
        %v3032 = vld [vmem:[#allocation3 + $0x168] sm:$0xff]
        %v3033 = vld [vmem:[#allocation3 + $0x170] sm:$0xff]
        %v3034 = vld [vmem:[#allocation3 + $0x178] sm:$0xff]
        %v3035 = vld [vmem:[#allocation3 + $0x180] sm:$0xff]
        %v3036 = vld [vmem:[#allocation3 + $0x188] sm:$0xff]
        %v3037 = vld [vmem:[#allocation3 + $0x190] sm:$0xff]
        %v3038 = vld [vmem:[#allocation3 + $0x198] sm:$0xff]
        %v3039 = vld [vmem:[#allocation3 + $0x1a0] sm:$0xff]
        %v3040 = vld [vmem:[#allocation3 + $0x1a8] sm:$0xff]
        %v3041 = vld [vmem:[#allocation3 + $0x1b0] sm:$0xff]
        %v3042 = vld [vmem:[#allocation3 + $0x1b8] sm:$0xff]
        %v3043 = vld [vmem:[#allocation3 + $0x1c0] sm:$0xff]
        %v3044 = vld [vmem:[#allocation3 + $0x1c8] sm:$0xff]
        %v3045 = vld [vmem:[#allocation3 + $0x1d0] sm:$0xff]
        %v3046 = vld [vmem:[#allocation3 + $0x1d8] sm:$0xff]
        %v3047 = vld [vmem:[#allocation3 + $0x1e0] sm:$0xff]
        %v3048 = vld [vmem:[#allocation3 + $0x1e8] sm:$0xff]
        %v3049 = vld [vmem:[#allocation3 + $0x1f0] sm:$0xff]
        %v3050 = vld [vmem:[#allocation3 + $0x1f8] sm:$0xff]
        %v3051 = vadd.f32 %v2987, %v2733
        %v3052 = vadd.f32 %v2988, %v2736
        %v3053 = vadd.f32 %v2989, %v2741
        %v3054 = vadd.f32 %v2990, %v2744
        %v3055 = vadd.f32 %v2991, %v2749
        %v3056 = vadd.f32 %v2992, %v2752
        %v3057 = vadd.f32 %v2993, %v2757
        %v3058 = vadd.f32 %v2994, %v2760
        %v3059 = vadd.f32 %v2995, %v2765
        %v3060 = vadd.f32 %v2996, %v2768
        %v3061 = vadd.f32 %v2997, %v2773
        %v3062 = vadd.f32 %v2998, %v2776
        %v3063 = vadd.f32 %v2999, %v2781
        %v3064 = vadd.f32 %v3000, %v2784
        %v3065 = vadd.f32 %v3001, %v2789
        %v3066 = vadd.f32 %v3002, %v2792
        %v3067 = vadd.f32 %v3003, %v2797
        %v3068 = vadd.f32 %v3004, %v2800
        %v3069 = vadd.f32 %v3005, %v2805
        %v3070 = vadd.f32 %v3006, %v2808
        %v3071 = vadd.f32 %v3007, %v2813
        %v3072 = vadd.f32 %v3008, %v2816
        %v3073 = vadd.f32 %v3009, %v2821
        %v3074 = vadd.f32 %v3010, %v2824
        %v3075 = vadd.f32 %v3011, %v2829
        %v3076 = vadd.f32 %v3012, %v2832
        %v3077 = vadd.f32 %v3013, %v2837
        %v3078 = vadd.f32 %v3014, %v2840
        %v3079 = vadd.f32 %v3015, %v2845
        %v3080 = vadd.f32 %v3016, %v2848
        %v3081 = vadd.f32 %v3017, %v2853
        %v3082 = vadd.f32 %v3018, %v2856
        %v3083 = vadd.f32 %v3019, %v2861
        %v3084 = vadd.f32 %v3020, %v2864
        %v3085 = vadd.f32 %v3021, %v2869
        %v3086 = vadd.f32 %v3022, %v2872
        %v3087 = vadd.f32 %v3023, %v2877
        %v3088 = vadd.f32 %v3024, %v2880
        %v3089 = vadd.f32 %v3025, %v2885
        %v3090 = vadd.f32 %v3026, %v2888
        %v3091 = vadd.f32 %v3027, %v2893
        %v3092 = vadd.f32 %v3028, %v2896
        %v3093 = vadd.f32 %v3029, %v2901
        %v3094 = vadd.f32 %v3030, %v2904
        %v3095 = vadd.f32 %v3031, %v2909
        %v3096 = vadd.f32 %v3032, %v2912
        %v3097 = vadd.f32 %v3033, %v2917
        %v3098 = vadd.f32 %v3034, %v2920
        %v3099 = vadd.f32 %v3035, %v2925
        %v3100 = vadd.f32 %v3036, %v2928
        %v3101 = vadd.f32 %v3037, %v2933
        %v3102 = vadd.f32 %v3038, %v2936
        %v3103 = vadd.f32 %v3039, %v2941
        %v3104 = vadd.f32 %v3040, %v2944
        %v3105 = vadd.f32 %v3041, %v2949
        %v3106 = vadd.f32 %v3042, %v2952
        %v3107 = vadd.f32 %v3043, %v2957
        %v3108 = vadd.f32 %v3044, %v2960
        %v3109 = vadd.f32 %v3045, %v2965
        %v3110 = vadd.f32 %v3046, %v2968
        %v3111 = vadd.f32 %v3047, %v2973
        %v3112 = vadd.f32 %v3048, %v2976
        %v3113 = vadd.f32 %v3049, %v2981
        %v3114 = vadd.f32 %v3050, %v2984
        %3115 = vst [vmem:[#allocation3] sm:$0xff] %v3051
        %3116 = vst [vmem:[#allocation3 + $0x8] sm:$0xff] %v3052
        %3117 = vst [vmem:[#allocation3 + $0x10] sm:$0xff] %v3053
        %3118 = vst [vmem:[#allocation3 + $0x18] sm:$0xff] %v3054
        %3119 = vst [vmem:[#allocation3 + $0x20] sm:$0xff] %v3055
        %3120 = vst [vmem:[#allocation3 + $0x28] sm:$0xff] %v3056
        %3121 = vst [vmem:[#allocation3 + $0x30] sm:$0xff] %v3057
        %3122 = vst [vmem:[#allocation3 + $0x38] sm:$0xff] %v3058
        %3123 = vst [vmem:[#allocation3 + $0x40] sm:$0xff] %v3059
        %3124 = vst [vmem:[#allocation3 + $0x48] sm:$0xff] %v3060
        %3125 = vst [vmem:[#allocation3 + $0x50] sm:$0xff] %v3061
        %3126 = vst [vmem:[#allocation3 + $0x58] sm:$0xff] %v3062
        %3127 = vst [vmem:[#allocation3 + $0x60] sm:$0xff] %v3063
        %3128 = vst [vmem:[#allocation3 + $0x68] sm:$0xff] %v3064
        %3129 = vst [vmem:[#allocation3 + $0x70] sm:$0xff] %v3065
        %3130 = vst [vmem:[#allocation3 + $0x78] sm:$0xff] %v3066
        %3131 = vst [vmem:[#allocation3 + $0x80] sm:$0xff] %v3067
        %3132 = vst [vmem:[#allocation3 + $0x88] sm:$0xff] %v3068
        %3133 = vst [vmem:[#allocation3 + $0x90] sm:$0xff] %v3069
        %3134 = vst [vmem:[#allocation3 + $0x98] sm:$0xff] %v3070
        %3135 = vst [vmem:[#allocation3 + $0xa0] sm:$0xff] %v3071
        %3136 = vst [vmem:[#allocation3 + $0xa8] sm:$0xff] %v3072
        %3137 = vst [vmem:[#allocation3 + $0xb0] sm:$0xff] %v3073
        %3138 = vst [vmem:[#allocation3 + $0xb8] sm:$0xff] %v3074
        %3139 = vst [vmem:[#allocation3 + $0xc0] sm:$0xff] %v3075
        %3140 = vst [vmem:[#allocation3 + $0xc8] sm:$0xff] %v3076
        %3141 = vst [vmem:[#allocation3 + $0xd0] sm:$0xff] %v3077
        %3142 = vst [vmem:[#allocation3 + $0xd8] sm:$0xff] %v3078
        %3143 = vst [vmem:[#allocation3 + $0xe0] sm:$0xff] %v3079
        %3144 = vst [vmem:[#allocation3 + $0xe8] sm:$0xff] %v3080
        %3145 = vst [vmem:[#allocation3 + $0xf0] sm:$0xff] %v3081
        %3146 = vst [vmem:[#allocation3 + $0xf8] sm:$0xff] %v3082
        %3147 = vst [vmem:[#allocation3 + $0x100] sm:$0xff] %v3083
        %3148 = vst [vmem:[#allocation3 + $0x108] sm:$0xff] %v3084
        %3149 = vst [vmem:[#allocation3 + $0x110] sm:$0xff] %v3085
        %3150 = vst [vmem:[#allocation3 + $0x118] sm:$0xff] %v3086
        %3151 = vst [vmem:[#allocation3 + $0x120] sm:$0xff] %v3087
        %3152 = vst [vmem:[#allocation3 + $0x128] sm:$0xff] %v3088
        %3153 = vst [vmem:[#allocation3 + $0x130] sm:$0xff] %v3089
        %3154 = vst [vmem:[#allocation3 + $0x138] sm:$0xff] %v3090
        %3155 = vst [vmem:[#allocation3 + $0x140] sm:$0xff] %v3091
        %3156 = vst [vmem:[#allocation3 + $0x148] sm:$0xff] %v3092
        %3157 = vst [vmem:[#allocation3 + $0x150] sm:$0xff] %v3093
        %3158 = vst [vmem:[#allocation3 + $0x158] sm:$0xff] %v3094
        %3159 = vst [vmem:[#allocation3 + $0x160] sm:$0xff] %v3095
        %3160 = vst [vmem:[#allocation3 + $0x168] sm:$0xff] %v3096
        %3161 = vst [vmem:[#allocation3 + $0x170] sm:$0xff] %v3097
        %3162 = vst [vmem:[#allocation3 + $0x178] sm:$0xff] %v3098
        %3163 = vst [vmem:[#allocation3 + $0x180] sm:$0xff] %v3099
        %3164 = vst [vmem:[#allocation3 + $0x188] sm:$0xff] %v3100
        %3165 = vst [vmem:[#allocation3 + $0x190] sm:$0xff] %v3101
        %3166 = vst [vmem:[#allocation3 + $0x198] sm:$0xff] %v3102
        %3167 = vst [vmem:[#allocation3 + $0x1a0] sm:$0xff] %v3103
        %3168 = vst [vmem:[#allocation3 + $0x1a8] sm:$0xff] %v3104
        %3169 = vst [vmem:[#allocation3 + $0x1b0] sm:$0xff] %v3105
        %3170 = vst [vmem:[#allocation3 + $0x1b8] sm:$0xff] %v3106
        %3171 = vst [vmem:[#allocation3 + $0x1c0] sm:$0xff] %v3107
        %3172 = vst [vmem:[#allocation3 + $0x1c8] sm:$0xff] %v3108
        %3173 = vst [vmem:[#allocation3 + $0x1d0] sm:$0xff] %v3109
        %3174 = vst [vmem:[#allocation3 + $0x1d8] sm:$0xff] %v3110
        %3175 = vst [vmem:[#allocation3 + $0x1e0] sm:$0xff] %v3111
        %3176 = vst [vmem:[#allocation3 + $0x1e8] sm:$0xff] %v3112
        %3177 = vst [vmem:[#allocation3 + $0x1f0] sm:$0xff] %v3113
        %3178 = vst [vmem:[#allocation3 + $0x1f8] sm:$0xff] %v3114
        %s3179 = scalar_lea.vmem [#allocation2], 64
        %v3180 = vld [vmem:[%s3179] sm:$0xff]
        %v3181 = vld [vmem:[%s3179 + $0x8] sm:$0xff]
        %v3182 = vld [vmem:[%s3179 + $0x10] sm:$0xff]
        %v3183 = vld [vmem:[%s3179 + $0x18] sm:$0xff]
        %v3184 = vld [vmem:[%s3179 + $0x20] sm:$0xff]
        %v3185 = vld [vmem:[%s3179 + $0x28] sm:$0xff]
        %v3186 = vld [vmem:[%s3179 + $0x30] sm:$0xff]
        %v3187 = vld [vmem:[%s3179 + $0x38] sm:$0xff]
        %v3188 = vld [vmem:[%s3179 + $0x40] sm:$0xff]
        %v3189 = vld [vmem:[%s3179 + $0x48] sm:$0xff]
        %v3190 = vld [vmem:[%s3179 + $0x50] sm:$0xff]
        %v3191 = vld [vmem:[%s3179 + $0x58] sm:$0xff]
        %v3192 = vld [vmem:[%s3179 + $0x60] sm:$0xff]
        %v3193 = vld [vmem:[%s3179 + $0x68] sm:$0xff]
        %v3194 = vld [vmem:[%s3179 + $0x70] sm:$0xff]
        %v3195 = vld [vmem:[%s3179 + $0x78] sm:$0xff]
        %v3196 = vld [vmem:[%s3179 + $0x80] sm:$0xff]
        %v3197 = vld [vmem:[%s3179 + $0x88] sm:$0xff]
        %v3198 = vld [vmem:[%s3179 + $0x90] sm:$0xff]
        %v3199 = vld [vmem:[%s3179 + $0x98] sm:$0xff]
        %v3200 = vld [vmem:[%s3179 + $0xa0] sm:$0xff]
        %v3201 = vld [vmem:[%s3179 + $0xa8] sm:$0xff]
        %v3202 = vld [vmem:[%s3179 + $0xb0] sm:$0xff]
        %v3203 = vld [vmem:[%s3179 + $0xb8] sm:$0xff]
        %v3204 = vld [vmem:[%s3179 + $0xc0] sm:$0xff]
        %v3205 = vld [vmem:[%s3179 + $0xc8] sm:$0xff]
        %v3206 = vld [vmem:[%s3179 + $0xd0] sm:$0xff]
        %v3207 = vld [vmem:[%s3179 + $0xd8] sm:$0xff]
        %v3208 = vld [vmem:[%s3179 + $0xe0] sm:$0xff]
        %v3209 = vld [vmem:[%s3179 + $0xe8] sm:$0xff]
        %v3210 = vld [vmem:[%s3179 + $0xf0] sm:$0xff]
        %v3211 = vld [vmem:[%s3179 + $0xf8] sm:$0xff]
        %v3212 = vld [vmem:[%s3179 + $0x100] sm:$0xff]
        %v3213 = vld [vmem:[%s3179 + $0x108] sm:$0xff]
        %v3214 = vld [vmem:[%s3179 + $0x110] sm:$0xff]
        %v3215 = vld [vmem:[%s3179 + $0x118] sm:$0xff]
        %v3216 = vld [vmem:[%s3179 + $0x120] sm:$0xff]
        %v3217 = vld [vmem:[%s3179 + $0x128] sm:$0xff]
        %v3218 = vld [vmem:[%s3179 + $0x130] sm:$0xff]
        %v3219 = vld [vmem:[%s3179 + $0x138] sm:$0xff]
        %v3220 = vld [vmem:[%s3179 + $0x140] sm:$0xff]
        %v3221 = vld [vmem:[%s3179 + $0x148] sm:$0xff]
        %v3222 = vld [vmem:[%s3179 + $0x150] sm:$0xff]
        %v3223 = vld [vmem:[%s3179 + $0x158] sm:$0xff]
        %v3224 = vld [vmem:[%s3179 + $0x160] sm:$0xff]
        %v3225 = vld [vmem:[%s3179 + $0x168] sm:$0xff]
        %v3226 = vld [vmem:[%s3179 + $0x170] sm:$0xff]
        %v3227 = vld [vmem:[%s3179 + $0x178] sm:$0xff]
        %v3228 = vld [vmem:[%s3179 + $0x180] sm:$0xff]
        %v3229 = vld [vmem:[%s3179 + $0x188] sm:$0xff]
        %v3230 = vld [vmem:[%s3179 + $0x190] sm:$0xff]
        %v3231 = vld [vmem:[%s3179 + $0x198] sm:$0xff]
        %v3232 = vld [vmem:[%s3179 + $0x1a0] sm:$0xff]
        %v3233 = vld [vmem:[%s3179 + $0x1a8] sm:$0xff]
        %v3234 = vld [vmem:[%s3179 + $0x1b0] sm:$0xff]
        %v3235 = vld [vmem:[%s3179 + $0x1b8] sm:$0xff]
        %v3236 = vld [vmem:[%s3179 + $0x1c0] sm:$0xff]
        %v3237 = vld [vmem:[%s3179 + $0x1c8] sm:$0xff]
        %v3238 = vld [vmem:[%s3179 + $0x1d0] sm:$0xff]
        %v3239 = vld [vmem:[%s3179 + $0x1d8] sm:$0xff]
        %v3240 = vld [vmem:[%s3179 + $0x1e0] sm:$0xff]
        %v3241 = vld [vmem:[%s3179 + $0x1e8] sm:$0xff]
        %v3242 = vld [vmem:[%s3179 + $0x1f0] sm:$0xff]
        %v3243 = vld [vmem:[%s3179 + $0x1f8] sm:$0xff]
        %s3244 = scalar_lea.vmem %s1, 192
        %v3245 = vld [vmem:[%s3244] sm:$0xf]
        %v3246 = vld [vmem:[%s3244 + $0x4] sm:$0xf]
        %v3247 = vld [vmem:[%s3244 + $0x8] sm:$0xf]
        %v3248 = vld [vmem:[%s3244 + $0xc] sm:$0xf]
        %v3249 = vld [vmem:[%s3244 + $0x10] sm:$0xf]
        %v3250 = vld [vmem:[%s3244 + $0x14] sm:$0xf]
        %v3251 = vld [vmem:[%s3244 + $0x18] sm:$0xf]
        %v3252 = vld [vmem:[%s3244 + $0x1c] sm:$0xf]
        %v3253 = vld [vmem:[%s3244 + $0x20] sm:$0xf]
        %v3254 = vld [vmem:[%s3244 + $0x24] sm:$0xf]
        %v3255 = vld [vmem:[%s3244 + $0x28] sm:$0xf]
        %v3256 = vld [vmem:[%s3244 + $0x2c] sm:$0xf]
        %v3257 = vld [vmem:[%s3244 + $0x30] sm:$0xf]
        %v3258 = vld [vmem:[%s3244 + $0x34] sm:$0xf]
        %v3259 = vld [vmem:[%s3244 + $0x38] sm:$0xf]
        %v3260 = vld [vmem:[%s3244 + $0x3c] sm:$0xf]
        %v3261 = vld [vmem:[%s3244 + $0x40] sm:$0xf]
        %v3262 = vld [vmem:[%s3244 + $0x44] sm:$0xf]
        %v3263 = vld [vmem:[%s3244 + $0x48] sm:$0xf]
        %v3264 = vld [vmem:[%s3244 + $0x4c] sm:$0xf]
        %v3265 = vld [vmem:[%s3244 + $0x50] sm:$0xf]
        %v3266 = vld [vmem:[%s3244 + $0x54] sm:$0xf]
        %v3267 = vld [vmem:[%s3244 + $0x58] sm:$0xf]
        %v3268 = vld [vmem:[%s3244 + $0x5c] sm:$0xf]
        %v3293 = vunpack.c.l.b16 %v3245
        %v3294 = vunpack.c.l.b16 %v3246
        %v3295 = vunpack.c.l.b16 %v3247
        %v3296 = vunpack.c.l.b16 %v3248
        %v3297 = vunpack.c.l.b16 %v3249
        %v3298 = vunpack.c.l.b16 %v3250
        %v3299 = vunpack.c.l.b16 %v3251
        %v3300 = vunpack.c.l.b16 %v3252
        %v3301 = vunpack.c.l.b16 %v3253
        %v3302 = vunpack.c.l.b16 %v3254
        %v3303 = vunpack.c.l.b16 %v3255
        %v3304 = vunpack.c.l.b16 %v3256
        %v3305 = vunpack.c.l.b16 %v3257
        %v3306 = vunpack.c.l.b16 %v3258
        %v3307 = vunpack.c.l.b16 %v3259
        %v3308 = vunpack.c.l.b16 %v3260
        %v3309 = vunpack.c.l.b16 %v3261
        %v3310 = vunpack.c.l.b16 %v3262
        %v3311 = vunpack.c.l.b16 %v3263
        %v3312 = vunpack.c.l.b16 %v3264
        %v3313 = vunpack.c.l.b16 %v3265
        %v3314 = vunpack.c.l.b16 %v3266
        %v3315 = vunpack.c.l.b16 %v3267
        %v3316 = vunpack.c.l.b16 %v3268
        %v3317 = vpack.c.b16 %v3294, %v3293
        %v3318 = vpack.c.b16 %v3296, %v3295
        %v3319 = vpack.c.b16 %v3298, %v3297
        %v3320 = vpack.c.b16 %v3300, %v3299
        %v3321 = vpack.c.b16 %v3302, %v3301
        %v3322 = vpack.c.b16 %v3304, %v3303
        %v3323 = vpack.c.b16 %v3306, %v3305
        %v3324 = vpack.c.b16 %v3308, %v3307
        %v3325 = vpack.c.b16 %v3310, %v3309
        %v3326 = vpack.c.b16 %v3312, %v3311
        %v3327 = vpack.c.b16 %v3314, %v3313
        %v3328 = vpack.c.b16 %v3316, %v3315
        %v3342 = vsel %vm477, %v3181, 0
        %v3345 = vsel %vm477, %v3183, 0
        %v3348 = vsel %vm477, %v3185, 0
        %v3351 = vsel %vm477, %v3187, 0
        %v3354 = vsel %vm477, %v3189, 0
        %v3357 = vsel %vm477, %v3191, 0
        %v3360 = vsel %vm477, %v3193, 0
        %v3363 = vsel %vm477, %v3195, 0
        %v3366 = vsel %vm477, %v3197, 0
        %v3369 = vsel %vm477, %v3199, 0
        %v3372 = vsel %vm477, %v3201, 0
        %v3375 = vsel %vm477, %v3203, 0
        %v3378 = vsel %vm477, %v3205, 0
        %v3381 = vsel %vm477, %v3207, 0
        %v3384 = vsel %vm477, %v3209, 0
        %v3387 = vsel %vm477, %v3211, 0
        %v3390 = vsel %vm477, %v3213, 0
        %v3393 = vsel %vm477, %v3215, 0
        %v3396 = vsel %vm477, %v3217, 0
        %v3399 = vsel %vm477, %v3219, 0
        %v3402 = vsel %vm477, %v3221, 0
        %v3405 = vsel %vm477, %v3223, 0
        %v3408 = vsel %vm477, %v3225, 0
        %v3411 = vsel %vm477, %v3227, 0
        %v3414 = vsel %vm477, %v3229, 0
        %v3417 = vsel %vm477, %v3231, 0
        %v3420 = vsel %vm477, %v3233, 0
        %v3423 = vsel %vm477, %v3235, 0
        %v3426 = vsel %vm477, %v3237, 0
        %v3429 = vsel %vm477, %v3239, 0
        %v3432 = vsel %vm477, %v3241, 0
        %v3435 = vsel %vm477, %v3243, 0
        %3437 = vmatprep.subr.bf16.mxu0 0
        %3438 = vmatpush1.bf16.msra.mxu0 %v3317
        %3439 = vmatprep.subr.bf16.mxu0 0
        %3440 = vmatpush1.bf16.msra.mxu0 %v3318
        %3441 = vmatprep.subr.bf16.mxu0 0
        %3442 = vmatpush1.bf16.msra.mxu0 %v3319
        %3443 = vmatprep.subr.bf16.mxu0 0
        %3444 = vmatpush1.bf16.msra.mxu0 %v3320
        %3445 = vmatprep.subr.bf16.mxu0 0
        %3446 = vmatpush1.bf16.msra.mxu0 %v3321
        %3447 = vmatprep.subr.bf16.mxu0 0
        %3448 = vmatpush1.bf16.msra.mxu0 %v3322
        %3449 = vmatprep.subr.bf16.mxu0 0
        %3450 = vmatpush1.bf16.msra.mxu0 %v3323
        %3451 = vmatprep.subr.bf16.mxu0 0
        %3452 = vmatpush1.bf16.msra.mxu0 %v3324
        %3453 = vmatprep.subr.bf16.mxu0 0
        %3454 = vmatpush1.bf16.msra.mxu0 %v3325
        %3455 = vmatprep.subr.bf16.mxu0 0
        %3456 = vmatpush1.bf16.msra.mxu0 %v3326
        %3457 = vmatprep.subr.bf16.mxu0 0
        %3458 = vmatpush1.bf16.msra.mxu0 %v3327
        %3459 = vmatprep.subr.bf16.mxu0 0
        %3460 = vmatpush1.bf16.msra.mxu0 %v3328
        %3461 = vmatprep.subr.bf16.mxu0 0
        %3462 = vmatpush1.bf16.msra.mxu0 0
        %3463 = vmatprep.subr.bf16.mxu0 0
        %3464 = vmatpush1.bf16.msra.mxu0 0
        %3465 = vmatprep.subr.bf16.mxu0 0
        %3466 = vmatpush1.bf16.msra.mxu0 0
        %3467 = vmatprep.subr.bf16.mxu0 0
        %3468 = vmatpush1.bf16.msra.mxu0 0
        %3469 = vmatprep.mubr.bf16.mxu0 %v3342
        %3470 = vmatmul.mubr.bf16.gmra.mrb[0].mxu0 %v3180
        %v3471 = vpop.f32.mrb[0].mxu0
        %v3472 = vadd.f32 0.0, %v3471
        %v3473 = vpop.f32.mrb[0].mxu0
        %v3474 = vpop.f32.mrb[0].mxu0
        %v3475 = vadd.f32 0.0, %v3474
        %v3476 = vpop.f32.mrb[0].mxu0
        %3477 = vmatprep.mubr.bf16.mxu0 %v3345
        %3478 = vmatmul.mubr.bf16.gmra.mrb[0].mxu0 %v3182
        %v3479 = vpop.f32.mrb[0].mxu0
        %v3480 = vadd.f32 0.0, %v3479
        %v3481 = vpop.f32.mrb[0].mxu0
        %v3482 = vpop.f32.mrb[0].mxu0
        %v3483 = vadd.f32 0.0, %v3482
        %v3484 = vpop.f32.mrb[0].mxu0
        %3485 = vmatprep.mubr.bf16.mxu0 %v3348
        %3486 = vmatmul.mubr.bf16.gmra.mrb[0].mxu0 %v3184
        %v3487 = vpop.f32.mrb[0].mxu0
        %v3488 = vadd.f32 0.0, %v3487
        %v3489 = vpop.f32.mrb[0].mxu0
        %v3490 = vpop.f32.mrb[0].mxu0
        %v3491 = vadd.f32 0.0, %v3490
        %v3492 = vpop.f32.mrb[0].mxu0
        %3493 = vmatprep.mubr.bf16.mxu0 %v3351
        %3494 = vmatmul.mubr.bf16.gmra.mrb[0].mxu0 %v3186
        %v3495 = vpop.f32.mrb[0].mxu0
        %v3496 = vadd.f32 0.0, %v3495
        %v3497 = vpop.f32.mrb[0].mxu0
        %v3498 = vpop.f32.mrb[0].mxu0
        %v3499 = vadd.f32 0.0, %v3498
        %v3500 = vpop.f32.mrb[0].mxu0
        %3501 = vmatprep.mubr.bf16.mxu0 %v3354
        %3502 = vmatmul.mubr.bf16.gmra.mrb[0].mxu0 %v3188
        %v3503 = vpop.f32.mrb[0].mxu0
        %v3504 = vadd.f32 0.0, %v3503
        %v3505 = vpop.f32.mrb[0].mxu0
        %v3506 = vpop.f32.mrb[0].mxu0
        %v3507 = vadd.f32 0.0, %v3506
        %v3508 = vpop.f32.mrb[0].mxu0
        %3509 = vmatprep.mubr.bf16.mxu0 %v3357
        %3510 = vmatmul.mubr.bf16.gmra.mrb[0].mxu0 %v3190
        %v3511 = vpop.f32.mrb[0].mxu0
        %v3512 = vadd.f32 0.0, %v3511
        %v3513 = vpop.f32.mrb[0].mxu0
        %v3514 = vpop.f32.mrb[0].mxu0
        %v3515 = vadd.f32 0.0, %v3514
        %v3516 = vpop.f32.mrb[0].mxu0
        %3517 = vmatprep.mubr.bf16.mxu0 %v3360
        %3518 = vmatmul.mubr.bf16.gmra.mrb[0].mxu0 %v3192
        %v3519 = vpop.f32.mrb[0].mxu0
        %v3520 = vadd.f32 0.0, %v3519
        %v3521 = vpop.f32.mrb[0].mxu0
        %v3522 = vpop.f32.mrb[0].mxu0
        %v3523 = vadd.f32 0.0, %v3522
        %v3524 = vpop.f32.mrb[0].mxu0
        %3525 = vmatprep.mubr.bf16.mxu0 %v3363
        %3526 = vmatmul.mubr.bf16.gmra.mrb[0].mxu0 %v3194
        %v3527 = vpop.f32.mrb[0].mxu0
        %v3528 = vadd.f32 0.0, %v3527
        %v3529 = vpop.f32.mrb[0].mxu0
        %v3530 = vpop.f32.mrb[0].mxu0
        %v3531 = vadd.f32 0.0, %v3530
        %v3532 = vpop.f32.mrb[0].mxu0
        %3533 = vmatprep.mubr.bf16.mxu0 %v3366
        %3534 = vmatmul.mubr.bf16.gmra.mrb[0].mxu0 %v3196
        %v3535 = vpop.f32.mrb[0].mxu0
        %v3536 = vadd.f32 0.0, %v3535
        %v3537 = vpop.f32.mrb[0].mxu0
        %v3538 = vpop.f32.mrb[0].mxu0
        %v3539 = vadd.f32 0.0, %v3538
        %v3540 = vpop.f32.mrb[0].mxu0
        %3541 = vmatprep.mubr.bf16.mxu0 %v3369
        %3542 = vmatmul.mubr.bf16.gmra.mrb[0].mxu0 %v3198
        %v3543 = vpop.f32.mrb[0].mxu0
        %v3544 = vadd.f32 0.0, %v3543
        %v3545 = vpop.f32.mrb[0].mxu0
        %v3546 = vpop.f32.mrb[0].mxu0
        %v3547 = vadd.f32 0.0, %v3546
        %v3548 = vpop.f32.mrb[0].mxu0
        %3549 = vmatprep.mubr.bf16.mxu0 %v3372
        %3550 = vmatmul.mubr.bf16.gmra.mrb[0].mxu0 %v3200
        %v3551 = vpop.f32.mrb[0].mxu0
        %v3552 = vadd.f32 0.0, %v3551
        %v3553 = vpop.f32.mrb[0].mxu0
        %v3554 = vpop.f32.mrb[0].mxu0
        %v3555 = vadd.f32 0.0, %v3554
        %v3556 = vpop.f32.mrb[0].mxu0
        %3557 = vmatprep.mubr.bf16.mxu0 %v3375
        %3558 = vmatmul.mubr.bf16.gmra.mrb[0].mxu0 %v3202
        %v3559 = vpop.f32.mrb[0].mxu0
        %v3560 = vadd.f32 0.0, %v3559
        %v3561 = vpop.f32.mrb[0].mxu0
        %v3562 = vpop.f32.mrb[0].mxu0
        %v3563 = vadd.f32 0.0, %v3562
        %v3564 = vpop.f32.mrb[0].mxu0
        %3565 = vmatprep.mubr.bf16.mxu0 %v3378
        %3566 = vmatmul.mubr.bf16.gmra.mrb[0].mxu0 %v3204
        %v3567 = vpop.f32.mrb[0].mxu0
        %v3568 = vadd.f32 0.0, %v3567
        %v3569 = vpop.f32.mrb[0].mxu0
        %v3570 = vpop.f32.mrb[0].mxu0
        %v3571 = vadd.f32 0.0, %v3570
        %v3572 = vpop.f32.mrb[0].mxu0
        %3573 = vmatprep.mubr.bf16.mxu0 %v3381
        %3574 = vmatmul.mubr.bf16.gmra.mrb[0].mxu0 %v3206
        %v3575 = vpop.f32.mrb[0].mxu0
        %v3576 = vadd.f32 0.0, %v3575
        %v3577 = vpop.f32.mrb[0].mxu0
        %v3578 = vpop.f32.mrb[0].mxu0
        %v3579 = vadd.f32 0.0, %v3578
        %v3580 = vpop.f32.mrb[0].mxu0
        %3581 = vmatprep.mubr.bf16.mxu0 %v3384
        %3582 = vmatmul.mubr.bf16.gmra.mrb[0].mxu0 %v3208
        %v3583 = vpop.f32.mrb[0].mxu0
        %v3584 = vadd.f32 0.0, %v3583
        %v3585 = vpop.f32.mrb[0].mxu0
        %v3586 = vpop.f32.mrb[0].mxu0
        %v3587 = vadd.f32 0.0, %v3586
        %v3588 = vpop.f32.mrb[0].mxu0
        %3589 = vmatprep.mubr.bf16.mxu0 %v3387
        %3590 = vmatmul.mubr.bf16.gmra.mrb[0].mxu0 %v3210
        %v3591 = vpop.f32.mrb[0].mxu0
        %v3592 = vadd.f32 0.0, %v3591
        %v3593 = vpop.f32.mrb[0].mxu0
        %v3594 = vpop.f32.mrb[0].mxu0
        %v3595 = vadd.f32 0.0, %v3594
        %v3596 = vpop.f32.mrb[0].mxu0
        %3597 = vmatprep.mubr.bf16.mxu0 %v3390
        %3598 = vmatmul.mubr.bf16.gmra.mrb[0].mxu0 %v3212
        %v3599 = vpop.f32.mrb[0].mxu0
        %v3600 = vadd.f32 0.0, %v3599
        %v3601 = vpop.f32.mrb[0].mxu0
        %v3602 = vpop.f32.mrb[0].mxu0
        %v3603 = vadd.f32 0.0, %v3602
        %v3604 = vpop.f32.mrb[0].mxu0
        %3605 = vmatprep.mubr.bf16.mxu0 %v3393
        %3606 = vmatmul.mubr.bf16.gmra.mrb[0].mxu0 %v3214
        %v3607 = vpop.f32.mrb[0].mxu0
        %v3608 = vadd.f32 0.0, %v3607
        %v3609 = vpop.f32.mrb[0].mxu0
        %v3610 = vpop.f32.mrb[0].mxu0
        %v3611 = vadd.f32 0.0, %v3610
        %v3612 = vpop.f32.mrb[0].mxu0
        %3613 = vmatprep.mubr.bf16.mxu0 %v3396
        %3614 = vmatmul.mubr.bf16.gmra.mrb[0].mxu0 %v3216
        %v3615 = vpop.f32.mrb[0].mxu0
        %v3616 = vadd.f32 0.0, %v3615
        %v3617 = vpop.f32.mrb[0].mxu0
        %v3618 = vpop.f32.mrb[0].mxu0
        %v3619 = vadd.f32 0.0, %v3618
        %v3620 = vpop.f32.mrb[0].mxu0
        %3621 = vmatprep.mubr.bf16.mxu0 %v3399
        %3622 = vmatmul.mubr.bf16.gmra.mrb[0].mxu0 %v3218
        %v3623 = vpop.f32.mrb[0].mxu0
        %v3624 = vadd.f32 0.0, %v3623
        %v3625 = vpop.f32.mrb[0].mxu0
        %v3626 = vpop.f32.mrb[0].mxu0
        %v3627 = vadd.f32 0.0, %v3626
        %v3628 = vpop.f32.mrb[0].mxu0
        %3629 = vmatprep.mubr.bf16.mxu0 %v3402
        %3630 = vmatmul.mubr.bf16.gmra.mrb[0].mxu0 %v3220
        %v3631 = vpop.f32.mrb[0].mxu0
        %v3632 = vadd.f32 0.0, %v3631
        %v3633 = vpop.f32.mrb[0].mxu0
        %v3634 = vpop.f32.mrb[0].mxu0
        %v3635 = vadd.f32 0.0, %v3634
        %v3636 = vpop.f32.mrb[0].mxu0
        %3637 = vmatprep.mubr.bf16.mxu0 %v3405
        %3638 = vmatmul.mubr.bf16.gmra.mrb[0].mxu0 %v3222
        %v3639 = vpop.f32.mrb[0].mxu0
        %v3640 = vadd.f32 0.0, %v3639
        %v3641 = vpop.f32.mrb[0].mxu0
        %v3642 = vpop.f32.mrb[0].mxu0
        %v3643 = vadd.f32 0.0, %v3642
        %v3644 = vpop.f32.mrb[0].mxu0
        %3645 = vmatprep.mubr.bf16.mxu0 %v3408
        %3646 = vmatmul.mubr.bf16.gmra.mrb[0].mxu0 %v3224
        %v3647 = vpop.f32.mrb[0].mxu0
        %v3648 = vadd.f32 0.0, %v3647
        %v3649 = vpop.f32.mrb[0].mxu0
        %v3650 = vpop.f32.mrb[0].mxu0
        %v3651 = vadd.f32 0.0, %v3650
        %v3652 = vpop.f32.mrb[0].mxu0
        %3653 = vmatprep.mubr.bf16.mxu0 %v3411
        %3654 = vmatmul.mubr.bf16.gmra.mrb[0].mxu0 %v3226
        %v3655 = vpop.f32.mrb[0].mxu0
        %v3656 = vadd.f32 0.0, %v3655
        %v3657 = vpop.f32.mrb[0].mxu0
        %v3658 = vpop.f32.mrb[0].mxu0
        %v3659 = vadd.f32 0.0, %v3658
        %v3660 = vpop.f32.mrb[0].mxu0
        %3661 = vmatprep.mubr.bf16.mxu0 %v3414
        %3662 = vmatmul.mubr.bf16.gmra.mrb[0].mxu0 %v3228
        %v3663 = vpop.f32.mrb[0].mxu0
        %v3664 = vadd.f32 0.0, %v3663
        %v3665 = vpop.f32.mrb[0].mxu0
        %v3666 = vpop.f32.mrb[0].mxu0
        %v3667 = vadd.f32 0.0, %v3666
        %v3668 = vpop.f32.mrb[0].mxu0
        %3669 = vmatprep.mubr.bf16.mxu0 %v3417
        %3670 = vmatmul.mubr.bf16.gmra.mrb[0].mxu0 %v3230
        %v3671 = vpop.f32.mrb[0].mxu0
        %v3672 = vadd.f32 0.0, %v3671
        %v3673 = vpop.f32.mrb[0].mxu0
        %v3674 = vpop.f32.mrb[0].mxu0
        %v3675 = vadd.f32 0.0, %v3674
        %v3676 = vpop.f32.mrb[0].mxu0
        %3677 = vmatprep.mubr.bf16.mxu0 %v3420
        %3678 = vmatmul.mubr.bf16.gmra.mrb[0].mxu0 %v3232
        %v3679 = vpop.f32.mrb[0].mxu0
        %v3680 = vadd.f32 0.0, %v3679
        %v3681 = vpop.f32.mrb[0].mxu0
        %v3682 = vpop.f32.mrb[0].mxu0
        %v3683 = vadd.f32 0.0, %v3682
        %v3684 = vpop.f32.mrb[0].mxu0
        %3685 = vmatprep.mubr.bf16.mxu0 %v3423
        %3686 = vmatmul.mubr.bf16.gmra.mrb[0].mxu0 %v3234
        %v3687 = vpop.f32.mrb[0].mxu0
        %v3688 = vadd.f32 0.0, %v3687
        %v3689 = vpop.f32.mrb[0].mxu0
        %v3690 = vpop.f32.mrb[0].mxu0
        %v3691 = vadd.f32 0.0, %v3690
        %v3692 = vpop.f32.mrb[0].mxu0
        %3693 = vmatprep.mubr.bf16.mxu0 %v3426
        %3694 = vmatmul.mubr.bf16.gmra.mrb[0].mxu0 %v3236
        %v3695 = vpop.f32.mrb[0].mxu0
        %v3696 = vadd.f32 0.0, %v3695
        %v3697 = vpop.f32.mrb[0].mxu0
        %v3698 = vpop.f32.mrb[0].mxu0
        %v3699 = vadd.f32 0.0, %v3698
        %v3700 = vpop.f32.mrb[0].mxu0
        %3701 = vmatprep.mubr.bf16.mxu0 %v3429
        %3702 = vmatmul.mubr.bf16.gmra.mrb[0].mxu0 %v3238
        %v3703 = vpop.f32.mrb[0].mxu0
        %v3704 = vadd.f32 0.0, %v3703
        %v3705 = vpop.f32.mrb[0].mxu0
        %v3706 = vpop.f32.mrb[0].mxu0
        %v3707 = vadd.f32 0.0, %v3706
        %v3708 = vpop.f32.mrb[0].mxu0
        %3709 = vmatprep.mubr.bf16.mxu0 %v3432
        %3710 = vmatmul.mubr.bf16.gmra.mrb[0].mxu0 %v3240
        %v3711 = vpop.f32.mrb[0].mxu0
        %v3712 = vadd.f32 0.0, %v3711
        %v3713 = vpop.f32.mrb[0].mxu0
        %v3714 = vpop.f32.mrb[0].mxu0
        %v3715 = vadd.f32 0.0, %v3714
        %v3716 = vpop.f32.mrb[0].mxu0
        %3717 = vmatprep.mubr.bf16.mxu0 %v3435
        %3718 = vmatmul.mubr.bf16.gmra.mrb[0].mxu0 %v3242
        %v3719 = vpop.f32.mrb[0].mxu0
        %v3720 = vadd.f32 0.0, %v3719
        %v3721 = vpop.f32.mrb[0].mxu0
        %v3722 = vpop.f32.mrb[0].mxu0
        %v3723 = vadd.f32 0.0, %v3722
        %v3724 = vpop.f32.mrb[0].mxu0
        %3725 = vdwg.mxu0
        %v3726 = vld [vmem:[#allocation3] sm:$0xff]
        %v3727 = vld [vmem:[#allocation3 + $0x8] sm:$0xff]
        %v3728 = vld [vmem:[#allocation3 + $0x10] sm:$0xff]
        %v3729 = vld [vmem:[#allocation3 + $0x18] sm:$0xff]
        %v3730 = vld [vmem:[#allocation3 + $0x20] sm:$0xff]
        %v3731 = vld [vmem:[#allocation3 + $0x28] sm:$0xff]
        %v3732 = vld [vmem:[#allocation3 + $0x30] sm:$0xff]
        %v3733 = vld [vmem:[#allocation3 + $0x38] sm:$0xff]
        %v3734 = vld [vmem:[#allocation3 + $0x40] sm:$0xff]
        %v3735 = vld [vmem:[#allocation3 + $0x48] sm:$0xff]
        %v3736 = vld [vmem:[#allocation3 + $0x50] sm:$0xff]
        %v3737 = vld [vmem:[#allocation3 + $0x58] sm:$0xff]
        %v3738 = vld [vmem:[#allocation3 + $0x60] sm:$0xff]
        %v3739 = vld [vmem:[#allocation3 + $0x68] sm:$0xff]
        %v3740 = vld [vmem:[#allocation3 + $0x70] sm:$0xff]
        %v3741 = vld [vmem:[#allocation3 + $0x78] sm:$0xff]
        %v3742 = vld [vmem:[#allocation3 + $0x80] sm:$0xff]
        %v3743 = vld [vmem:[#allocation3 + $0x88] sm:$0xff]
        %v3744 = vld [vmem:[#allocation3 + $0x90] sm:$0xff]
        %v3745 = vld [vmem:[#allocation3 + $0x98] sm:$0xff]
        %v3746 = vld [vmem:[#allocation3 + $0xa0] sm:$0xff]
        %v3747 = vld [vmem:[#allocation3 + $0xa8] sm:$0xff]
        %v3748 = vld [vmem:[#allocation3 + $0xb0] sm:$0xff]
        %v3749 = vld [vmem:[#allocation3 + $0xb8] sm:$0xff]
        %v3750 = vld [vmem:[#allocation3 + $0xc0] sm:$0xff]
        %v3751 = vld [vmem:[#allocation3 + $0xc8] sm:$0xff]
        %v3752 = vld [vmem:[#allocation3 + $0xd0] sm:$0xff]
        %v3753 = vld [vmem:[#allocation3 + $0xd8] sm:$0xff]
        %v3754 = vld [vmem:[#allocation3 + $0xe0] sm:$0xff]
        %v3755 = vld [vmem:[#allocation3 + $0xe8] sm:$0xff]
        %v3756 = vld [vmem:[#allocation3 + $0xf0] sm:$0xff]
        %v3757 = vld [vmem:[#allocation3 + $0xf8] sm:$0xff]
        %v3758 = vld [vmem:[#allocation3 + $0x100] sm:$0xff]
        %v3759 = vld [vmem:[#allocation3 + $0x108] sm:$0xff]
        %v3760 = vld [vmem:[#allocation3 + $0x110] sm:$0xff]
        %v3761 = vld [vmem:[#allocation3 + $0x118] sm:$0xff]
        %v3762 = vld [vmem:[#allocation3 + $0x120] sm:$0xff]
        %v3763 = vld [vmem:[#allocation3 + $0x128] sm:$0xff]
        %v3764 = vld [vmem:[#allocation3 + $0x130] sm:$0xff]
        %v3765 = vld [vmem:[#allocation3 + $0x138] sm:$0xff]
        %v3766 = vld [vmem:[#allocation3 + $0x140] sm:$0xff]
        %v3767 = vld [vmem:[#allocation3 + $0x148] sm:$0xff]
        %v3768 = vld [vmem:[#allocation3 + $0x150] sm:$0xff]
        %v3769 = vld [vmem:[#allocation3 + $0x158] sm:$0xff]
        %v3770 = vld [vmem:[#allocation3 + $0x160] sm:$0xff]
        %v3771 = vld [vmem:[#allocation3 + $0x168] sm:$0xff]
        %v3772 = vld [vmem:[#allocation3 + $0x170] sm:$0xff]
        %v3773 = vld [vmem:[#allocation3 + $0x178] sm:$0xff]
        %v3774 = vld [vmem:[#allocation3 + $0x180] sm:$0xff]
        %v3775 = vld [vmem:[#allocation3 + $0x188] sm:$0xff]
        %v3776 = vld [vmem:[#allocation3 + $0x190] sm:$0xff]
        %v3777 = vld [vmem:[#allocation3 + $0x198] sm:$0xff]
        %v3778 = vld [vmem:[#allocation3 + $0x1a0] sm:$0xff]
        %v3779 = vld [vmem:[#allocation3 + $0x1a8] sm:$0xff]
        %v3780 = vld [vmem:[#allocation3 + $0x1b0] sm:$0xff]
        %v3781 = vld [vmem:[#allocation3 + $0x1b8] sm:$0xff]
        %v3782 = vld [vmem:[#allocation3 + $0x1c0] sm:$0xff]
        %v3783 = vld [vmem:[#allocation3 + $0x1c8] sm:$0xff]
        %v3784 = vld [vmem:[#allocation3 + $0x1d0] sm:$0xff]
        %v3785 = vld [vmem:[#allocation3 + $0x1d8] sm:$0xff]
        %v3786 = vld [vmem:[#allocation3 + $0x1e0] sm:$0xff]
        %v3787 = vld [vmem:[#allocation3 + $0x1e8] sm:$0xff]
        %v3788 = vld [vmem:[#allocation3 + $0x1f0] sm:$0xff]
        %v3789 = vld [vmem:[#allocation3 + $0x1f8] sm:$0xff]
        %v3790 = vadd.f32 %v3726, %v3472
        %v3791 = vadd.f32 %v3727, %v3475
        %v3792 = vadd.f32 %v3728, %v3480
        %v3793 = vadd.f32 %v3729, %v3483
        %v3794 = vadd.f32 %v3730, %v3488
        %v3795 = vadd.f32 %v3731, %v3491
        %v3796 = vadd.f32 %v3732, %v3496
        %v3797 = vadd.f32 %v3733, %v3499
        %v3798 = vadd.f32 %v3734, %v3504
        %v3799 = vadd.f32 %v3735, %v3507
        %v3800 = vadd.f32 %v3736, %v3512
        %v3801 = vadd.f32 %v3737, %v3515
        %v3802 = vadd.f32 %v3738, %v3520
        %v3803 = vadd.f32 %v3739, %v3523
        %v3804 = vadd.f32 %v3740, %v3528
        %v3805 = vadd.f32 %v3741, %v3531
        %v3806 = vadd.f32 %v3742, %v3536
        %v3807 = vadd.f32 %v3743, %v3539
        %v3808 = vadd.f32 %v3744, %v3544
        %v3809 = vadd.f32 %v3745, %v3547
        %v3810 = vadd.f32 %v3746, %v3552
        %v3811 = vadd.f32 %v3747, %v3555
        %v3812 = vadd.f32 %v3748, %v3560
        %v3813 = vadd.f32 %v3749, %v3563
        %v3814 = vadd.f32 %v3750, %v3568
        %v3815 = vadd.f32 %v3751, %v3571
        %v3816 = vadd.f32 %v3752, %v3576
        %v3817 = vadd.f32 %v3753, %v3579
        %v3818 = vadd.f32 %v3754, %v3584
        %v3819 = vadd.f32 %v3755, %v3587
        %v3820 = vadd.f32 %v3756, %v3592
        %v3821 = vadd.f32 %v3757, %v3595
        %v3822 = vadd.f32 %v3758, %v3600
        %v3823 = vadd.f32 %v3759, %v3603
        %v3824 = vadd.f32 %v3760, %v3608
        %v3825 = vadd.f32 %v3761, %v3611
        %v3826 = vadd.f32 %v3762, %v3616
        %v3827 = vadd.f32 %v3763, %v3619
        %v3828 = vadd.f32 %v3764, %v3624
        %v3829 = vadd.f32 %v3765, %v3627
        %v3830 = vadd.f32 %v3766, %v3632
        %v3831 = vadd.f32 %v3767, %v3635
        %v3832 = vadd.f32 %v3768, %v3640
        %v3833 = vadd.f32 %v3769, %v3643
        %v3834 = vadd.f32 %v3770, %v3648
        %v3835 = vadd.f32 %v3771, %v3651
        %v3836 = vadd.f32 %v3772, %v3656
        %v3837 = vadd.f32 %v3773, %v3659
        %v3838 = vadd.f32 %v3774, %v3664
        %v3839 = vadd.f32 %v3775, %v3667
        %v3840 = vadd.f32 %v3776, %v3672
        %v3841 = vadd.f32 %v3777, %v3675
        %v3842 = vadd.f32 %v3778, %v3680
        %v3843 = vadd.f32 %v3779, %v3683
        %v3844 = vadd.f32 %v3780, %v3688
        %v3845 = vadd.f32 %v3781, %v3691
        %v3846 = vadd.f32 %v3782, %v3696
        %v3847 = vadd.f32 %v3783, %v3699
        %v3848 = vadd.f32 %v3784, %v3704
        %v3849 = vadd.f32 %v3785, %v3707
        %v3850 = vadd.f32 %v3786, %v3712
        %v3851 = vadd.f32 %v3787, %v3715
        %v3852 = vadd.f32 %v3788, %v3720
        %v3853 = vadd.f32 %v3789, %v3723
        %3854 = vst [vmem:[#allocation3] sm:$0xff] %v3790
        %3855 = vst [vmem:[#allocation3 + $0x8] sm:$0xff] %v3791
        %3856 = vst [vmem:[#allocation3 + $0x10] sm:$0xff] %v3792
        %3857 = vst [vmem:[#allocation3 + $0x18] sm:$0xff] %v3793
        %3858 = vst [vmem:[#allocation3 + $0x20] sm:$0xff] %v3794
        %3859 = vst [vmem:[#allocation3 + $0x28] sm:$0xff] %v3795
        %3860 = vst [vmem:[#allocation3 + $0x30] sm:$0xff] %v3796
        %3861 = vst [vmem:[#allocation3 + $0x38] sm:$0xff] %v3797
        %3862 = vst [vmem:[#allocation3 + $0x40] sm:$0xff] %v3798
        %3863 = vst [vmem:[#allocation3 + $0x48] sm:$0xff] %v3799
        %3864 = vst [vmem:[#allocation3 + $0x50] sm:$0xff] %v3800
        %3865 = vst [vmem:[#allocation3 + $0x58] sm:$0xff] %v3801
        %3866 = vst [vmem:[#allocation3 + $0x60] sm:$0xff] %v3802
        %3867 = vst [vmem:[#allocation3 + $0x68] sm:$0xff] %v3803
        %3868 = vst [vmem:[#allocation3 + $0x70] sm:$0xff] %v3804
        %3869 = vst [vmem:[#allocation3 + $0x78] sm:$0xff] %v3805
        %3870 = vst [vmem:[#allocation3 + $0x80] sm:$0xff] %v3806
        %3871 = vst [vmem:[#allocation3 + $0x88] sm:$0xff] %v3807
        %3872 = vst [vmem:[#allocation3 + $0x90] sm:$0xff] %v3808
        %3873 = vst [vmem:[#allocation3 + $0x98] sm:$0xff] %v3809
        %3874 = vst [vmem:[#allocation3 + $0xa0] sm:$0xff] %v3810
        %3875 = vst [vmem:[#allocation3 + $0xa8] sm:$0xff] %v3811
        %3876 = vst [vmem:[#allocation3 + $0xb0] sm:$0xff] %v3812
        %3877 = vst [vmem:[#allocation3 + $0xb8] sm:$0xff] %v3813
        %3878 = vst [vmem:[#allocation3 + $0xc0] sm:$0xff] %v3814
        %3879 = vst [vmem:[#allocation3 + $0xc8] sm:$0xff] %v3815
        %3880 = vst [vmem:[#allocation3 + $0xd0] sm:$0xff] %v3816
        %3881 = vst [vmem:[#allocation3 + $0xd8] sm:$0xff] %v3817
        %3882 = vst [vmem:[#allocation3 + $0xe0] sm:$0xff] %v3818
        %3883 = vst [vmem:[#allocation3 + $0xe8] sm:$0xff] %v3819
        %3884 = vst [vmem:[#allocation3 + $0xf0] sm:$0xff] %v3820
        %3885 = vst [vmem:[#allocation3 + $0xf8] sm:$0xff] %v3821
        %3886 = vst [vmem:[#allocation3 + $0x100] sm:$0xff] %v3822
        %3887 = vst [vmem:[#allocation3 + $0x108] sm:$0xff] %v3823
        %3888 = vst [vmem:[#allocation3 + $0x110] sm:$0xff] %v3824
        %3889 = vst [vmem:[#allocation3 + $0x118] sm:$0xff] %v3825
        %3890 = vst [vmem:[#allocation3 + $0x120] sm:$0xff] %v3826
        %3891 = vst [vmem:[#allocation3 + $0x128] sm:$0xff] %v3827
        %3892 = vst [vmem:[#allocation3 + $0x130] sm:$0xff] %v3828
        %3893 = vst [vmem:[#allocation3 + $0x138] sm:$0xff] %v3829
        %3894 = vst [vmem:[#allocation3 + $0x140] sm:$0xff] %v3830
        %3895 = vst [vmem:[#allocation3 + $0x148] sm:$0xff] %v3831
        %3896 = vst [vmem:[#allocation3 + $0x150] sm:$0xff] %v3832
        %3897 = vst [vmem:[#allocation3 + $0x158] sm:$0xff] %v3833
        %3898 = vst [vmem:[#allocation3 + $0x160] sm:$0xff] %v3834
        %3899 = vst [vmem:[#allocation3 + $0x168] sm:$0xff] %v3835
        %3900 = vst [vmem:[#allocation3 + $0x170] sm:$0xff] %v3836
        %3901 = vst [vmem:[#allocation3 + $0x178] sm:$0xff] %v3837
        %3902 = vst [vmem:[#allocation3 + $0x180] sm:$0xff] %v3838
        %3903 = vst [vmem:[#allocation3 + $0x188] sm:$0xff] %v3839
        %3904 = vst [vmem:[#allocation3 + $0x190] sm:$0xff] %v3840
        %3905 = vst [vmem:[#allocation3 + $0x198] sm:$0xff] %v3841
        %3906 = vst [vmem:[#allocation3 + $0x1a0] sm:$0xff] %v3842
        %3907 = vst [vmem:[#allocation3 + $0x1a8] sm:$0xff] %v3843
        %3908 = vst [vmem:[#allocation3 + $0x1b0] sm:$0xff] %v3844
        %3909 = vst [vmem:[#allocation3 + $0x1b8] sm:$0xff] %v3845
        %3910 = vst [vmem:[#allocation3 + $0x1c0] sm:$0xff] %v3846
        %3911 = vst [vmem:[#allocation3 + $0x1c8] sm:$0xff] %v3847
        %3912 = vst [vmem:[#allocation3 + $0x1d0] sm:$0xff] %v3848
        %3913 = vst [vmem:[#allocation3 + $0x1d8] sm:$0xff] %v3849
        %3914 = vst [vmem:[#allocation3 + $0x1e0] sm:$0xff] %v3850
        %3915 = vst [vmem:[#allocation3 + $0x1e8] sm:$0xff] %v3851
        %3916 = vst [vmem:[#allocation3 + $0x1f0] sm:$0xff] %v3852
        %3917 = vst [vmem:[#allocation3 + $0x1f8] sm:$0xff] %v3853
        %v3918 = vld [vmem:[#allocation3] sm:$0xff]
        %v3919 = vld [vmem:[#allocation3 + $0x8] sm:$0xff]
        %v3920 = vld [vmem:[#allocation3 + $0x20] sm:$0xff]
        %v3921 = vld [vmem:[#allocation3 + $0x28] sm:$0xff]
        %v3922 = vld [vmem:[#allocation3 + $0x40] sm:$0xff]
        %v3923 = vld [vmem:[#allocation3 + $0x48] sm:$0xff]
        %v3924 = vld [vmem:[#allocation3 + $0x60] sm:$0xff]
        %v3925 = vld [vmem:[#allocation3 + $0x68] sm:$0xff]
        %v3926 = vld [vmem:[#allocation3 + $0x80] sm:$0xff]
        %v3927 = vld [vmem:[#allocation3 + $0x88] sm:$0xff]
        %v3928 = vld [vmem:[#allocation3 + $0xa0] sm:$0xff]
        %v3929 = vld [vmem:[#allocation3 + $0xa8] sm:$0xff]
        %v3930 = vld [vmem:[#allocation3 + $0xc0] sm:$0xff]
        %v3931 = vld [vmem:[#allocation3 + $0xc8] sm:$0xff]
        %v3932 = vld [vmem:[#allocation3 + $0xe0] sm:$0xff]
        %v3933 = vld [vmem:[#allocation3 + $0xe8] sm:$0xff]
        %v3934 = vld [vmem:[#allocation3 + $0x100] sm:$0xff]
        %v3935 = vld [vmem:[#allocation3 + $0x108] sm:$0xff]
        %v3936 = vld [vmem:[#allocation3 + $0x120] sm:$0xff]
        %v3937 = vld [vmem:[#allocation3 + $0x128] sm:$0xff]
        %v3938 = vld [vmem:[#allocation3 + $0x140] sm:$0xff]
        %v3939 = vld [vmem:[#allocation3 + $0x148] sm:$0xff]
        %v3940 = vld [vmem:[#allocation3 + $0x160] sm:$0xff]
        %v3941 = vld [vmem:[#allocation3 + $0x168] sm:$0xff]
        %v3942 = vld [vmem:[#allocation3 + $0x180] sm:$0xff]
        %v3943 = vld [vmem:[#allocation3 + $0x188] sm:$0xff]
        %v3944 = vld [vmem:[#allocation3 + $0x1a0] sm:$0xff]
        %v3945 = vld [vmem:[#allocation3 + $0x1a8] sm:$0xff]
        %v3946 = vld [vmem:[#allocation3 + $0x1c0] sm:$0xff]
        %v3947 = vld [vmem:[#allocation3 + $0x1c8] sm:$0xff]
        %v3948 = vld [vmem:[#allocation3 + $0x1e0] sm:$0xff]
        %v3949 = vld [vmem:[#allocation3 + $0x1e8] sm:$0xff]
        %v3950 = vld [vmem:[%s2] sm:$0x1]
        %v3952 = vlaneseq
        %v3953 = vshrl.u32 %v3952, 7
        %v3954 = vsub.s32 0, %v3953
        %v3955 = vrot.slane %v3950, %v3954
        %v3957 = vadd.f32 %v3918, %v3955
        %v3958 = vadd.f32 %v3919, %v3955
        %v3959 = vadd.f32 %v3920, %v3955
        %v3960 = vadd.f32 %v3921, %v3955
        %v3961 = vadd.f32 %v3922, %v3955
        %v3962 = vadd.f32 %v3923, %v3955
        %v3963 = vadd.f32 %v3924, %v3955
        %v3964 = vadd.f32 %v3925, %v3955
        %v3965 = vadd.f32 %v3926, %v3955
        %v3966 = vadd.f32 %v3927, %v3955
        %v3967 = vadd.f32 %v3928, %v3955
        %v3968 = vadd.f32 %v3929, %v3955
        %v3969 = vadd.f32 %v3930, %v3955
        %v3970 = vadd.f32 %v3931, %v3955
        %v3971 = vadd.f32 %v3932, %v3955
        %v3972 = vadd.f32 %v3933, %v3955
        %v3973 = vadd.f32 %v3934, %v3955
        %v3974 = vadd.f32 %v3935, %v3955
        %v3975 = vadd.f32 %v3936, %v3955
        %v3976 = vadd.f32 %v3937, %v3955
        %v3977 = vadd.f32 %v3938, %v3955
        %v3978 = vadd.f32 %v3939, %v3955
        %v3979 = vadd.f32 %v3940, %v3955
        %v3980 = vadd.f32 %v3941, %v3955
        %v3981 = vadd.f32 %v3942, %v3955
        %v3982 = vadd.f32 %v3943, %v3955
        %v3983 = vadd.f32 %v3944, %v3955
        %v3984 = vadd.f32 %v3945, %v3955
        %v3985 = vadd.f32 %v3946, %v3955
        %v3986 = vadd.f32 %v3947, %v3955
        %v3987 = vadd.f32 %v3948, %v3955
        %v3988 = vadd.f32 %v3949, %v3955
        %v3989 = vpack.c.bf16 %v3958, %v3957
        %v3990 = vpack.c.bf16 %v3960, %v3959
        %v3991 = vpack.c.bf16 %v3962, %v3961
        %v3992 = vpack.c.bf16 %v3964, %v3963
        %v3993 = vpack.c.bf16 %v3966, %v3965
        %v3994 = vpack.c.bf16 %v3968, %v3967
        %v3995 = vpack.c.bf16 %v3970, %v3969
        %v3996 = vpack.c.bf16 %v3972, %v3971
        %v3997 = vpack.c.bf16 %v3974, %v3973
        %v3998 = vpack.c.bf16 %v3976, %v3975
        %v3999 = vpack.c.bf16 %v3978, %v3977
        %v4000 = vpack.c.bf16 %v3980, %v3979
        %v4001 = vpack.c.bf16 %v3982, %v3981
        %v4002 = vpack.c.bf16 %v3984, %v3983
        %v4003 = vpack.c.bf16 %v3986, %v3985
        %v4004 = vpack.c.bf16 %v3988, %v3987
        %v4021 = vunpack.c.l.b16 %v3989
        %v4022 = vunpack.c.h.b16 %v3989
        %v4023 = vunpack.c.l.b16 %v3990
        %v4024 = vunpack.c.h.b16 %v3990
        %v4025 = vunpack.c.l.b16 %v3991
        %v4026 = vunpack.c.h.b16 %v3991
        %v4027 = vunpack.c.l.b16 %v3992
        %v4028 = vunpack.c.h.b16 %v3992
        %v4029 = vunpack.c.l.b16 %v3993
        %v4030 = vunpack.c.h.b16 %v3993
        %v4031 = vunpack.c.l.b16 %v3994
        %v4032 = vunpack.c.h.b16 %v3994
        %v4033 = vunpack.c.l.b16 %v3995
        %v4034 = vunpack.c.h.b16 %v3995
        %v4035 = vunpack.c.l.b16 %v3996
        %v4036 = vunpack.c.h.b16 %v3996
        %v4037 = vunpack.c.l.b16 %v3997
        %v4038 = vunpack.c.h.b16 %v3997
        %v4039 = vunpack.c.l.b16 %v3998
        %v4040 = vunpack.c.h.b16 %v3998
        %v4041 = vunpack.c.l.b16 %v3999
        %v4042 = vunpack.c.h.b16 %v3999
        %v4043 = vunpack.c.l.b16 %v4000
        %v4044 = vunpack.c.h.b16 %v4000
        %v4045 = vunpack.c.l.b16 %v4001
        %v4046 = vunpack.c.h.b16 %v4001
        %v4047 = vunpack.c.l.b16 %v4002
        %v4048 = vunpack.c.h.b16 %v4002
        %v4049 = vunpack.c.l.b16 %v4003
        %v4050 = vunpack.c.h.b16 %v4003
        %v4051 = vunpack.c.l.b16 %v4004
        %v4052 = vunpack.c.h.b16 %v4004
        %v4053 = vpack.c.b16 %v4021, %v4021
        %v4054 = vpack.c.b16 %v4022, %v4022
        %v4055 = vpack.c.b16 %v4023, %v4023
        %v4056 = vpack.c.b16 %v4024, %v4024
        %v4057 = vpack.c.b16 %v4025, %v4025
        %v4058 = vpack.c.b16 %v4026, %v4026
        %v4059 = vpack.c.b16 %v4027, %v4027
        %v4060 = vpack.c.b16 %v4028, %v4028
        %v4061 = vpack.c.b16 %v4029, %v4029
        %v4062 = vpack.c.b16 %v4030, %v4030
        %v4063 = vpack.c.b16 %v4031, %v4031
        %v4064 = vpack.c.b16 %v4032, %v4032
        %v4065 = vpack.c.b16 %v4033, %v4033
        %v4066 = vpack.c.b16 %v4034, %v4034
        %v4067 = vpack.c.b16 %v4035, %v4035
        %v4068 = vpack.c.b16 %v4036, %v4036
        %v4069 = vpack.c.b16 %v4037, %v4037
        %v4070 = vpack.c.b16 %v4038, %v4038
        %v4071 = vpack.c.b16 %v4039, %v4039
        %v4072 = vpack.c.b16 %v4040, %v4040
        %v4073 = vpack.c.b16 %v4041, %v4041
        %v4074 = vpack.c.b16 %v4042, %v4042
        %v4075 = vpack.c.b16 %v4043, %v4043
        %v4076 = vpack.c.b16 %v4044, %v4044
        %v4077 = vpack.c.b16 %v4045, %v4045
        %v4078 = vpack.c.b16 %v4046, %v4046
        %v4079 = vpack.c.b16 %v4047, %v4047
        %v4080 = vpack.c.b16 %v4048, %v4048
        %v4081 = vpack.c.b16 %v4049, %v4049
        %v4082 = vpack.c.b16 %v4050, %v4050
        %v4083 = vpack.c.b16 %v4051, %v4051
        %v4084 = vpack.c.b16 %v4052, %v4052
        %4117 = vst [vmem:[%s177] sm:$0xf] %v4053
        %4118 = vst [vmem:[%s177 + $0x4] sm:$0xf] %v4054
        %4119 = vst [vmem:[%s177 + $0x8] sm:$0xf] %v4055
        %4120 = vst [vmem:[%s177 + $0xc] sm:$0xf] %v4056
        %4121 = vst [vmem:[%s177 + $0x10] sm:$0xf] %v4057
        %4122 = vst [vmem:[%s177 + $0x14] sm:$0xf] %v4058
        %4123 = vst [vmem:[%s177 + $0x18] sm:$0xf] %v4059
        %4124 = vst [vmem:[%s177 + $0x1c] sm:$0xf] %v4060
        %4125 = vst [vmem:[%s177 + $0x20] sm:$0xf] %v4061
        %4126 = vst [vmem:[%s177 + $0x24] sm:$0xf] %v4062
        %4127 = vst [vmem:[%s177 + $0x28] sm:$0xf] %v4063
        %4128 = vst [vmem:[%s177 + $0x2c] sm:$0xf] %v4064
        %4129 = vst [vmem:[%s177 + $0x30] sm:$0xf] %v4065
        %4130 = vst [vmem:[%s177 + $0x34] sm:$0xf] %v4066
        %4131 = vst [vmem:[%s177 + $0x38] sm:$0xf] %v4067
        %4132 = vst [vmem:[%s177 + $0x3c] sm:$0xf] %v4068
        %4133 = vst [vmem:[%s177 + $0x40] sm:$0xf] %v4069
        %4134 = vst [vmem:[%s177 + $0x44] sm:$0xf] %v4070
        %4135 = vst [vmem:[%s177 + $0x48] sm:$0xf] %v4071
        %4136 = vst [vmem:[%s177 + $0x4c] sm:$0xf] %v4072
        %4137 = vst [vmem:[%s177 + $0x50] sm:$0xf] %v4073
        %4138 = vst [vmem:[%s177 + $0x54] sm:$0xf] %v4074
        %4139 = vst [vmem:[%s177 + $0x58] sm:$0xf] %v4075
        %4140 = vst [vmem:[%s177 + $0x5c] sm:$0xf] %v4076
        %4141 = vst [vmem:[%s177 + $0x60] sm:$0xf] %v4077
        %4142 = vst [vmem:[%s177 + $0x64] sm:$0xf] %v4078
        %4143 = vst [vmem:[%s177 + $0x68] sm:$0xf] %v4079
        %4144 = vst [vmem:[%s177 + $0x6c] sm:$0xf] %v4080
        %4145 = vst [vmem:[%s177 + $0x70] sm:$0xf] %v4081
        %4146 = vst [vmem:[%s177 + $0x74] sm:$0xf] %v4082
        %4147 = vst [vmem:[%s177 + $0x78] sm:$0xf] %v4083
        %4148 = vst [vmem:[%s177 + $0x7c] sm:$0xf] %v4084
        %s4149 = sand.u32 %s107, 1
        %s4150 = scalar_lea.sflag [#allocation5], %s4149
        %s4151 = sand.u32 %s107, 1
        %s4152 = smul.addr %s4151, 128
        %s4153 = scalar_lea.vmem [#allocation4], %s4152
        // Predicated region
        $region33: #{grouped_conv2d.1} parent=31 // pred_check
          %p4154 = pneg %p117
        $region34: #{grouped_conv2d.1} parent=31 // pred_check_branch
          %4156 = sbr.rel (%p4154) target = $region36
        $region35: #{grouped_conv2d.1} parent=31 // pred_region
          %s4157 = smul.u32 16, %s22
          %s4159 = ssub.s32 2048, 2048
          %4160 = vsyncadd %s4150, %s4159
          %s4161 = smul.addr %s4157, 2
          %s4162 = smul.addr %s21, 32
          %s4163 = sadd.s32 %s4161, %s4162
          %s4164 = smul.addr %s4163, 64
          %s4165 = scalar_lea.hbm %s3, %s4164
          %s4166 = sshll.u32 %s4153, 4
          %s4167 = int_to_ptr.vmem [resolvable:$true] %s4166
          %4172 = dma.vmem_to_hbm [thread:$0]  %s4167, 2048, %s4165, %s4150, 64, 64, 4
        $region36: #{grouped_conv2d.1} parent=31 // pred_fallthru
          _
      $region32: #{grouped_conv2d.1} parent=5 // pred_fallthru
        _
      %p4173 = scmp.le.s32.totalorder 2, %s12
      // Predicated region
      $region37: #{grouped_conv2d.1} parent=5 // pred_check
        %p4174 = pneg %p4173
      $region38: #{grouped_conv2d.1} parent=5 // pred_check_branch
        %4176 = sbr.rel (%p4174) target = $region40
      $region39: #{grouped_conv2d.1} parent=5 // pred_region
        %s4177 = ssub.s32 %s12, 2
        // Predicated region
        $region41: #{grouped_conv2d.1} parent=39 // pred_check
          %p4178 = pneg %p123
        $region42: #{grouped_conv2d.1} parent=39 // pred_check_branch
          %4180 = sbr.rel (%p4178) target = $region44
        $region43: #{grouped_conv2d.1} parent=39 // pred_region
          %s4181 = sand.u32 %s108, 1
          %s4182 = scalar_lea.sflag [#allocation5], %s4181
          %s4183 = sand.u32 %s108, 1
          %s4184 = smul.addr %s4183, 128
          %s4185 = scalar_lea.vmem [#allocation4], %s4184
          %4186 = dma.done %s4182, 2048
        $region44: #{grouped_conv2d.1} parent=39 // pred_fallthru
          _
      $region40: #{grouped_conv2d.1} parent=5 // pred_fallthru
        _
    $region6: #{grouped_conv2d.1} parent=1 // loop_footer
      %s16 = sadd.s32 1, %s12
    $region7: #{grouped_conv2d.1} parent=1 // loop_footer_branch
      %11 = sbr.rel target = $region3
    $region8: #{grouped_conv2d.1} parent=1 // loop_exit
      _
    %4187 = vsyncpa [#allocation5], 1
    %s4188 = scalar_lea.sflag [#allocation5], 1
    %4189 = vsyncpa %s4188, 1

</llo_original>
